<compile_context>
chip_gen: v7x
topology: tpu7x:2x2x1
jax: 0.10.0
libtpu: 0.0.40
codegen_flags: <defaults>
</compile_context>

<pallas_src>
import jax
import jax.numpy as jnp
from jax.experimental import pallas as pl
from jax.experimental.pallas import tpu as pltpu

Z_DIM = 512
N_CLASSES = 48
GROUP = 16                      # inner width of the first view
H2_DIM = N_CLASSES * GROUP      # 768
HIDDEN_SIZE = 64
EPS = 1e-5                      # torch.nn.LayerNorm default

_HP = jax.lax.Precision.HIGHEST


def _vmem_spec():
    return pl.BlockSpec(memory_space=pltpu.MemorySpace.VMEM)


# --------------------------- fused forward kernel ---------------------------
def hypernet_fused_kernel(z_ref, w1_ref, b1_ref, w2_ref, b2_ref,
                          w3_ref, b3_ref, out_ref):
    f32 = jnp.float32

    # ---- dense 1 & 2: (1,512) -> (1,48) -> (1,768) -------------------------
    h48 = jnp.dot(z_ref[...], w1_ref[...],
                  preferred_element_type=f32, precision=_HP) + b1_ref[...]
    h768 = jnp.dot(h48, w2_ref[...],
                   preferred_element_type=f32, precision=_HP) + b2_ref[...]

    # ---- row-major "view" (1,768) -> (48,16): block-mask + XLU roll-fold ---
    # masked[i, m] = h768[m] if m // 16 == i else 0   (exact zeros elsewhere)
    row_id = jax.lax.broadcasted_iota(jnp.int32, (N_CLASSES, 1), 0)      # (48,1)
    blk_id = jax.lax.shift_right_logical(
        jax.lax.broadcasted_iota(jnp.int32, (1, H2_DIM), 1), 4)          # m // 16
    masked = jnp.where(row_id == blk_id, h768, 0.0)                      # (48,768)

    # Tree-fold the 48 blocks of 16 lanes into lanes [0:16]:
    #   y[i, p] = sum_b masked[i, (p + 16*b) mod 768]   (each block exactly once)
    # All shifts are multiples of 16, and each accumulated offset set is closed
    # under negation mod 768, so the result does not depend on the rotation
    # direction convention.  h[i, j] = y[i, j] = h768[16*i + j].
    y = masked
    for s in (384, 192, 96, 48):
        y = y + pltpu.roll(y, shift=s, axis=1)
    y = y + pltpu.roll(y, shift=16, axis=1) + pltpu.roll(y, shift=32, axis=1)
    h = y[:, :GROUP]                                                     # (48,16)

    # ---- LayerNorm([16]) (fresh module: weight=1, bias=0, biased var) ------
    mu1 = jnp.mean(h, axis=-1, keepdims=True)
    var1 = jnp.mean((h - mu1) ** 2, axis=-1, keepdims=True)
    hn = (h - mu1) * jax.lax.rsqrt(var1 + EPS)

    # ---- dense 3: (48,16) @ (16,64) + b3 ------------------------------------
    y3 = jnp.dot(hn, w3_ref[...],
                 preferred_element_type=f32, precision=_HP) + b3_ref[...]

    # ---- LayerNorm([64]) ----------------------------------------------------
    mu2 = jnp.mean(y3, axis=-1, keepdims=True)
    var2 = jnp.mean((y3 - mu2) ** 2, axis=-1, keepdims=True)
    out_ref[...] = (y3 - mu2) * jax.lax.rsqrt(var2 + EPS)                # (48,64)


@jax.jit
def hypernetwork_forward(z, params):
    """z: (Z_DIM,) float32 -> kernel: (N_CLASSES, HIDDEN_SIZE) float32."""
    z2 = z.reshape(1, Z_DIM)
    return pl.pallas_call(
        hypernet_fused_kernel,
        out_shape=jax.ShapeDtypeStruct((N_CLASSES, HIDDEN_SIZE), jnp.float32),
        in_specs=[_vmem_spec()] * 7,
        out_specs=_vmem_spec(),
    )(z2, params["w1"], params["b1"], params["w2"], params["b2"],
      params["w3"], params["b3"])


# ------------------------- reference (pure JAX) -----------------------------
def hypernetwork_reference(z, params):
    h1 = jnp.dot(z.reshape(1, Z_DIM), params["w1"], precision=_HP) + params["b1"]
    h1 = jnp.dot(h1, params["w2"], precision=_HP) + params["b2"]
    h1 = h1.reshape(N_CLASSES, GROUP)
    m = jnp.mean(h1, axis=-1, keepdims=True)
    v = jnp.mean((h1 - m) ** 2, axis=-1, keepdims=True)
    h1 = (h1 - m) / jnp.sqrt(v + EPS)
    h1 = jnp.dot(h1, params["w3"], precision=_HP) + params["b3"]
    k = h1.reshape(N_CLASSES, HIDDEN_SIZE)
    m2 = jnp.mean(k, axis=-1, keepdims=True)
    v2 = jnp.mean((k - m2) ** 2, axis=-1, keepdims=True)
    return (k - m2) / jnp.sqrt(v2 + EPS)


def init_params(key):
    """Deterministic stand-ins for torch.fmod(torch.randn(...), k).
    Biases stored as (1, N) so the wrapper does no per-call reshapes."""
    keys = jax.random.split(key, 6)
    return {
        "w1": jnp.fmod(jax.random.normal(keys[0], (Z_DIM, N_CLASSES), jnp.float32), 1.0),
        "b1": jnp.fmod(jax.random.normal(keys[1], (1, N_CLASSES), jnp.float32), 1.0),
        "w2": jnp.fmod(jax.random.normal(keys[2], (N_CLASSES, H2_DIM), jnp.float32), 1.0),
        "b2": jnp.fmod(jax.random.normal(keys[3], (1, H2_DIM), jnp.float32), 1.0),
        "w3": jnp.fmod(jax.random.normal(keys[4], (GROUP, HIDDEN_SIZE), jnp.float32), 1.0),
        "b3": jnp.fmod(jax.random.normal(keys[5], (1, HIDDEN_SIZE), jnp.float32), 1.0),
    }


if __name__ == "__main__":
    root = jax.random.PRNGKey(0)
    k_z, k_p = jax.random.split(root)

    # z Parameter: torch.fmod(torch.randn(512), 2)
    z = jnp.fmod(jax.random.normal(k_z, (Z_DIM,), jnp.float32), 2.0)
    params = init_params(k_p)

    out = hypernetwork_forward(z, params)
    out = jax.block_until_ready(out)

    ref = hypernetwork_reference(z, params)
    assert out.shape == (N_CLASSES, HIDDEN_SIZE)
    assert jnp.allclose(out, ref, atol=1e-4, rtol=1e-4), "mismatch vs pure-JAX reference"

    print("KERNEL_OK")
</pallas_src>

<mosaic_0001>
module attributes {stable_mosaic.version = 11 : i64} {
  func.func @hypernet_fused_kernel(%arg0: memref<1x512xf32, #tpu.memory_space<vmem>>, %arg1: memref<512x48xf32, #tpu.memory_space<vmem>>, %arg2: memref<1x48xf32, #tpu.memory_space<vmem>>, %arg3: memref<48x768xf32, #tpu.memory_space<vmem>>, %arg4: memref<1x768xf32, #tpu.memory_space<vmem>>, %arg5: memref<16x64xf32, #tpu.memory_space<vmem>>, %arg6: memref<1x64xf32, #tpu.memory_space<vmem>>, %arg7: memref<48x64xf32, #tpu.memory_space<vmem>>) attributes {dimension_semantics = [], scalar_prefetch = 0 : i64, scratch_operands = 0 : i64, tpu.core_type = #tpu.core_type<tc>} {
    %c0 = arith.constant 0 : index
    %c0_0 = arith.constant 0 : index
    %0 = vector.load %arg0[%c0, %c0_0] : memref<1x512xf32, #tpu.memory_space<vmem>>, vector<1x512xf32>
    %c0_1 = arith.constant 0 : index
    %c0_2 = arith.constant 0 : index
    %1 = vector.load %arg1[%c0_1, %c0_2] : memref<512x48xf32, #tpu.memory_space<vmem>>, vector<512x48xf32>
    %cst = arith.constant dense<0.000000e+00> : vector<1x48xf32>
    %2 = tpu.matmul %0, %1, %cst {dimension_numbers = #tpu.dot_dimension_numbers<[1], [0], [0], [1], [0, 0, 1, 1], [], []>, precision = #tpu.contract_precision<fp32>} : vector<1x512xf32>, vector<512x48xf32>, vector<1x48xf32> -> vector<1x48xf32>
    %c0_3 = arith.constant 0 : index
    %c0_4 = arith.constant 0 : index
    %3 = vector.load %arg2[%c0_3, %c0_4] : memref<1x48xf32, #tpu.memory_space<vmem>>, vector<1x48xf32>
    %4 = arith.addf %2, %3 : vector<1x48xf32>
    %c0_5 = arith.constant 0 : index
    %c0_6 = arith.constant 0 : index
    %5 = vector.load %arg3[%c0_5, %c0_6] : memref<48x768xf32, #tpu.memory_space<vmem>>, vector<48x768xf32>
    %cst_7 = arith.constant dense<0.000000e+00> : vector<1x768xf32>
    %6 = tpu.matmul %4, %5, %cst_7 {dimension_numbers = #tpu.dot_dimension_numbers<[1], [0], [0], [1], [0, 0, 1, 1], [], []>, precision = #tpu.contract_precision<fp32>} : vector<1x48xf32>, vector<48x768xf32>, vector<1x768xf32> -> vector<1x768xf32>
    %c0_8 = arith.constant 0 : index
    %c0_9 = arith.constant 0 : index
    %7 = vector.load %arg4[%c0_8, %c0_9] : memref<1x768xf32, #tpu.memory_space<vmem>>, vector<1x768xf32>
    %8 = arith.addf %6, %7 : vector<1x768xf32>
    %9 = tpu.iota {dimensions = array<i32: 0>} : vector<48x1xi32>
    %10 = tpu.iota {dimensions = array<i32: 1>} : vector<1x768xi32>
    %c4_i32 = arith.constant 4 : i32
    %11 = vector.broadcast %c4_i32 : i32 to vector<1x768xi32>
    %12 = arith.shrui %10, %11 : vector<1x768xi32>
    %13 = vector.broadcast %9 : vector<48x1xi32> to vector<48x768xi32>
    %14 = vector.broadcast %12 : vector<1x768xi32> to vector<48x768xi32>
    %15 = arith.cmpi eq, %13, %14 : vector<48x768xi32>
    %cst_10 = arith.constant 0.000000e+00 : f32
    %16 = vector.shape_cast %8 : vector<1x768xf32> to vector<1x768xf32>
    %17 = vector.broadcast %16 : vector<1x768xf32> to vector<48x768xf32>
    %18 = vector.broadcast %cst_10 : f32 to vector<48x768xf32>
    %19 = arith.select %15, %17, %18 : vector<48x768xi1>, vector<48x768xf32>
    %c384_i32 = arith.constant 384 : i32
    %20 = tpu.dynamic_rotate %19 by %c384_i32 dim 1 : vector<48x768xf32>, i32 -> vector<48x768xf32>
    %21 = arith.addf %19, %20 : vector<48x768xf32>
    %c192_i32 = arith.constant 192 : i32
    %22 = tpu.dynamic_rotate %21 by %c192_i32 dim 1 : vector<48x768xf32>, i32 -> vector<48x768xf32>
    %23 = arith.addf %21, %22 : vector<48x768xf32>
    %c96_i32 = arith.constant 96 : i32
    %24 = tpu.dynamic_rotate %23 by %c96_i32 dim 1 : vector<48x768xf32>, i32 -> vector<48x768xf32>
    %25 = arith.addf %23, %24 : vector<48x768xf32>
    %c48_i32 = arith.constant 48 : i32
    %26 = tpu.dynamic_rotate %25 by %c48_i32 dim 1 : vector<48x768xf32>, i32 -> vector<48x768xf32>
    %27 = arith.addf %25, %26 : vector<48x768xf32>
    %c16_i32 = arith.constant 16 : i32
    %28 = tpu.dynamic_rotate %27 by %c16_i32 dim 1 : vector<48x768xf32>, i32 -> vector<48x768xf32>
    %29 = arith.addf %27, %28 : vector<48x768xf32>
    %c32_i32 = arith.constant 32 : i32
    %30 = tpu.dynamic_rotate %27 by %c32_i32 dim 1 : vector<48x768xf32>, i32 -> vector<48x768xf32>
    %31 = arith.addf %29, %30 : vector<48x768xf32>
    %32 = vector.extract_strided_slice %31 {offsets = [0, 0], sizes = [48, 16], strides = [1, 1]} : vector<48x768xf32> to vector<48x16xf32>
    %cst_11 = arith.constant dense<0.000000e+00> : vector<48xf32>
    %33 = vector.multi_reduction <add>, %32, %cst_11 [1] : vector<48x16xf32> to vector<48xf32>
    %34 = vector.shape_cast %33 : vector<48xf32> to vector<48x1xf32>
    %cst_12 = arith.constant 1.600000e+01 : f32
    %35 = vector.broadcast %cst_12 : f32 to vector<48x1xf32>
    %36 = arith.divf %34, %35 : vector<48x1xf32>
    %37 = vector.broadcast %36 : vector<48x1xf32> to vector<48x16xf32>
    %38 = arith.subf %32, %37 : vector<48x16xf32>
    %39 = arith.mulf %38, %38 : vector<48x16xf32>
    %cst_13 = arith.constant dense<0.000000e+00> : vector<48xf32>
    %40 = vector.multi_reduction <add>, %39, %cst_13 [1] : vector<48x16xf32> to vector<48xf32>
    %41 = vector.shape_cast %40 : vector<48xf32> to vector<48x1xf32>
    %cst_14 = arith.constant 1.600000e+01 : f32
    %42 = vector.broadcast %cst_14 : f32 to vector<48x1xf32>
    %43 = arith.divf %41, %42 : vector<48x1xf32>
    %44 = vector.broadcast %36 : vector<48x1xf32> to vector<48x16xf32>
    %45 = arith.subf %32, %44 : vector<48x16xf32>
    %cst_15 = arith.constant 9.99999974E-6 : f32
    %46 = vector.broadcast %cst_15 : f32 to vector<48x1xf32>
    %47 = arith.addf %43, %46 : vector<48x1xf32>
    %48 = math.rsqrt %47 : vector<48x1xf32>
    %49 = vector.broadcast %48 : vector<48x1xf32> to vector<48x16xf32>
    %50 = arith.mulf %45, %49 : vector<48x16xf32>
    %c0_16 = arith.constant 0 : index
    %c0_17 = arith.constant 0 : index
    %51 = vector.load %arg5[%c0_16, %c0_17] : memref<16x64xf32, #tpu.memory_space<vmem>>, vector<16x64xf32>
    %cst_18 = arith.constant dense<0.000000e+00> : vector<48x64xf32>
    %52 = tpu.matmul %50, %51, %cst_18 {dimension_numbers = #tpu.dot_dimension_numbers<[1], [0], [0], [1], [0, 0, 1, 1], [], []>, precision = #tpu.contract_precision<fp32>} : vector<48x16xf32>, vector<16x64xf32>, vector<48x64xf32> -> vector<48x64xf32>
    %c0_19 = arith.constant 0 : index
    %c0_20 = arith.constant 0 : index
    %53 = vector.load %arg6[%c0_19, %c0_20] : memref<1x64xf32, #tpu.memory_space<vmem>>, vector<1x64xf32>
    %54 = vector.broadcast %53 : vector<1x64xf32> to vector<48x64xf32>
    %55 = arith.addf %52, %54 : vector<48x64xf32>
    %cst_21 = arith.constant dense<0.000000e+00> : vector<48xf32>
    %56 = vector.multi_reduction <add>, %55, %cst_21 [1] : vector<48x64xf32> to vector<48xf32>
    %57 = vector.shape_cast %56 : vector<48xf32> to vector<48x1xf32>
    %cst_22 = arith.constant 6.400000e+01 : f32
    %58 = vector.broadcast %cst_22 : f32 to vector<48x1xf32>
    %59 = arith.divf %57, %58 : vector<48x1xf32>
    %60 = vector.broadcast %59 : vector<48x1xf32> to vector<48x64xf32>
    %61 = arith.subf %55, %60 : vector<48x64xf32>
    %62 = arith.mulf %61, %61 : vector<48x64xf32>
    %cst_23 = arith.constant dense<0.000000e+00> : vector<48xf32>
    %63 = vector.multi_reduction <add>, %62, %cst_23 [1] : vector<48x64xf32> to vector<48xf32>
    %64 = vector.shape_cast %63 : vector<48xf32> to vector<48x1xf32>
    %cst_24 = arith.constant 6.400000e+01 : f32
    %65 = vector.broadcast %cst_24 : f32 to vector<48x1xf32>
    %66 = arith.divf %64, %65 : vector<48x1xf32>
    %67 = vector.broadcast %59 : vector<48x1xf32> to vector<48x64xf32>
    %68 = arith.subf %55, %67 : vector<48x64xf32>
    %cst_25 = arith.constant 9.99999974E-6 : f32
    %69 = vector.broadcast %cst_25 : f32 to vector<48x1xf32>
    %70 = arith.addf %66, %69 : vector<48x1xf32>
    %71 = math.rsqrt %70 : vector<48x1xf32>
    %72 = vector.broadcast %71 : vector<48x1xf32> to vector<48x64xf32>
    %73 = arith.mulf %68, %72 : vector<48x64xf32>
    %c0_26 = arith.constant 0 : index
    %c0_27 = arith.constant 0 : index
    %74 = vector.load %arg7[%c0_26, %c0_27] : memref<48x64xf32, #tpu.memory_space<vmem>>, vector<48x64xf32>
    tpu.vector_store %arg7[%c0_26, %c0_27], %73 {strides = array<i32>} : memref<48x64xf32, #tpu.memory_space<vmem>>, vector<48x64xf32>,
    return
  }
}

</mosaic_0001>

<llo_original>
// kernel: hypernetwork_forward.1
$region0: #{hypernetwork_forward.1}
  #allocation0 [shape = 'u32[]', space=smem, size = 0x4, offset = 0x4, fixed_abs, tag = 'smem constant byte address 0x4 - core index']
  #allocation1 [shape = 'u32[144,128]{1,0:T(1,128)}', space=vmem, size = 0x12000, scoped, tag = 'internal scratch']
  %s0 = inlined_call_operand.vmem [shape: f32[1,512], index: 0, kind: input, shape index: {}]
  %s1 = inlined_call_operand.vmem [shape: f32[512,48], index: 1, kind: input, shape index: {}]
  %s2 = inlined_call_operand.vmem [shape: f32[1,48], index: 2, kind: input, shape index: {}]
  %s3 = inlined_call_operand.vmem [shape: f32[48,768], index: 3, kind: input, shape index: {}]
  %s4 = inlined_call_operand.vmem [shape: f32[1,768], index: 4, kind: input, shape index: {}]
  %s5 = inlined_call_operand.vmem [shape: f32[16,64], index: 5, kind: input, shape index: {}]
  %s6 = inlined_call_operand.vmem [shape: f32[1,64], index: 6, kind: input, shape index: {}]
  %s7 = inlined_call_operand.hbm [shape: f32[48,64], index: 7, kind: output, shape index: {}]
  %s8 = sld [smem:[#allocation0]]
  $region38: #{hypernetwork_forward.1} parent=0
    _
  %s10 = ssub.s32 1, %s8
  %s11 = scalar_select 0, %s10, %s8
  $region1: #{hypernetwork_forward.1} parent=0
    #allocation2 [shape = 'u8[24576]{0}', space=vmem, size = 0x6000, scoped, tag = 'output window, operand 0, single buffered']
    #allocation3 [shape = 's32[1]{0}', space=sflag, size = 0x4, scoped, tag = 'scoped memory for hypernetwork_forward.1']
    %12 = vsyncpa [#allocation3], 0
    // Predicated region
    $region2: #{hypernetwork_forward.1} parent=1 // pred_check
      _
    $region3: #{hypernetwork_forward.1} parent=1 // pred_check_branch
      %14 = sbr.rel (0) target = $region5
    $region4: #{hypernetwork_forward.1} parent=1 // pred_region
      _
    $region5: #{hypernetwork_forward.1} parent=1 // pred_fallthru
      _
    // Predicated region
    $region6: #{hypernetwork_forward.1} parent=1 // pred_check
      _
    $region7: #{hypernetwork_forward.1} parent=1 // pred_check_branch
      %16 = sbr.rel (0) target = $region9
    $region8: #{hypernetwork_forward.1} parent=1 // pred_region
      _
    $region9: #{hypernetwork_forward.1} parent=1 // pred_fallthru
      _
    // Predicated region
    $region10: #{hypernetwork_forward.1} parent=1 // pred_check
      _
    $region11: #{hypernetwork_forward.1} parent=1 // pred_check_branch
      %18 = sbr.rel (0) target = $region13
    $region12: #{hypernetwork_forward.1} parent=1 // pred_region
      _
    $region13: #{hypernetwork_forward.1} parent=1 // pred_fallthru
      _
    // Predicated region
    $region14: #{hypernetwork_forward.1} parent=1 // pred_check
      _
    $region15: #{hypernetwork_forward.1} parent=1 // pred_check_branch
      %20 = sbr.rel (0) target = $region17
    $region16: #{hypernetwork_forward.1} parent=1 // pred_region
      _
    $region17: #{hypernetwork_forward.1} parent=1 // pred_fallthru
      _
    // Predicated region
    $region18: #{hypernetwork_forward.1} parent=1 // pred_check
      _
    $region19: #{hypernetwork_forward.1} parent=1 // pred_check_branch
      %22 = sbr.rel (0) target = $region21
    $region20: #{hypernetwork_forward.1} parent=1 // pred_region
      _
    $region21: #{hypernetwork_forward.1} parent=1 // pred_fallthru
      _
    // Predicated region
    $region22: #{hypernetwork_forward.1} parent=1 // pred_check
      _
    $region23: #{hypernetwork_forward.1} parent=1 // pred_check_branch
      %24 = sbr.rel (0) target = $region25
    $region24: #{hypernetwork_forward.1} parent=1 // pred_region
      _
    $region25: #{hypernetwork_forward.1} parent=1 // pred_fallthru
      _
    // Predicated region
    $region26: #{hypernetwork_forward.1} parent=1 // pred_check
      _
    $region27: #{hypernetwork_forward.1} parent=1 // pred_check_branch
      %26 = sbr.rel (0) target = $region29
    $region28: #{hypernetwork_forward.1} parent=1 // pred_region
      _
    $region29: #{hypernetwork_forward.1} parent=1 // pred_fallthru
      _
    %v27 = vld [vmem:[%s0] sm:$0xf]
    %v28 = vld [vmem:[%s1] sm:$0xff]
    %v29 = vld [vmem:[%s1 + $0x8] sm:$0xff]
    %v30 = vld [vmem:[%s1 + $0x10] sm:$0xff]
    %v31 = vld [vmem:[%s1 + $0x18] sm:$0xff]
    %v32 = vld [vmem:[%s1 + $0x20] sm:$0xff]
    %v33 = vld [vmem:[%s1 + $0x28] sm:$0xff]
    %v34 = vld [vmem:[%s1 + $0x30] sm:$0xff]
    %v35 = vld [vmem:[%s1 + $0x38] sm:$0xff]
    %v36 = vld [vmem:[%s1 + $0x40] sm:$0xff]
    %v37 = vld [vmem:[%s1 + $0x48] sm:$0xff]
    %v38 = vld [vmem:[%s1 + $0x50] sm:$0xff]
    %v39 = vld [vmem:[%s1 + $0x58] sm:$0xff]
    %v40 = vld [vmem:[%s1 + $0x60] sm:$0xff]
    %v41 = vld [vmem:[%s1 + $0x68] sm:$0xff]
    %v42 = vld [vmem:[%s1 + $0x70] sm:$0xff]
    %v43 = vld [vmem:[%s1 + $0x78] sm:$0xff]
    %v44 = vld [vmem:[%s1 + $0x80] sm:$0xff]
    %v45 = vld [vmem:[%s1 + $0x88] sm:$0xff]
    %v46 = vld [vmem:[%s1 + $0x90] sm:$0xff]
    %v47 = vld [vmem:[%s1 + $0x98] sm:$0xff]
    %v48 = vld [vmem:[%s1 + $0xa0] sm:$0xff]
    %v49 = vld [vmem:[%s1 + $0xa8] sm:$0xff]
    %v50 = vld [vmem:[%s1 + $0xb0] sm:$0xff]
    %v51 = vld [vmem:[%s1 + $0xb8] sm:$0xff]
    %v52 = vld [vmem:[%s1 + $0xc0] sm:$0xff]
    %v53 = vld [vmem:[%s1 + $0xc8] sm:$0xff]
    %v54 = vld [vmem:[%s1 + $0xd0] sm:$0xff]
    %v55 = vld [vmem:[%s1 + $0xd8] sm:$0xff]
    %v56 = vld [vmem:[%s1 + $0xe0] sm:$0xff]
    %v57 = vld [vmem:[%s1 + $0xe8] sm:$0xff]
    %v58 = vld [vmem:[%s1 + $0xf0] sm:$0xff]
    %v59 = vld [vmem:[%s1 + $0xf8] sm:$0xff]
    %v60 = vld [vmem:[%s1 + $0x100] sm:$0xff]
    %v61 = vld [vmem:[%s1 + $0x108] sm:$0xff]
    %v62 = vld [vmem:[%s1 + $0x110] sm:$0xff]
    %v63 = vld [vmem:[%s1 + $0x118] sm:$0xff]
    %v64 = vld [vmem:[%s1 + $0x120] sm:$0xff]
    %v65 = vld [vmem:[%s1 + $0x128] sm:$0xff]
    %v66 = vld [vmem:[%s1 + $0x130] sm:$0xff]
    %v67 = vld [vmem:[%s1 + $0x138] sm:$0xff]
    %v68 = vld [vmem:[%s1 + $0x140] sm:$0xff]
    %v69 = vld [vmem:[%s1 + $0x148] sm:$0xff]
    %v70 = vld [vmem:[%s1 + $0x150] sm:$0xff]
    %v71 = vld [vmem:[%s1 + $0x158] sm:$0xff]
    %v72 = vld [vmem:[%s1 + $0x160] sm:$0xff]
    %v73 = vld [vmem:[%s1 + $0x168] sm:$0xff]
    %v74 = vld [vmem:[%s1 + $0x170] sm:$0xff]
    %v75 = vld [vmem:[%s1 + $0x178] sm:$0xff]
    %v76 = vld [vmem:[%s1 + $0x180] sm:$0xff]
    %v77 = vld [vmem:[%s1 + $0x188] sm:$0xff]
    %v78 = vld [vmem:[%s1 + $0x190] sm:$0xff]
    %v79 = vld [vmem:[%s1 + $0x198] sm:$0xff]
    %v80 = vld [vmem:[%s1 + $0x1a0] sm:$0xff]
    %v81 = vld [vmem:[%s1 + $0x1a8] sm:$0xff]
    %v82 = vld [vmem:[%s1 + $0x1b0] sm:$0xff]
    %v83 = vld [vmem:[%s1 + $0x1b8] sm:$0xff]
    %v84 = vld [vmem:[%s1 + $0x1c0] sm:$0xff]
    %v85 = vld [vmem:[%s1 + $0x1c8] sm:$0xff]
    %v86 = vld [vmem:[%s1 + $0x1d0] sm:$0xff]
    %v87 = vld [vmem:[%s1 + $0x1d8] sm:$0xff]
    %v88 = vld [vmem:[%s1 + $0x1e0] sm:$0xff]
    %v89 = vld [vmem:[%s1 + $0x1e8] sm:$0xff]
    %v90 = vld [vmem:[%s1 + $0x1f0] sm:$0xff]
    %v91 = vld [vmem:[%s1 + $0x1f8] sm:$0xff]
    %v92 = vld [vmem:[%s2] sm:$0x1]
    %v94 = vlaneseq
    %v95 = vshrl.u32 %v94, 7
    %v96 = vsub.s32 0, %v95
    %v97 = vrot.slane %v27, %v96
    %v98 = vlaneseq
    %v99 = vshrl.u32 %v98, 7
    %v100 = vsub.s32 1, %v99
    %v101 = vrot.slane %v27, %v100
    %v102 = vlaneseq
    %v103 = vshrl.u32 %v102, 7
    %v104 = vsub.s32 2, %v103
    %v105 = vrot.slane %v27, %v104
    %v106 = vlaneseq
    %v107 = vshrl.u32 %v106, 7
    %v108 = vsub.s32 3, %v107
    %v109 = vrot.slane %v27, %v108
    %114 = vmatprep.subr.mxu0 0.0
    %v115 = vand.u32 %v28, 4294901760
    %116 = vmatpush1.msra.mxu0 %v115
    %117 = vmatprep.subr.mxu0 0.0
    %v118 = vand.u32 %v29, 4294901760
    %119 = vmatpush1.msra.mxu0 %v118
    %120 = vmatprep.subr.mxu0 0.0
    %v121 = vand.u32 %v30, 4294901760
    %122 = vmatpush1.msra.mxu0 %v121
    %123 = vmatprep.subr.mxu0 0.0
    %v124 = vand.u32 %v31, 4294901760
    %125 = vmatpush1.msra.mxu0 %v124
    %126 = vmatprep.subr.mxu0 0.0
    %v127 = vand.u32 %v32, 4294901760
    %128 = vmatpush1.msra.mxu0 %v127
    %129 = vmatprep.subr.mxu0 0.0
    %v130 = vand.u32 %v33, 4294901760
    %131 = vmatpush1.msra.mxu0 %v130
    %132 = vmatprep.subr.mxu0 0.0
    %v133 = vand.u32 %v34, 4294901760
    %134 = vmatpush1.msra.mxu0 %v133
    %135 = vmatprep.subr.mxu0 0.0
    %v136 = vand.u32 %v35, 4294901760
    %137 = vmatpush1.msra.mxu0 %v136
    %138 = vmatprep.subr.mxu0 0.0
    %v139 = vand.u32 %v36, 4294901760
    %140 = vmatpush1.msra.mxu0 %v139
    %141 = vmatprep.subr.mxu0 0.0
    %v142 = vand.u32 %v37, 4294901760
    %143 = vmatpush1.msra.mxu0 %v142
    %144 = vmatprep.subr.mxu0 0.0
    %v145 = vand.u32 %v38, 4294901760
    %146 = vmatpush1.msra.mxu0 %v145
    %147 = vmatprep.subr.mxu0 0.0
    %v148 = vand.u32 %v39, 4294901760
    %149 = vmatpush1.msra.mxu0 %v148
    %150 = vmatprep.subr.mxu0 0.0
    %v151 = vand.u32 %v40, 4294901760
    %152 = vmatpush1.msra.mxu0 %v151
    %153 = vmatprep.subr.mxu0 0.0
    %v154 = vand.u32 %v41, 4294901760
    %155 = vmatpush1.msra.mxu0 %v154
    %156 = vmatprep.subr.mxu0 0.0
    %v157 = vand.u32 %v42, 4294901760
    %158 = vmatpush1.msra.mxu0 %v157
    %159 = vmatprep.subr.mxu0 0.0
    %v160 = vand.u32 %v43, 4294901760
    %161 = vmatpush1.msra.mxu0 %v160
    %162 = vmatprep.subr.mxu0 0.0
    %v163 = vand.u32 %v44, 4294901760
    %164 = vmatpush1.msra.mxu0 %v163
    %165 = vmatprep.subr.mxu0 0.0
    %v166 = vand.u32 %v45, 4294901760
    %167 = vmatpush1.msra.mxu0 %v166
    %168 = vmatprep.subr.mxu0 0.0
    %v169 = vand.u32 %v46, 4294901760
    %170 = vmatpush1.msra.mxu0 %v169
    %171 = vmatprep.subr.mxu0 0.0
    %v172 = vand.u32 %v47, 4294901760
    %173 = vmatpush1.msra.mxu0 %v172
    %174 = vmatprep.subr.mxu0 0.0
    %v175 = vand.u32 %v48, 4294901760
    %176 = vmatpush1.msra.mxu0 %v175
    %177 = vmatprep.subr.mxu0 0.0
    %v178 = vand.u32 %v49, 4294901760
    %179 = vmatpush1.msra.mxu0 %v178
    %180 = vmatprep.subr.mxu0 0.0
    %v181 = vand.u32 %v50, 4294901760
    %182 = vmatpush1.msra.mxu0 %v181
    %183 = vmatprep.subr.mxu0 0.0
    %v184 = vand.u32 %v51, 4294901760
    %185 = vmatpush1.msra.mxu0 %v184
    %186 = vmatprep.subr.mxu0 0.0
    %v187 = vand.u32 %v52, 4294901760
    %188 = vmatpush1.msra.mxu0 %v187
    %189 = vmatprep.subr.mxu0 0.0
    %v190 = vand.u32 %v53, 4294901760
    %191 = vmatpush1.msra.mxu0 %v190
    %192 = vmatprep.subr.mxu0 0.0
    %v193 = vand.u32 %v54, 4294901760
    %194 = vmatpush1.msra.mxu0 %v193
    %195 = vmatprep.subr.mxu0 0.0
    %v196 = vand.u32 %v55, 4294901760
    %197 = vmatpush1.msra.mxu0 %v196
    %198 = vmatprep.subr.mxu0 0.0
    %v199 = vand.u32 %v56, 4294901760
    %200 = vmatpush1.msra.mxu0 %v199
    %201 = vmatprep.subr.mxu0 0.0
    %v202 = vand.u32 %v57, 4294901760
    %203 = vmatpush1.msra.mxu0 %v202
    %204 = vmatprep.subr.mxu0 0.0
    %v205 = vand.u32 %v58, 4294901760
    %206 = vmatpush1.msra.mxu0 %v205
    %207 = vmatprep.subr.mxu0 0.0
    %v208 = vand.u32 %v59, 4294901760
    %209 = vmatpush1.msra.mxu0 %v208
    %v210 = vand.u32 %v101, 4294901760
    %v211 = vsub.f32 %v101, %v210
    %v212 = vand.u32 %v211, 4294901760
    %v213 = vsub.f32 %v211, %v212
    %v214 = vand.u32 %v213, 4294901760
    %215 = vmatprep.mubr.f32.mxu0 %v214
    %v216 = vand.u32 %v97, 4294901760
    %v217 = vsub.f32 %v97, %v216
    %v218 = vand.u32 %v217, 4294901760
    %v219 = vsub.f32 %v217, %v218
    %v220 = vand.u32 %v219, 4294901760
    %221 = vmatmul.mubr.f32.gmra.mrb[0].mxu0 %v220
    %v222 = vpop.f32.mrb[0].mxu0
    %v223 = vadd.f32 %v92, %v222
    %v224 = vpop.f32.mrb[0].mxu0
    %225 = vdwg.mxu0
    %226 = vmatprep.subr.mxu0 0.0
    %v227 = vand.u32 %v28, 4294901760
    %v228 = vsub.f32 %v28, %v227
    %v229 = vand.u32 %v228, 4294901760
    %v230 = vsub.f32 %v228, %v229
    %v231 = vand.u32 %v230, 4294901760
    %232 = vmatpush1.msra.mxu0 %v231
    %233 = vmatprep.subr.mxu0 0.0
    %v234 = vand.u32 %v29, 4294901760
    %v235 = vsub.f32 %v29, %v234
    %v236 = vand.u32 %v235, 4294901760
    %v237 = vsub.f32 %v235, %v236
    %v238 = vand.u32 %v237, 4294901760
    %239 = vmatpush1.msra.mxu0 %v238
    %240 = vmatprep.subr.mxu0 0.0
    %v241 = vand.u32 %v30, 4294901760
    %v242 = vsub.f32 %v30, %v241
    %v243 = vand.u32 %v242, 4294901760
    %v244 = vsub.f32 %v242, %v243
    %v245 = vand.u32 %v244, 4294901760
    %246 = vmatpush1.msra.mxu0 %v245
    %247 = vmatprep.subr.mxu0 0.0
    %v248 = vand.u32 %v31, 4294901760
    %v249 = vsub.f32 %v31, %v248
    %v250 = vand.u32 %v249, 4294901760
    %v251 = vsub.f32 %v249, %v250
    %v252 = vand.u32 %v251, 4294901760
    %253 = vmatpush1.msra.mxu0 %v252
    %254 = vmatprep.subr.mxu0 0.0
    %v255 = vand.u32 %v32, 4294901760
    %v256 = vsub.f32 %v32, %v255
    %v257 = vand.u32 %v256, 4294901760
    %v258 = vsub.f32 %v256, %v257
    %v259 = vand.u32 %v258, 4294901760
    %260 = vmatpush1.msra.mxu0 %v259
    %261 = vmatprep.subr.mxu0 0.0
    %v262 = vand.u32 %v33, 4294901760
    %v263 = vsub.f32 %v33, %v262
    %v264 = vand.u32 %v263, 4294901760
    %v265 = vsub.f32 %v263, %v264
    %v266 = vand.u32 %v265, 4294901760
    %267 = vmatpush1.msra.mxu0 %v266
    %268 = vmatprep.subr.mxu0 0.0
    %v269 = vand.u32 %v34, 4294901760
    %v270 = vsub.f32 %v34, %v269
    %v271 = vand.u32 %v270, 4294901760
    %v272 = vsub.f32 %v270, %v271
    %v273 = vand.u32 %v272, 4294901760
    %274 = vmatpush1.msra.mxu0 %v273
    %275 = vmatprep.subr.mxu0 0.0
    %v276 = vand.u32 %v35, 4294901760
    %v277 = vsub.f32 %v35, %v276
    %v278 = vand.u32 %v277, 4294901760
    %v279 = vsub.f32 %v277, %v278
    %v280 = vand.u32 %v279, 4294901760
    %281 = vmatpush1.msra.mxu0 %v280
    %282 = vmatprep.subr.mxu0 0.0
    %v283 = vand.u32 %v36, 4294901760
    %v284 = vsub.f32 %v36, %v283
    %v285 = vand.u32 %v284, 4294901760
    %v286 = vsub.f32 %v284, %v285
    %v287 = vand.u32 %v286, 4294901760
    %288 = vmatpush1.msra.mxu0 %v287
    %289 = vmatprep.subr.mxu0 0.0
    %v290 = vand.u32 %v37, 4294901760
    %v291 = vsub.f32 %v37, %v290
    %v292 = vand.u32 %v291, 4294901760
    %v293 = vsub.f32 %v291, %v292
    %v294 = vand.u32 %v293, 4294901760
    %295 = vmatpush1.msra.mxu0 %v294
    %296 = vmatprep.subr.mxu0 0.0
    %v297 = vand.u32 %v38, 4294901760
    %v298 = vsub.f32 %v38, %v297
    %v299 = vand.u32 %v298, 4294901760
    %v300 = vsub.f32 %v298, %v299
    %v301 = vand.u32 %v300, 4294901760
    %302 = vmatpush1.msra.mxu0 %v301
    %303 = vmatprep.subr.mxu0 0.0
    %v304 = vand.u32 %v39, 4294901760
    %v305 = vsub.f32 %v39, %v304
    %v306 = vand.u32 %v305, 4294901760
    %v307 = vsub.f32 %v305, %v306
    %v308 = vand.u32 %v307, 4294901760
    %309 = vmatpush1.msra.mxu0 %v308
    %310 = vmatprep.subr.mxu0 0.0
    %v311 = vand.u32 %v40, 4294901760
    %v312 = vsub.f32 %v40, %v311
    %v313 = vand.u32 %v312, 4294901760
    %v314 = vsub.f32 %v312, %v313
    %v315 = vand.u32 %v314, 4294901760
    %316 = vmatpush1.msra.mxu0 %v315
    %317 = vmatprep.subr.mxu0 0.0
    %v318 = vand.u32 %v41, 4294901760
    %v319 = vsub.f32 %v41, %v318
    %v320 = vand.u32 %v319, 4294901760
    %v321 = vsub.f32 %v319, %v320
    %v322 = vand.u32 %v321, 4294901760
    %323 = vmatpush1.msra.mxu0 %v322
    %324 = vmatprep.subr.mxu0 0.0
    %v325 = vand.u32 %v42, 4294901760
    %v326 = vsub.f32 %v42, %v325
    %v327 = vand.u32 %v326, 4294901760
    %v328 = vsub.f32 %v326, %v327
    %v329 = vand.u32 %v328, 4294901760
    %330 = vmatpush1.msra.mxu0 %v329
    %331 = vmatprep.subr.mxu0 0.0
    %v332 = vand.u32 %v43, 4294901760
    %v333 = vsub.f32 %v43, %v332
    %v334 = vand.u32 %v333, 4294901760
    %v335 = vsub.f32 %v333, %v334
    %v336 = vand.u32 %v335, 4294901760
    %337 = vmatpush1.msra.mxu0 %v336
    %338 = vmatprep.subr.mxu0 0.0
    %v339 = vand.u32 %v44, 4294901760
    %v340 = vsub.f32 %v44, %v339
    %v341 = vand.u32 %v340, 4294901760
    %v342 = vsub.f32 %v340, %v341
    %v343 = vand.u32 %v342, 4294901760
    %344 = vmatpush1.msra.mxu0 %v343
    %345 = vmatprep.subr.mxu0 0.0
    %v346 = vand.u32 %v45, 4294901760
    %v347 = vsub.f32 %v45, %v346
    %v348 = vand.u32 %v347, 4294901760
    %v349 = vsub.f32 %v347, %v348
    %v350 = vand.u32 %v349, 4294901760
    %351 = vmatpush1.msra.mxu0 %v350
    %352 = vmatprep.subr.mxu0 0.0
    %v353 = vand.u32 %v46, 4294901760
    %v354 = vsub.f32 %v46, %v353
    %v355 = vand.u32 %v354, 4294901760
    %v356 = vsub.f32 %v354, %v355
    %v357 = vand.u32 %v356, 4294901760
    %358 = vmatpush1.msra.mxu0 %v357
    %359 = vmatprep.subr.mxu0 0.0
    %v360 = vand.u32 %v47, 4294901760
    %v361 = vsub.f32 %v47, %v360
    %v362 = vand.u32 %v361, 4294901760
    %v363 = vsub.f32 %v361, %v362
    %v364 = vand.u32 %v363, 4294901760
    %365 = vmatpush1.msra.mxu0 %v364
    %366 = vmatprep.subr.mxu0 0.0
    %v367 = vand.u32 %v48, 4294901760
    %v368 = vsub.f32 %v48, %v367
    %v369 = vand.u32 %v368, 4294901760
    %v370 = vsub.f32 %v368, %v369
    %v371 = vand.u32 %v370, 4294901760
    %372 = vmatpush1.msra.mxu0 %v371
    %373 = vmatprep.subr.mxu0 0.0
    %v374 = vand.u32 %v49, 4294901760
    %v375 = vsub.f32 %v49, %v374
    %v376 = vand.u32 %v375, 4294901760
    %v377 = vsub.f32 %v375, %v376
    %v378 = vand.u32 %v377, 4294901760
    %379 = vmatpush1.msra.mxu0 %v378
    %380 = vmatprep.subr.mxu0 0.0
    %v381 = vand.u32 %v50, 4294901760
    %v382 = vsub.f32 %v50, %v381
    %v383 = vand.u32 %v382, 4294901760
    %v384 = vsub.f32 %v382, %v383
    %v385 = vand.u32 %v384, 4294901760
    %386 = vmatpush1.msra.mxu0 %v385
    %387 = vmatprep.subr.mxu0 0.0
    %v388 = vand.u32 %v51, 4294901760
    %v389 = vsub.f32 %v51, %v388
    %v390 = vand.u32 %v389, 4294901760
    %v391 = vsub.f32 %v389, %v390
    %v392 = vand.u32 %v391, 4294901760
    %393 = vmatpush1.msra.mxu0 %v392
    %394 = vmatprep.subr.mxu0 0.0
    %v395 = vand.u32 %v52, 4294901760
    %v396 = vsub.f32 %v52, %v395
    %v397 = vand.u32 %v396, 4294901760
    %v398 = vsub.f32 %v396, %v397
    %v399 = vand.u32 %v398, 4294901760
    %400 = vmatpush1.msra.mxu0 %v399
    %401 = vmatprep.subr.mxu0 0.0
    %v402 = vand.u32 %v53, 4294901760
    %v403 = vsub.f32 %v53, %v402
    %v404 = vand.u32 %v403, 4294901760
    %v405 = vsub.f32 %v403, %v404
    %v406 = vand.u32 %v405, 4294901760
    %407 = vmatpush1.msra.mxu0 %v406
    %408 = vmatprep.subr.mxu0 0.0
    %v409 = vand.u32 %v54, 4294901760
    %v410 = vsub.f32 %v54, %v409
    %v411 = vand.u32 %v410, 4294901760
    %v412 = vsub.f32 %v410, %v411
    %v413 = vand.u32 %v412, 4294901760
    %414 = vmatpush1.msra.mxu0 %v413
    %415 = vmatprep.subr.mxu0 0.0
    %v416 = vand.u32 %v55, 4294901760
    %v417 = vsub.f32 %v55, %v416
    %v418 = vand.u32 %v417, 4294901760
    %v419 = vsub.f32 %v417, %v418
    %v420 = vand.u32 %v419, 4294901760
    %421 = vmatpush1.msra.mxu0 %v420
    %422 = vmatprep.subr.mxu0 0.0
    %v423 = vand.u32 %v56, 4294901760
    %v424 = vsub.f32 %v56, %v423
    %v425 = vand.u32 %v424, 4294901760
    %v426 = vsub.f32 %v424, %v425
    %v427 = vand.u32 %v426, 4294901760
    %428 = vmatpush1.msra.mxu0 %v427
    %429 = vmatprep.subr.mxu0 0.0
    %v430 = vand.u32 %v57, 4294901760
    %v431 = vsub.f32 %v57, %v430
    %v432 = vand.u32 %v431, 4294901760
    %v433 = vsub.f32 %v431, %v432
    %v434 = vand.u32 %v433, 4294901760
    %435 = vmatpush1.msra.mxu0 %v434
    %436 = vmatprep.subr.mxu0 0.0
    %v437 = vand.u32 %v58, 4294901760
    %v438 = vsub.f32 %v58, %v437
    %v439 = vand.u32 %v438, 4294901760
    %v440 = vsub.f32 %v438, %v439
    %v441 = vand.u32 %v440, 4294901760
    %442 = vmatpush1.msra.mxu0 %v441
    %443 = vmatprep.subr.mxu0 0.0
    %v444 = vand.u32 %v59, 4294901760
    %v445 = vsub.f32 %v59, %v444
    %v446 = vand.u32 %v445, 4294901760
    %v447 = vsub.f32 %v445, %v446
    %v448 = vand.u32 %v447, 4294901760
    %449 = vmatpush1.msra.mxu0 %v448
    %v450 = vand.u32 %v101, 4294901760
    %451 = vmatprep.mubr.f32.mxu0 %v450
    %v452 = vand.u32 %v97, 4294901760
    %453 = vmatmul.mubr.f32.gmra.mrb[0].mxu0 %v452
    %v454 = vpop.f32.mrb[0].mxu0
    %v455 = vadd.f32 %v223, %v454
    %v456 = vpop.f32.mrb[0].mxu0
    %457 = vdwg.mxu0
    %458 = vmatprep.subr.mxu0 0.0
    %v459 = vand.u32 %v28, 4294901760
    %v460 = vsub.f32 %v28, %v459
    %461 = vmatpush1.msra.mxu0 %v460
    %462 = vmatprep.subr.mxu0 0.0
    %v463 = vand.u32 %v29, 4294901760
    %v464 = vsub.f32 %v29, %v463
    %465 = vmatpush1.msra.mxu0 %v464
    %466 = vmatprep.subr.mxu0 0.0
    %v467 = vand.u32 %v30, 4294901760
    %v468 = vsub.f32 %v30, %v467
    %469 = vmatpush1.msra.mxu0 %v468
    %470 = vmatprep.subr.mxu0 0.0
    %v471 = vand.u32 %v31, 4294901760
    %v472 = vsub.f32 %v31, %v471
    %473 = vmatpush1.msra.mxu0 %v472
    %474 = vmatprep.subr.mxu0 0.0
    %v475 = vand.u32 %v32, 4294901760
    %v476 = vsub.f32 %v32, %v475
    %477 = vmatpush1.msra.mxu0 %v476
    %478 = vmatprep.subr.mxu0 0.0
    %v479 = vand.u32 %v33, 4294901760
    %v480 = vsub.f32 %v33, %v479
    %481 = vmatpush1.msra.mxu0 %v480
    %482 = vmatprep.subr.mxu0 0.0
    %v483 = vand.u32 %v34, 4294901760
    %v484 = vsub.f32 %v34, %v483
    %485 = vmatpush1.msra.mxu0 %v484
    %486 = vmatprep.subr.mxu0 0.0
    %v487 = vand.u32 %v35, 4294901760
    %v488 = vsub.f32 %v35, %v487
    %489 = vmatpush1.msra.mxu0 %v488
    %490 = vmatprep.subr.mxu0 0.0
    %v491 = vand.u32 %v36, 4294901760
    %v492 = vsub.f32 %v36, %v491
    %493 = vmatpush1.msra.mxu0 %v492
    %494 = vmatprep.subr.mxu0 0.0
    %v495 = vand.u32 %v37, 4294901760
    %v496 = vsub.f32 %v37, %v495
    %497 = vmatpush1.msra.mxu0 %v496
    %498 = vmatprep.subr.mxu0 0.0
    %v499 = vand.u32 %v38, 4294901760
    %v500 = vsub.f32 %v38, %v499
    %501 = vmatpush1.msra.mxu0 %v500
    %502 = vmatprep.subr.mxu0 0.0
    %v503 = vand.u32 %v39, 4294901760
    %v504 = vsub.f32 %v39, %v503
    %505 = vmatpush1.msra.mxu0 %v504
    %506 = vmatprep.subr.mxu0 0.0
    %v507 = vand.u32 %v40, 4294901760
    %v508 = vsub.f32 %v40, %v507
    %509 = vmatpush1.msra.mxu0 %v508
    %510 = vmatprep.subr.mxu0 0.0
    %v511 = vand.u32 %v41, 4294901760
    %v512 = vsub.f32 %v41, %v511
    %513 = vmatpush1.msra.mxu0 %v512
    %514 = vmatprep.subr.mxu0 0.0
    %v515 = vand.u32 %v42, 4294901760
    %v516 = vsub.f32 %v42, %v515
    %517 = vmatpush1.msra.mxu0 %v516
    %518 = vmatprep.subr.mxu0 0.0
    %v519 = vand.u32 %v43, 4294901760
    %v520 = vsub.f32 %v43, %v519
    %521 = vmatpush1.msra.mxu0 %v520
    %522 = vmatprep.subr.mxu0 0.0
    %v523 = vand.u32 %v44, 4294901760
    %v524 = vsub.f32 %v44, %v523
    %525 = vmatpush1.msra.mxu0 %v524
    %526 = vmatprep.subr.mxu0 0.0
    %v527 = vand.u32 %v45, 4294901760
    %v528 = vsub.f32 %v45, %v527
    %529 = vmatpush1.msra.mxu0 %v528
    %530 = vmatprep.subr.mxu0 0.0
    %v531 = vand.u32 %v46, 4294901760
    %v532 = vsub.f32 %v46, %v531
    %533 = vmatpush1.msra.mxu0 %v532
    %534 = vmatprep.subr.mxu0 0.0
    %v535 = vand.u32 %v47, 4294901760
    %v536 = vsub.f32 %v47, %v535
    %537 = vmatpush1.msra.mxu0 %v536
    %538 = vmatprep.subr.mxu0 0.0
    %v539 = vand.u32 %v48, 4294901760
    %v540 = vsub.f32 %v48, %v539
    %541 = vmatpush1.msra.mxu0 %v540
    %542 = vmatprep.subr.mxu0 0.0
    %v543 = vand.u32 %v49, 4294901760
    %v544 = vsub.f32 %v49, %v543
    %545 = vmatpush1.msra.mxu0 %v544
    %546 = vmatprep.subr.mxu0 0.0
    %v547 = vand.u32 %v50, 4294901760
    %v548 = vsub.f32 %v50, %v547
    %549 = vmatpush1.msra.mxu0 %v548
    %550 = vmatprep.subr.mxu0 0.0
    %v551 = vand.u32 %v51, 4294901760
    %v552 = vsub.f32 %v51, %v551
    %553 = vmatpush1.msra.mxu0 %v552
    %554 = vmatprep.subr.mxu0 0.0
    %v555 = vand.u32 %v52, 4294901760
    %v556 = vsub.f32 %v52, %v555
    %557 = vmatpush1.msra.mxu0 %v556
    %558 = vmatprep.subr.mxu0 0.0
    %v559 = vand.u32 %v53, 4294901760
    %v560 = vsub.f32 %v53, %v559
    %561 = vmatpush1.msra.mxu0 %v560
    %562 = vmatprep.subr.mxu0 0.0
    %v563 = vand.u32 %v54, 4294901760
    %v564 = vsub.f32 %v54, %v563
    %565 = vmatpush1.msra.mxu0 %v564
    %566 = vmatprep.subr.mxu0 0.0
    %v567 = vand.u32 %v55, 4294901760
    %v568 = vsub.f32 %v55, %v567
    %569 = vmatpush1.msra.mxu0 %v568
    %570 = vmatprep.subr.mxu0 0.0
    %v571 = vand.u32 %v56, 4294901760
    %v572 = vsub.f32 %v56, %v571
    %573 = vmatpush1.msra.mxu0 %v572
    %574 = vmatprep.subr.mxu0 0.0
    %v575 = vand.u32 %v57, 4294901760
    %v576 = vsub.f32 %v57, %v575
    %577 = vmatpush1.msra.mxu0 %v576
    %578 = vmatprep.subr.mxu0 0.0
    %v579 = vand.u32 %v58, 4294901760
    %v580 = vsub.f32 %v58, %v579
    %581 = vmatpush1.msra.mxu0 %v580
    %582 = vmatprep.subr.mxu0 0.0
    %v583 = vand.u32 %v59, 4294901760
    %v584 = vsub.f32 %v59, %v583
    %585 = vmatpush1.msra.mxu0 %v584
    %v586 = vand.u32 %v101, 4294901760
    %v587 = vsub.f32 %v101, %v586
    %588 = vmatprep.mubr.f32.mxu0 %v587
    %v589 = vand.u32 %v97, 4294901760
    %v590 = vsub.f32 %v97, %v589
    %591 = vmatmul.mubr.f32.gmra.mrb[0].mxu0 %v590
    %v592 = vpop.f32.mrb[0].mxu0
    %v593 = vadd.f32 %v455, %v592
    %v594 = vpop.f32.mrb[0].mxu0
    %595 = vdwg.mxu0
    %596 = vmatprep.subr.mxu0 0.0
    %v597 = vand.u32 %v28, 4294901760
    %598 = vmatpush1.msra.mxu0 %v597
    %599 = vmatprep.subr.mxu0 0.0
    %v600 = vand.u32 %v29, 4294901760
    %601 = vmatpush1.msra.mxu0 %v600
    %602 = vmatprep.subr.mxu0 0.0
    %v603 = vand.u32 %v30, 4294901760
    %604 = vmatpush1.msra.mxu0 %v603
    %605 = vmatprep.subr.mxu0 0.0
    %v606 = vand.u32 %v31, 4294901760
    %607 = vmatpush1.msra.mxu0 %v606
    %608 = vmatprep.subr.mxu0 0.0
    %v609 = vand.u32 %v32, 4294901760
    %610 = vmatpush1.msra.mxu0 %v609
    %611 = vmatprep.subr.mxu0 0.0
    %v612 = vand.u32 %v33, 4294901760
    %613 = vmatpush1.msra.mxu0 %v612
    %614 = vmatprep.subr.mxu0 0.0
    %v615 = vand.u32 %v34, 4294901760
    %616 = vmatpush1.msra.mxu0 %v615
    %617 = vmatprep.subr.mxu0 0.0
    %v618 = vand.u32 %v35, 4294901760
    %619 = vmatpush1.msra.mxu0 %v618
    %620 = vmatprep.subr.mxu0 0.0
    %v621 = vand.u32 %v36, 4294901760
    %622 = vmatpush1.msra.mxu0 %v621
    %623 = vmatprep.subr.mxu0 0.0
    %v624 = vand.u32 %v37, 4294901760
    %625 = vmatpush1.msra.mxu0 %v624
    %626 = vmatprep.subr.mxu0 0.0
    %v627 = vand.u32 %v38, 4294901760
    %628 = vmatpush1.msra.mxu0 %v627
    %629 = vmatprep.subr.mxu0 0.0
    %v630 = vand.u32 %v39, 4294901760
    %631 = vmatpush1.msra.mxu0 %v630
    %632 = vmatprep.subr.mxu0 0.0
    %v633 = vand.u32 %v40, 4294901760
    %634 = vmatpush1.msra.mxu0 %v633
    %635 = vmatprep.subr.mxu0 0.0
    %v636 = vand.u32 %v41, 4294901760
    %637 = vmatpush1.msra.mxu0 %v636
    %638 = vmatprep.subr.mxu0 0.0
    %v639 = vand.u32 %v42, 4294901760
    %640 = vmatpush1.msra.mxu0 %v639
    %641 = vmatprep.subr.mxu0 0.0
    %v642 = vand.u32 %v43, 4294901760
    %643 = vmatpush1.msra.mxu0 %v642
    %644 = vmatprep.subr.mxu0 0.0
    %v645 = vand.u32 %v44, 4294901760
    %646 = vmatpush1.msra.mxu0 %v645
    %647 = vmatprep.subr.mxu0 0.0
    %v648 = vand.u32 %v45, 4294901760
    %649 = vmatpush1.msra.mxu0 %v648
    %650 = vmatprep.subr.mxu0 0.0
    %v651 = vand.u32 %v46, 4294901760
    %652 = vmatpush1.msra.mxu0 %v651
    %653 = vmatprep.subr.mxu0 0.0
    %v654 = vand.u32 %v47, 4294901760
    %655 = vmatpush1.msra.mxu0 %v654
    %656 = vmatprep.subr.mxu0 0.0
    %v657 = vand.u32 %v48, 4294901760
    %658 = vmatpush1.msra.mxu0 %v657
    %659 = vmatprep.subr.mxu0 0.0
    %v660 = vand.u32 %v49, 4294901760
    %661 = vmatpush1.msra.mxu0 %v660
    %662 = vmatprep.subr.mxu0 0.0
    %v663 = vand.u32 %v50, 4294901760
    %664 = vmatpush1.msra.mxu0 %v663
    %665 = vmatprep.subr.mxu0 0.0
    %v666 = vand.u32 %v51, 4294901760
    %667 = vmatpush1.msra.mxu0 %v666
    %668 = vmatprep.subr.mxu0 0.0
    %v669 = vand.u32 %v52, 4294901760
    %670 = vmatpush1.msra.mxu0 %v669
    %671 = vmatprep.subr.mxu0 0.0
    %v672 = vand.u32 %v53, 4294901760
    %673 = vmatpush1.msra.mxu0 %v672
    %674 = vmatprep.subr.mxu0 0.0
    %v675 = vand.u32 %v54, 4294901760
    %676 = vmatpush1.msra.mxu0 %v675
    %677 = vmatprep.subr.mxu0 0.0
    %v678 = vand.u32 %v55, 4294901760
    %679 = vmatpush1.msra.mxu0 %v678
    %680 = vmatprep.subr.mxu0 0.0
    %v681 = vand.u32 %v56, 4294901760
    %682 = vmatpush1.msra.mxu0 %v681
    %683 = vmatprep.subr.mxu0 0.0
    %v684 = vand.u32 %v57, 4294901760
    %685 = vmatpush1.msra.mxu0 %v684
    %686 = vmatprep.subr.mxu0 0.0
    %v687 = vand.u32 %v58, 4294901760
    %688 = vmatpush1.msra.mxu0 %v687
    %689 = vmatprep.subr.mxu0 0.0
    %v690 = vand.u32 %v59, 4294901760
    %691 = vmatpush1.msra.mxu0 %v690
    %v692 = vand.u32 %v101, 4294901760
    %v693 = vsub.f32 %v101, %v692
    %v694 = vand.u32 %v693, 4294901760
    %695 = vmatprep.mubr.f32.mxu0 %v694
    %v696 = vand.u32 %v97, 4294901760
    %v697 = vsub.f32 %v97, %v696
    %v698 = vand.u32 %v697, 4294901760
    %699 = vmatmul.mubr.f32.gmra.mrb[0].mxu0 %v698
    %v700 = vpop.f32.mrb[0].mxu0
    %v701 = vadd.f32 %v593, %v700
    %v702 = vpop.f32.mrb[0].mxu0
    %703 = vdwg.mxu0
    %704 = vmatprep.subr.mxu0 0.0
    %v705 = vand.u32 %v28, 4294901760
    %v706 = vsub.f32 %v28, %v705
    %v707 = vand.u32 %v706, 4294901760
    %708 = vmatpush1.msra.mxu0 %v707
    %709 = vmatprep.subr.mxu0 0.0
    %v710 = vand.u32 %v29, 4294901760
    %v711 = vsub.f32 %v29, %v710
    %v712 = vand.u32 %v711, 4294901760
    %713 = vmatpush1.msra.mxu0 %v712
    %714 = vmatprep.subr.mxu0 0.0
    %v715 = vand.u32 %v30, 4294901760
    %v716 = vsub.f32 %v30, %v715
    %v717 = vand.u32 %v716, 4294901760
    %718 = vmatpush1.msra.mxu0 %v717
    %719 = vmatprep.subr.mxu0 0.0
    %v720 = vand.u32 %v31, 4294901760
    %v721 = vsub.f32 %v31, %v720
    %v722 = vand.u32 %v721, 4294901760
    %723 = vmatpush1.msra.mxu0 %v722
    %724 = vmatprep.subr.mxu0 0.0
    %v725 = vand.u32 %v32, 4294901760
    %v726 = vsub.f32 %v32, %v725
    %v727 = vand.u32 %v726, 4294901760
    %728 = vmatpush1.msra.mxu0 %v727
    %729 = vmatprep.subr.mxu0 0.0
    %v730 = vand.u32 %v33, 4294901760
    %v731 = vsub.f32 %v33, %v730
    %v732 = vand.u32 %v731, 4294901760
    %733 = vmatpush1.msra.mxu0 %v732
    %734 = vmatprep.subr.mxu0 0.0
    %v735 = vand.u32 %v34, 4294901760
    %v736 = vsub.f32 %v34, %v735
    %v737 = vand.u32 %v736, 4294901760
    %738 = vmatpush1.msra.mxu0 %v737
    %739 = vmatprep.subr.mxu0 0.0
    %v740 = vand.u32 %v35, 4294901760
    %v741 = vsub.f32 %v35, %v740
    %v742 = vand.u32 %v741, 4294901760
    %743 = vmatpush1.msra.mxu0 %v742
    %744 = vmatprep.subr.mxu0 0.0
    %v745 = vand.u32 %v36, 4294901760
    %v746 = vsub.f32 %v36, %v745
    %v747 = vand.u32 %v746, 4294901760
    %748 = vmatpush1.msra.mxu0 %v747
    %749 = vmatprep.subr.mxu0 0.0
    %v750 = vand.u32 %v37, 4294901760
    %v751 = vsub.f32 %v37, %v750
    %v752 = vand.u32 %v751, 4294901760
    %753 = vmatpush1.msra.mxu0 %v752
    %754 = vmatprep.subr.mxu0 0.0
    %v755 = vand.u32 %v38, 4294901760
    %v756 = vsub.f32 %v38, %v755
    %v757 = vand.u32 %v756, 4294901760
    %758 = vmatpush1.msra.mxu0 %v757
    %759 = vmatprep.subr.mxu0 0.0
    %v760 = vand.u32 %v39, 4294901760
    %v761 = vsub.f32 %v39, %v760
    %v762 = vand.u32 %v761, 4294901760
    %763 = vmatpush1.msra.mxu0 %v762
    %764 = vmatprep.subr.mxu0 0.0
    %v765 = vand.u32 %v40, 4294901760
    %v766 = vsub.f32 %v40, %v765
    %v767 = vand.u32 %v766, 4294901760
    %768 = vmatpush1.msra.mxu0 %v767
    %769 = vmatprep.subr.mxu0 0.0
    %v770 = vand.u32 %v41, 4294901760
    %v771 = vsub.f32 %v41, %v770
    %v772 = vand.u32 %v771, 4294901760
    %773 = vmatpush1.msra.mxu0 %v772
    %774 = vmatprep.subr.mxu0 0.0
    %v775 = vand.u32 %v42, 4294901760
    %v776 = vsub.f32 %v42, %v775
    %v777 = vand.u32 %v776, 4294901760
    %778 = vmatpush1.msra.mxu0 %v777
    %779 = vmatprep.subr.mxu0 0.0
    %v780 = vand.u32 %v43, 4294901760
    %v781 = vsub.f32 %v43, %v780
    %v782 = vand.u32 %v781, 4294901760
    %783 = vmatpush1.msra.mxu0 %v782
    %784 = vmatprep.subr.mxu0 0.0
    %v785 = vand.u32 %v44, 4294901760
    %v786 = vsub.f32 %v44, %v785
    %v787 = vand.u32 %v786, 4294901760
    %788 = vmatpush1.msra.mxu0 %v787
    %789 = vmatprep.subr.mxu0 0.0
    %v790 = vand.u32 %v45, 4294901760
    %v791 = vsub.f32 %v45, %v790
    %v792 = vand.u32 %v791, 4294901760
    %793 = vmatpush1.msra.mxu0 %v792
    %794 = vmatprep.subr.mxu0 0.0
    %v795 = vand.u32 %v46, 4294901760
    %v796 = vsub.f32 %v46, %v795
    %v797 = vand.u32 %v796, 4294901760
    %798 = vmatpush1.msra.mxu0 %v797
    %799 = vmatprep.subr.mxu0 0.0
    %v800 = vand.u32 %v47, 4294901760
    %v801 = vsub.f32 %v47, %v800
    %v802 = vand.u32 %v801, 4294901760
    %803 = vmatpush1.msra.mxu0 %v802
    %804 = vmatprep.subr.mxu0 0.0
    %v805 = vand.u32 %v48, 4294901760
    %v806 = vsub.f32 %v48, %v805
    %v807 = vand.u32 %v806, 4294901760
    %808 = vmatpush1.msra.mxu0 %v807
    %809 = vmatprep.subr.mxu0 0.0
    %v810 = vand.u32 %v49, 4294901760
    %v811 = vsub.f32 %v49, %v810
    %v812 = vand.u32 %v811, 4294901760
    %813 = vmatpush1.msra.mxu0 %v812
    %814 = vmatprep.subr.mxu0 0.0
    %v815 = vand.u32 %v50, 4294901760
    %v816 = vsub.f32 %v50, %v815
    %v817 = vand.u32 %v816, 4294901760
    %818 = vmatpush1.msra.mxu0 %v817
    %819 = vmatprep.subr.mxu0 0.0
    %v820 = vand.u32 %v51, 4294901760
    %v821 = vsub.f32 %v51, %v820
    %v822 = vand.u32 %v821, 4294901760
    %823 = vmatpush1.msra.mxu0 %v822
    %824 = vmatprep.subr.mxu0 0.0
    %v825 = vand.u32 %v52, 4294901760
    %v826 = vsub.f32 %v52, %v825
    %v827 = vand.u32 %v826, 4294901760
    %828 = vmatpush1.msra.mxu0 %v827
    %829 = vmatprep.subr.mxu0 0.0
    %v830 = vand.u32 %v53, 4294901760
    %v831 = vsub.f32 %v53, %v830
    %v832 = vand.u32 %v831, 4294901760
    %833 = vmatpush1.msra.mxu0 %v832
    %834 = vmatprep.subr.mxu0 0.0
    %v835 = vand.u32 %v54, 4294901760
    %v836 = vsub.f32 %v54, %v835
    %v837 = vand.u32 %v836, 4294901760
    %838 = vmatpush1.msra.mxu0 %v837
    %839 = vmatprep.subr.mxu0 0.0
    %v840 = vand.u32 %v55, 4294901760
    %v841 = vsub.f32 %v55, %v840
    %v842 = vand.u32 %v841, 4294901760
    %843 = vmatpush1.msra.mxu0 %v842
    %844 = vmatprep.subr.mxu0 0.0
    %v845 = vand.u32 %v56, 4294901760
    %v846 = vsub.f32 %v56, %v845
    %v847 = vand.u32 %v846, 4294901760
    %848 = vmatpush1.msra.mxu0 %v847
    %849 = vmatprep.subr.mxu0 0.0
    %v850 = vand.u32 %v57, 4294901760
    %v851 = vsub.f32 %v57, %v850
    %v852 = vand.u32 %v851, 4294901760
    %853 = vmatpush1.msra.mxu0 %v852
    %854 = vmatprep.subr.mxu0 0.0
    %v855 = vand.u32 %v58, 4294901760
    %v856 = vsub.f32 %v58, %v855
    %v857 = vand.u32 %v856, 4294901760
    %858 = vmatpush1.msra.mxu0 %v857
    %859 = vmatprep.subr.mxu0 0.0
    %v860 = vand.u32 %v59, 4294901760
    %v861 = vsub.f32 %v59, %v860
    %v862 = vand.u32 %v861, 4294901760
    %863 = vmatpush1.msra.mxu0 %v862
    %v864 = vand.u32 %v101, 4294901760
    %865 = vmatprep.mubr.f32.mxu0 %v864
    %v866 = vand.u32 %v97, 4294901760
    %867 = vmatmul.mubr.f32.gmra.mrb[0].mxu0 %v866
    %v868 = vpop.f32.mrb[0].mxu0
    %v869 = vadd.f32 %v701, %v868
    %v870 = vpop.f32.mrb[0].mxu0
    %871 = vdwg.mxu0
    %872 = vmatprep.subr.mxu0 0.0
    %v873 = vand.u32 %v28, 4294901760
    %874 = vmatpush1.msra.mxu0 %v873
    %875 = vmatprep.subr.mxu0 0.0
    %v876 = vand.u32 %v29, 4294901760
    %877 = vmatpush1.msra.mxu0 %v876
    %878 = vmatprep.subr.mxu0 0.0
    %v879 = vand.u32 %v30, 4294901760
    %880 = vmatpush1.msra.mxu0 %v879
    %881 = vmatprep.subr.mxu0 0.0
    %v882 = vand.u32 %v31, 4294901760
    %883 = vmatpush1.msra.mxu0 %v882
    %884 = vmatprep.subr.mxu0 0.0
    %v885 = vand.u32 %v32, 4294901760
    %886 = vmatpush1.msra.mxu0 %v885
    %887 = vmatprep.subr.mxu0 0.0
    %v888 = vand.u32 %v33, 4294901760
    %889 = vmatpush1.msra.mxu0 %v888
    %890 = vmatprep.subr.mxu0 0.0
    %v891 = vand.u32 %v34, 4294901760
    %892 = vmatpush1.msra.mxu0 %v891
    %893 = vmatprep.subr.mxu0 0.0
    %v894 = vand.u32 %v35, 4294901760
    %895 = vmatpush1.msra.mxu0 %v894
    %896 = vmatprep.subr.mxu0 0.0
    %v897 = vand.u32 %v36, 4294901760
    %898 = vmatpush1.msra.mxu0 %v897
    %899 = vmatprep.subr.mxu0 0.0
    %v900 = vand.u32 %v37, 4294901760
    %901 = vmatpush1.msra.mxu0 %v900
    %902 = vmatprep.subr.mxu0 0.0
    %v903 = vand.u32 %v38, 4294901760
    %904 = vmatpush1.msra.mxu0 %v903
    %905 = vmatprep.subr.mxu0 0.0
    %v906 = vand.u32 %v39, 4294901760
    %907 = vmatpush1.msra.mxu0 %v906
    %908 = vmatprep.subr.mxu0 0.0
    %v909 = vand.u32 %v40, 4294901760
    %910 = vmatpush1.msra.mxu0 %v909
    %911 = vmatprep.subr.mxu0 0.0
    %v912 = vand.u32 %v41, 4294901760
    %913 = vmatpush1.msra.mxu0 %v912
    %914 = vmatprep.subr.mxu0 0.0
    %v915 = vand.u32 %v42, 4294901760
    %916 = vmatpush1.msra.mxu0 %v915
    %917 = vmatprep.subr.mxu0 0.0
    %v918 = vand.u32 %v43, 4294901760
    %919 = vmatpush1.msra.mxu0 %v918
    %920 = vmatprep.subr.mxu0 0.0
    %v921 = vand.u32 %v44, 4294901760
    %922 = vmatpush1.msra.mxu0 %v921
    %923 = vmatprep.subr.mxu0 0.0
    %v924 = vand.u32 %v45, 4294901760
    %925 = vmatpush1.msra.mxu0 %v924
    %926 = vmatprep.subr.mxu0 0.0
    %v927 = vand.u32 %v46, 4294901760
    %928 = vmatpush1.msra.mxu0 %v927
    %929 = vmatprep.subr.mxu0 0.0
    %v930 = vand.u32 %v47, 4294901760
    %931 = vmatpush1.msra.mxu0 %v930
    %932 = vmatprep.subr.mxu0 0.0
    %v933 = vand.u32 %v48, 4294901760
    %934 = vmatpush1.msra.mxu0 %v933
    %935 = vmatprep.subr.mxu0 0.0
    %v936 = vand.u32 %v49, 4294901760
    %937 = vmatpush1.msra.mxu0 %v936
    %938 = vmatprep.subr.mxu0 0.0
    %v939 = vand.u32 %v50, 4294901760
    %940 = vmatpush1.msra.mxu0 %v939
    %941 = vmatprep.subr.mxu0 0.0
    %v942 = vand.u32 %v51, 4294901760
    %943 = vmatpush1.msra.mxu0 %v942
    %944 = vmatprep.subr.mxu0 0.0
    %v945 = vand.u32 %v52, 4294901760
    %946 = vmatpush1.msra.mxu0 %v945
    %947 = vmatprep.subr.mxu0 0.0
    %v948 = vand.u32 %v53, 4294901760
    %949 = vmatpush1.msra.mxu0 %v948
    %950 = vmatprep.subr.mxu0 0.0
    %v951 = vand.u32 %v54, 4294901760
    %952 = vmatpush1.msra.mxu0 %v951
    %953 = vmatprep.subr.mxu0 0.0
    %v954 = vand.u32 %v55, 4294901760
    %955 = vmatpush1.msra.mxu0 %v954
    %956 = vmatprep.subr.mxu0 0.0
    %v957 = vand.u32 %v56, 4294901760
    %958 = vmatpush1.msra.mxu0 %v957
    %959 = vmatprep.subr.mxu0 0.0
    %v960 = vand.u32 %v57, 4294901760
    %961 = vmatpush1.msra.mxu0 %v960
    %962 = vmatprep.subr.mxu0 0.0
    %v963 = vand.u32 %v58, 4294901760
    %964 = vmatpush1.msra.mxu0 %v963
    %965 = vmatprep.subr.mxu0 0.0
    %v966 = vand.u32 %v59, 4294901760
    %967 = vmatpush1.msra.mxu0 %v966
    %v968 = vand.u32 %v101, 4294901760
    %969 = vmatprep.mubr.f32.mxu0 %v968
    %v970 = vand.u32 %v97, 4294901760
    %971 = vmatmul.mubr.f32.gmra.mrb[0].mxu0 %v970
    %v972 = vpop.f32.mrb[0].mxu0
    %v973 = vadd.f32 %v869, %v972
    %v974 = vpop.f32.mrb[0].mxu0
    %975 = vdwg.mxu0
    %976 = vmatprep.subr.mxu0 0.0
    %v977 = vand.u32 %v60, 4294901760
    %978 = vmatpush1.msra.mxu0 %v977
    %979 = vmatprep.subr.mxu0 0.0
    %v980 = vand.u32 %v61, 4294901760
    %981 = vmatpush1.msra.mxu0 %v980
    %982 = vmatprep.subr.mxu0 0.0
    %v983 = vand.u32 %v62, 4294901760
    %984 = vmatpush1.msra.mxu0 %v983
    %985 = vmatprep.subr.mxu0 0.0
    %v986 = vand.u32 %v63, 4294901760
    %987 = vmatpush1.msra.mxu0 %v986
    %988 = vmatprep.subr.mxu0 0.0
    %v989 = vand.u32 %v64, 4294901760
    %990 = vmatpush1.msra.mxu0 %v989
    %991 = vmatprep.subr.mxu0 0.0
    %v992 = vand.u32 %v65, 4294901760
    %993 = vmatpush1.msra.mxu0 %v992
    %994 = vmatprep.subr.mxu0 0.0
    %v995 = vand.u32 %v66, 4294901760
    %996 = vmatpush1.msra.mxu0 %v995
    %997 = vmatprep.subr.mxu0 0.0
    %v998 = vand.u32 %v67, 4294901760
    %999 = vmatpush1.msra.mxu0 %v998
    %1000 = vmatprep.subr.mxu0 0.0
    %v1001 = vand.u32 %v68, 4294901760
    %1002 = vmatpush1.msra.mxu0 %v1001
    %1003 = vmatprep.subr.mxu0 0.0
    %v1004 = vand.u32 %v69, 4294901760
    %1005 = vmatpush1.msra.mxu0 %v1004
    %1006 = vmatprep.subr.mxu0 0.0
    %v1007 = vand.u32 %v70, 4294901760
    %1008 = vmatpush1.msra.mxu0 %v1007
    %1009 = vmatprep.subr.mxu0 0.0
    %v1010 = vand.u32 %v71, 4294901760
    %1011 = vmatpush1.msra.mxu0 %v1010
    %1012 = vmatprep.subr.mxu0 0.0
    %v1013 = vand.u32 %v72, 4294901760
    %1014 = vmatpush1.msra.mxu0 %v1013
    %1015 = vmatprep.subr.mxu0 0.0
    %v1016 = vand.u32 %v73, 4294901760
    %1017 = vmatpush1.msra.mxu0 %v1016
    %1018 = vmatprep.subr.mxu0 0.0
    %v1019 = vand.u32 %v74, 4294901760
    %1020 = vmatpush1.msra.mxu0 %v1019
    %1021 = vmatprep.subr.mxu0 0.0
    %v1022 = vand.u32 %v75, 4294901760
    %1023 = vmatpush1.msra.mxu0 %v1022
    %1024 = vmatprep.subr.mxu0 0.0
    %v1025 = vand.u32 %v76, 4294901760
    %1026 = vmatpush1.msra.mxu0 %v1025
    %1027 = vmatprep.subr.mxu0 0.0
    %v1028 = vand.u32 %v77, 4294901760
    %1029 = vmatpush1.msra.mxu0 %v1028
    %1030 = vmatprep.subr.mxu0 0.0
    %v1031 = vand.u32 %v78, 4294901760
    %1032 = vmatpush1.msra.mxu0 %v1031
    %1033 = vmatprep.subr.mxu0 0.0
    %v1034 = vand.u32 %v79, 4294901760
    %1035 = vmatpush1.msra.mxu0 %v1034
    %1036 = vmatprep.subr.mxu0 0.0
    %v1037 = vand.u32 %v80, 4294901760
    %1038 = vmatpush1.msra.mxu0 %v1037
    %1039 = vmatprep.subr.mxu0 0.0
    %v1040 = vand.u32 %v81, 4294901760
    %1041 = vmatpush1.msra.mxu0 %v1040
    %1042 = vmatprep.subr.mxu0 0.0
    %v1043 = vand.u32 %v82, 4294901760
    %1044 = vmatpush1.msra.mxu0 %v1043
    %1045 = vmatprep.subr.mxu0 0.0
    %v1046 = vand.u32 %v83, 4294901760
    %1047 = vmatpush1.msra.mxu0 %v1046
    %1048 = vmatprep.subr.mxu0 0.0
    %v1049 = vand.u32 %v84, 4294901760
    %1050 = vmatpush1.msra.mxu0 %v1049
    %1051 = vmatprep.subr.mxu0 0.0
    %v1052 = vand.u32 %v85, 4294901760
    %1053 = vmatpush1.msra.mxu0 %v1052
    %1054 = vmatprep.subr.mxu0 0.0
    %v1055 = vand.u32 %v86, 4294901760
    %1056 = vmatpush1.msra.mxu0 %v1055
    %1057 = vmatprep.subr.mxu0 0.0
    %v1058 = vand.u32 %v87, 4294901760
    %1059 = vmatpush1.msra.mxu0 %v1058
    %1060 = vmatprep.subr.mxu0 0.0
    %v1061 = vand.u32 %v88, 4294901760
    %1062 = vmatpush1.msra.mxu0 %v1061
    %1063 = vmatprep.subr.mxu0 0.0
    %v1064 = vand.u32 %v89, 4294901760
    %1065 = vmatpush1.msra.mxu0 %v1064
    %1066 = vmatprep.subr.mxu0 0.0
    %v1067 = vand.u32 %v90, 4294901760
    %1068 = vmatpush1.msra.mxu0 %v1067
    %1069 = vmatprep.subr.mxu0 0.0
    %v1070 = vand.u32 %v91, 4294901760
    %1071 = vmatpush1.msra.mxu0 %v1070
    %v1072 = vand.u32 %v109, 4294901760
    %v1073 = vsub.f32 %v109, %v1072
    %v1074 = vand.u32 %v1073, 4294901760
    %v1075 = vsub.f32 %v1073, %v1074
    %v1076 = vand.u32 %v1075, 4294901760
    %1077 = vmatprep.mubr.f32.mxu0 %v1076
    %v1078 = vand.u32 %v105, 4294901760
    %v1079 = vsub.f32 %v105, %v1078
    %v1080 = vand.u32 %v1079, 4294901760
    %v1081 = vsub.f32 %v1079, %v1080
    %v1082 = vand.u32 %v1081, 4294901760
    %1083 = vmatmul.mubr.f32.gmra.mrb[0].mxu0 %v1082
    %v1084 = vpop.f32.mrb[0].mxu0
    %v1085 = vadd.f32 %v973, %v1084
    %v1086 = vpop.f32.mrb[0].mxu0
    %1087 = vdwg.mxu0
    %1088 = vmatprep.subr.mxu0 0.0
    %v1089 = vand.u32 %v60, 4294901760
    %v1090 = vsub.f32 %v60, %v1089
    %v1091 = vand.u32 %v1090, 4294901760
    %v1092 = vsub.f32 %v1090, %v1091
    %v1093 = vand.u32 %v1092, 4294901760
    %1094 = vmatpush1.msra.mxu0 %v1093
    %1095 = vmatprep.subr.mxu0 0.0
    %v1096 = vand.u32 %v61, 4294901760
    %v1097 = vsub.f32 %v61, %v1096
    %v1098 = vand.u32 %v1097, 4294901760
    %v1099 = vsub.f32 %v1097, %v1098
    %v1100 = vand.u32 %v1099, 4294901760
    %1101 = vmatpush1.msra.mxu0 %v1100
    %1102 = vmatprep.subr.mxu0 0.0
    %v1103 = vand.u32 %v62, 4294901760
    %v1104 = vsub.f32 %v62, %v1103
    %v1105 = vand.u32 %v1104, 4294901760
    %v1106 = vsub.f32 %v1104, %v1105
    %v1107 = vand.u32 %v1106, 4294901760
    %1108 = vmatpush1.msra.mxu0 %v1107
    %1109 = vmatprep.subr.mxu0 0.0
    %v1110 = vand.u32 %v63, 4294901760
    %v1111 = vsub.f32 %v63, %v1110
    %v1112 = vand.u32 %v1111, 4294901760
    %v1113 = vsub.f32 %v1111, %v1112
    %v1114 = vand.u32 %v1113, 4294901760
    %1115 = vmatpush1.msra.mxu0 %v1114
    %1116 = vmatprep.subr.mxu0 0.0
    %v1117 = vand.u32 %v64, 4294901760
    %v1118 = vsub.f32 %v64, %v1117
    %v1119 = vand.u32 %v1118, 4294901760
    %v1120 = vsub.f32 %v1118, %v1119
    %v1121 = vand.u32 %v1120, 4294901760
    %1122 = vmatpush1.msra.mxu0 %v1121
    %1123 = vmatprep.subr.mxu0 0.0
    %v1124 = vand.u32 %v65, 4294901760
    %v1125 = vsub.f32 %v65, %v1124
    %v1126 = vand.u32 %v1125, 4294901760
    %v1127 = vsub.f32 %v1125, %v1126
    %v1128 = vand.u32 %v1127, 4294901760
    %1129 = vmatpush1.msra.mxu0 %v1128
    %1130 = vmatprep.subr.mxu0 0.0
    %v1131 = vand.u32 %v66, 4294901760
    %v1132 = vsub.f32 %v66, %v1131
    %v1133 = vand.u32 %v1132, 4294901760
    %v1134 = vsub.f32 %v1132, %v1133
    %v1135 = vand.u32 %v1134, 4294901760
    %1136 = vmatpush1.msra.mxu0 %v1135
    %1137 = vmatprep.subr.mxu0 0.0
    %v1138 = vand.u32 %v67, 4294901760
    %v1139 = vsub.f32 %v67, %v1138
    %v1140 = vand.u32 %v1139, 4294901760
    %v1141 = vsub.f32 %v1139, %v1140
    %v1142 = vand.u32 %v1141, 4294901760
    %1143 = vmatpush1.msra.mxu0 %v1142
    %1144 = vmatprep.subr.mxu0 0.0
    %v1145 = vand.u32 %v68, 4294901760
    %v1146 = vsub.f32 %v68, %v1145
    %v1147 = vand.u32 %v1146, 4294901760
    %v1148 = vsub.f32 %v1146, %v1147
    %v1149 = vand.u32 %v1148, 4294901760
    %1150 = vmatpush1.msra.mxu0 %v1149
    %1151 = vmatprep.subr.mxu0 0.0
    %v1152 = vand.u32 %v69, 4294901760
    %v1153 = vsub.f32 %v69, %v1152
    %v1154 = vand.u32 %v1153, 4294901760
    %v1155 = vsub.f32 %v1153, %v1154
    %v1156 = vand.u32 %v1155, 4294901760
    %1157 = vmatpush1.msra.mxu0 %v1156
    %1158 = vmatprep.subr.mxu0 0.0
    %v1159 = vand.u32 %v70, 4294901760
    %v1160 = vsub.f32 %v70, %v1159
    %v1161 = vand.u32 %v1160, 4294901760
    %v1162 = vsub.f32 %v1160, %v1161
    %v1163 = vand.u32 %v1162, 4294901760
    %1164 = vmatpush1.msra.mxu0 %v1163
    %1165 = vmatprep.subr.mxu0 0.0
    %v1166 = vand.u32 %v71, 4294901760
    %v1167 = vsub.f32 %v71, %v1166
    %v1168 = vand.u32 %v1167, 4294901760
    %v1169 = vsub.f32 %v1167, %v1168
    %v1170 = vand.u32 %v1169, 4294901760
    %1171 = vmatpush1.msra.mxu0 %v1170
    %1172 = vmatprep.subr.mxu0 0.0
    %v1173 = vand.u32 %v72, 4294901760
    %v1174 = vsub.f32 %v72, %v1173
    %v1175 = vand.u32 %v1174, 4294901760
    %v1176 = vsub.f32 %v1174, %v1175
    %v1177 = vand.u32 %v1176, 4294901760
    %1178 = vmatpush1.msra.mxu0 %v1177
    %1179 = vmatprep.subr.mxu0 0.0
    %v1180 = vand.u32 %v73, 4294901760
    %v1181 = vsub.f32 %v73, %v1180
    %v1182 = vand.u32 %v1181, 4294901760
    %v1183 = vsub.f32 %v1181, %v1182
    %v1184 = vand.u32 %v1183, 4294901760
    %1185 = vmatpush1.msra.mxu0 %v1184
    %1186 = vmatprep.subr.mxu0 0.0
    %v1187 = vand.u32 %v74, 4294901760
    %v1188 = vsub.f32 %v74, %v1187
    %v1189 = vand.u32 %v1188, 4294901760
    %v1190 = vsub.f32 %v1188, %v1189
    %v1191 = vand.u32 %v1190, 4294901760
    %1192 = vmatpush1.msra.mxu0 %v1191
    %1193 = vmatprep.subr.mxu0 0.0
    %v1194 = vand.u32 %v75, 4294901760
    %v1195 = vsub.f32 %v75, %v1194
    %v1196 = vand.u32 %v1195, 4294901760
    %v1197 = vsub.f32 %v1195, %v1196
    %v1198 = vand.u32 %v1197, 4294901760
    %1199 = vmatpush1.msra.mxu0 %v1198
    %1200 = vmatprep.subr.mxu0 0.0
    %v1201 = vand.u32 %v76, 4294901760
    %v1202 = vsub.f32 %v76, %v1201
    %v1203 = vand.u32 %v1202, 4294901760
    %v1204 = vsub.f32 %v1202, %v1203
    %v1205 = vand.u32 %v1204, 4294901760
    %1206 = vmatpush1.msra.mxu0 %v1205
    %1207 = vmatprep.subr.mxu0 0.0
    %v1208 = vand.u32 %v77, 4294901760
    %v1209 = vsub.f32 %v77, %v1208
    %v1210 = vand.u32 %v1209, 4294901760
    %v1211 = vsub.f32 %v1209, %v1210
    %v1212 = vand.u32 %v1211, 4294901760
    %1213 = vmatpush1.msra.mxu0 %v1212
    %1214 = vmatprep.subr.mxu0 0.0
    %v1215 = vand.u32 %v78, 4294901760
    %v1216 = vsub.f32 %v78, %v1215
    %v1217 = vand.u32 %v1216, 4294901760
    %v1218 = vsub.f32 %v1216, %v1217
    %v1219 = vand.u32 %v1218, 4294901760
    %1220 = vmatpush1.msra.mxu0 %v1219
    %1221 = vmatprep.subr.mxu0 0.0
    %v1222 = vand.u32 %v79, 4294901760
    %v1223 = vsub.f32 %v79, %v1222
    %v1224 = vand.u32 %v1223, 4294901760
    %v1225 = vsub.f32 %v1223, %v1224
    %v1226 = vand.u32 %v1225, 4294901760
    %1227 = vmatpush1.msra.mxu0 %v1226
    %1228 = vmatprep.subr.mxu0 0.0
    %v1229 = vand.u32 %v80, 4294901760
    %v1230 = vsub.f32 %v80, %v1229
    %v1231 = vand.u32 %v1230, 4294901760
    %v1232 = vsub.f32 %v1230, %v1231
    %v1233 = vand.u32 %v1232, 4294901760
    %1234 = vmatpush1.msra.mxu0 %v1233
    %1235 = vmatprep.subr.mxu0 0.0
    %v1236 = vand.u32 %v81, 4294901760
    %v1237 = vsub.f32 %v81, %v1236
    %v1238 = vand.u32 %v1237, 4294901760
    %v1239 = vsub.f32 %v1237, %v1238
    %v1240 = vand.u32 %v1239, 4294901760
    %1241 = vmatpush1.msra.mxu0 %v1240
    %1242 = vmatprep.subr.mxu0 0.0
    %v1243 = vand.u32 %v82, 4294901760
    %v1244 = vsub.f32 %v82, %v1243
    %v1245 = vand.u32 %v1244, 4294901760
    %v1246 = vsub.f32 %v1244, %v1245
    %v1247 = vand.u32 %v1246, 4294901760
    %1248 = vmatpush1.msra.mxu0 %v1247
    %1249 = vmatprep.subr.mxu0 0.0
    %v1250 = vand.u32 %v83, 4294901760
    %v1251 = vsub.f32 %v83, %v1250
    %v1252 = vand.u32 %v1251, 4294901760
    %v1253 = vsub.f32 %v1251, %v1252
    %v1254 = vand.u32 %v1253, 4294901760
    %1255 = vmatpush1.msra.mxu0 %v1254
    %1256 = vmatprep.subr.mxu0 0.0
    %v1257 = vand.u32 %v84, 4294901760
    %v1258 = vsub.f32 %v84, %v1257
    %v1259 = vand.u32 %v1258, 4294901760
    %v1260 = vsub.f32 %v1258, %v1259
    %v1261 = vand.u32 %v1260, 4294901760
    %1262 = vmatpush1.msra.mxu0 %v1261
    %1263 = vmatprep.subr.mxu0 0.0
    %v1264 = vand.u32 %v85, 4294901760
    %v1265 = vsub.f32 %v85, %v1264
    %v1266 = vand.u32 %v1265, 4294901760
    %v1267 = vsub.f32 %v1265, %v1266
    %v1268 = vand.u32 %v1267, 4294901760
    %1269 = vmatpush1.msra.mxu0 %v1268
    %1270 = vmatprep.subr.mxu0 0.0
    %v1271 = vand.u32 %v86, 4294901760
    %v1272 = vsub.f32 %v86, %v1271
    %v1273 = vand.u32 %v1272, 4294901760
    %v1274 = vsub.f32 %v1272, %v1273
    %v1275 = vand.u32 %v1274, 4294901760
    %1276 = vmatpush1.msra.mxu0 %v1275
    %1277 = vmatprep.subr.mxu0 0.0
    %v1278 = vand.u32 %v87, 4294901760
    %v1279 = vsub.f32 %v87, %v1278
    %v1280 = vand.u32 %v1279, 4294901760
    %v1281 = vsub.f32 %v1279, %v1280
    %v1282 = vand.u32 %v1281, 4294901760
    %1283 = vmatpush1.msra.mxu0 %v1282
    %1284 = vmatprep.subr.mxu0 0.0
    %v1285 = vand.u32 %v88, 4294901760
    %v1286 = vsub.f32 %v88, %v1285
    %v1287 = vand.u32 %v1286, 4294901760
    %v1288 = vsub.f32 %v1286, %v1287
    %v1289 = vand.u32 %v1288, 4294901760
    %1290 = vmatpush1.msra.mxu0 %v1289
    %1291 = vmatprep.subr.mxu0 0.0
    %v1292 = vand.u32 %v89, 4294901760
    %v1293 = vsub.f32 %v89, %v1292
    %v1294 = vand.u32 %v1293, 4294901760
    %v1295 = vsub.f32 %v1293, %v1294
    %v1296 = vand.u32 %v1295, 4294901760
    %1297 = vmatpush1.msra.mxu0 %v1296
    %1298 = vmatprep.subr.mxu0 0.0
    %v1299 = vand.u32 %v90, 4294901760
    %v1300 = vsub.f32 %v90, %v1299
    %v1301 = vand.u32 %v1300, 4294901760
    %v1302 = vsub.f32 %v1300, %v1301
    %v1303 = vand.u32 %v1302, 4294901760
    %1304 = vmatpush1.msra.mxu0 %v1303
    %1305 = vmatprep.subr.mxu0 0.0
    %v1306 = vand.u32 %v91, 4294901760
    %v1307 = vsub.f32 %v91, %v1306
    %v1308 = vand.u32 %v1307, 4294901760
    %v1309 = vsub.f32 %v1307, %v1308
    %v1310 = vand.u32 %v1309, 4294901760
    %1311 = vmatpush1.msra.mxu0 %v1310
    %v1312 = vand.u32 %v109, 4294901760
    %1313 = vmatprep.mubr.f32.mxu0 %v1312
    %v1314 = vand.u32 %v105, 4294901760
    %1315 = vmatmul.mubr.f32.gmra.mrb[0].mxu0 %v1314
    %v1316 = vpop.f32.mrb[0].mxu0
    %v1317 = vadd.f32 %v1085, %v1316
    %v1318 = vpop.f32.mrb[0].mxu0
    %1319 = vdwg.mxu0
    %1320 = vmatprep.subr.mxu0 0.0
    %v1321 = vand.u32 %v60, 4294901760
    %v1322 = vsub.f32 %v60, %v1321
    %1323 = vmatpush1.msra.mxu0 %v1322
    %1324 = vmatprep.subr.mxu0 0.0
    %v1325 = vand.u32 %v61, 4294901760
    %v1326 = vsub.f32 %v61, %v1325
    %1327 = vmatpush1.msra.mxu0 %v1326
    %1328 = vmatprep.subr.mxu0 0.0
    %v1329 = vand.u32 %v62, 4294901760
    %v1330 = vsub.f32 %v62, %v1329
    %1331 = vmatpush1.msra.mxu0 %v1330
    %1332 = vmatprep.subr.mxu0 0.0
    %v1333 = vand.u32 %v63, 4294901760
    %v1334 = vsub.f32 %v63, %v1333
    %1335 = vmatpush1.msra.mxu0 %v1334
    %1336 = vmatprep.subr.mxu0 0.0
    %v1337 = vand.u32 %v64, 4294901760
    %v1338 = vsub.f32 %v64, %v1337
    %1339 = vmatpush1.msra.mxu0 %v1338
    %1340 = vmatprep.subr.mxu0 0.0
    %v1341 = vand.u32 %v65, 4294901760
    %v1342 = vsub.f32 %v65, %v1341
    %1343 = vmatpush1.msra.mxu0 %v1342
    %1344 = vmatprep.subr.mxu0 0.0
    %v1345 = vand.u32 %v66, 4294901760
    %v1346 = vsub.f32 %v66, %v1345
    %1347 = vmatpush1.msra.mxu0 %v1346
    %1348 = vmatprep.subr.mxu0 0.0
    %v1349 = vand.u32 %v67, 4294901760
    %v1350 = vsub.f32 %v67, %v1349
    %1351 = vmatpush1.msra.mxu0 %v1350
    %1352 = vmatprep.subr.mxu0 0.0
    %v1353 = vand.u32 %v68, 4294901760
    %v1354 = vsub.f32 %v68, %v1353
    %1355 = vmatpush1.msra.mxu0 %v1354
    %1356 = vmatprep.subr.mxu0 0.0
    %v1357 = vand.u32 %v69, 4294901760
    %v1358 = vsub.f32 %v69, %v1357
    %1359 = vmatpush1.msra.mxu0 %v1358
    %1360 = vmatprep.subr.mxu0 0.0
    %v1361 = vand.u32 %v70, 4294901760
    %v1362 = vsub.f32 %v70, %v1361
    %1363 = vmatpush1.msra.mxu0 %v1362
    %1364 = vmatprep.subr.mxu0 0.0
    %v1365 = vand.u32 %v71, 4294901760
    %v1366 = vsub.f32 %v71, %v1365
    %1367 = vmatpush1.msra.mxu0 %v1366
    %1368 = vmatprep.subr.mxu0 0.0
    %v1369 = vand.u32 %v72, 4294901760
    %v1370 = vsub.f32 %v72, %v1369
    %1371 = vmatpush1.msra.mxu0 %v1370
    %1372 = vmatprep.subr.mxu0 0.0
    %v1373 = vand.u32 %v73, 4294901760
    %v1374 = vsub.f32 %v73, %v1373
    %1375 = vmatpush1.msra.mxu0 %v1374
    %1376 = vmatprep.subr.mxu0 0.0
    %v1377 = vand.u32 %v74, 4294901760
    %v1378 = vsub.f32 %v74, %v1377
    %1379 = vmatpush1.msra.mxu0 %v1378
    %1380 = vmatprep.subr.mxu0 0.0
    %v1381 = vand.u32 %v75, 4294901760
    %v1382 = vsub.f32 %v75, %v1381
    %1383 = vmatpush1.msra.mxu0 %v1382
    %1384 = vmatprep.subr.mxu0 0.0
    %v1385 = vand.u32 %v76, 4294901760
    %v1386 = vsub.f32 %v76, %v1385
    %1387 = vmatpush1.msra.mxu0 %v1386
    %1388 = vmatprep.subr.mxu0 0.0
    %v1389 = vand.u32 %v77, 4294901760
    %v1390 = vsub.f32 %v77, %v1389
    %1391 = vmatpush1.msra.mxu0 %v1390
    %1392 = vmatprep.subr.mxu0 0.0
    %v1393 = vand.u32 %v78, 4294901760
    %v1394 = vsub.f32 %v78, %v1393
    %1395 = vmatpush1.msra.mxu0 %v1394
    %1396 = vmatprep.subr.mxu0 0.0
    %v1397 = vand.u32 %v79, 4294901760
    %v1398 = vsub.f32 %v79, %v1397
    %1399 = vmatpush1.msra.mxu0 %v1398
    %1400 = vmatprep.subr.mxu0 0.0
    %v1401 = vand.u32 %v80, 4294901760
    %v1402 = vsub.f32 %v80, %v1401
    %1403 = vmatpush1.msra.mxu0 %v1402
    %1404 = vmatprep.subr.mxu0 0.0
    %v1405 = vand.u32 %v81, 4294901760
    %v1406 = vsub.f32 %v81, %v1405
    %1407 = vmatpush1.msra.mxu0 %v1406
    %1408 = vmatprep.subr.mxu0 0.0
    %v1409 = vand.u32 %v82, 4294901760
    %v1410 = vsub.f32 %v82, %v1409
    %1411 = vmatpush1.msra.mxu0 %v1410
    %1412 = vmatprep.subr.mxu0 0.0
    %v1413 = vand.u32 %v83, 4294901760
    %v1414 = vsub.f32 %v83, %v1413
    %1415 = vmatpush1.msra.mxu0 %v1414
    %1416 = vmatprep.subr.mxu0 0.0
    %v1417 = vand.u32 %v84, 4294901760
    %v1418 = vsub.f32 %v84, %v1417
    %1419 = vmatpush1.msra.mxu0 %v1418
    %1420 = vmatprep.subr.mxu0 0.0
    %v1421 = vand.u32 %v85, 4294901760
    %v1422 = vsub.f32 %v85, %v1421
    %1423 = vmatpush1.msra.mxu0 %v1422
    %1424 = vmatprep.subr.mxu0 0.0
    %v1425 = vand.u32 %v86, 4294901760
    %v1426 = vsub.f32 %v86, %v1425
    %1427 = vmatpush1.msra.mxu0 %v1426
    %1428 = vmatprep.subr.mxu0 0.0
    %v1429 = vand.u32 %v87, 4294901760
    %v1430 = vsub.f32 %v87, %v1429
    %1431 = vmatpush1.msra.mxu0 %v1430
    %1432 = vmatprep.subr.mxu0 0.0
    %v1433 = vand.u32 %v88, 4294901760
    %v1434 = vsub.f32 %v88, %v1433
    %1435 = vmatpush1.msra.mxu0 %v1434
    %1436 = vmatprep.subr.mxu0 0.0
    %v1437 = vand.u32 %v89, 4294901760
    %v1438 = vsub.f32 %v89, %v1437
    %1439 = vmatpush1.msra.mxu0 %v1438
    %1440 = vmatprep.subr.mxu0 0.0
    %v1441 = vand.u32 %v90, 4294901760
    %v1442 = vsub.f32 %v90, %v1441
    %1443 = vmatpush1.msra.mxu0 %v1442
    %1444 = vmatprep.subr.mxu0 0.0
    %v1445 = vand.u32 %v91, 4294901760
    %v1446 = vsub.f32 %v91, %v1445
    %1447 = vmatpush1.msra.mxu0 %v1446
    %v1448 = vand.u32 %v109, 4294901760
    %v1449 = vsub.f32 %v109, %v1448
    %1450 = vmatprep.mubr.f32.mxu0 %v1449
    %v1451 = vand.u32 %v105, 4294901760
    %v1452 = vsub.f32 %v105, %v1451
    %1453 = vmatmul.mubr.f32.gmra.mrb[0].mxu0 %v1452
    %v1454 = vpop.f32.mrb[0].mxu0
    %v1455 = vadd.f32 %v1317, %v1454
    %v1456 = vpop.f32.mrb[0].mxu0
    %1457 = vdwg.mxu0
    %1458 = vmatprep.subr.mxu0 0.0
    %v1459 = vand.u32 %v60, 4294901760
    %1460 = vmatpush1.msra.mxu0 %v1459
    %1461 = vmatprep.subr.mxu0 0.0
    %v1462 = vand.u32 %v61, 4294901760
    %1463 = vmatpush1.msra.mxu0 %v1462
    %1464 = vmatprep.subr.mxu0 0.0
    %v1465 = vand.u32 %v62, 4294901760
    %1466 = vmatpush1.msra.mxu0 %v1465
    %1467 = vmatprep.subr.mxu0 0.0
    %v1468 = vand.u32 %v63, 4294901760
    %1469 = vmatpush1.msra.mxu0 %v1468
    %1470 = vmatprep.subr.mxu0 0.0
    %v1471 = vand.u32 %v64, 4294901760
    %1472 = vmatpush1.msra.mxu0 %v1471
    %1473 = vmatprep.subr.mxu0 0.0
    %v1474 = vand.u32 %v65, 4294901760
    %1475 = vmatpush1.msra.mxu0 %v1474
    %1476 = vmatprep.subr.mxu0 0.0
    %v1477 = vand.u32 %v66, 4294901760
    %1478 = vmatpush1.msra.mxu0 %v1477
    %1479 = vmatprep.subr.mxu0 0.0
    %v1480 = vand.u32 %v67, 4294901760
    %1481 = vmatpush1.msra.mxu0 %v1480
    %1482 = vmatprep.subr.mxu0 0.0
    %v1483 = vand.u32 %v68, 4294901760
    %1484 = vmatpush1.msra.mxu0 %v1483
    %1485 = vmatprep.subr.mxu0 0.0
    %v1486 = vand.u32 %v69, 4294901760
    %1487 = vmatpush1.msra.mxu0 %v1486
    %1488 = vmatprep.subr.mxu0 0.0
    %v1489 = vand.u32 %v70, 4294901760
    %1490 = vmatpush1.msra.mxu0 %v1489
    %1491 = vmatprep.subr.mxu0 0.0
    %v1492 = vand.u32 %v71, 4294901760
    %1493 = vmatpush1.msra.mxu0 %v1492
    %1494 = vmatprep.subr.mxu0 0.0
    %v1495 = vand.u32 %v72, 4294901760
    %1496 = vmatpush1.msra.mxu0 %v1495
    %1497 = vmatprep.subr.mxu0 0.0
    %v1498 = vand.u32 %v73, 4294901760
    %1499 = vmatpush1.msra.mxu0 %v1498
    %1500 = vmatprep.subr.mxu0 0.0
    %v1501 = vand.u32 %v74, 4294901760
    %1502 = vmatpush1.msra.mxu0 %v1501
    %1503 = vmatprep.subr.mxu0 0.0
    %v1504 = vand.u32 %v75, 4294901760
    %1505 = vmatpush1.msra.mxu0 %v1504
    %1506 = vmatprep.subr.mxu0 0.0
    %v1507 = vand.u32 %v76, 4294901760
    %1508 = vmatpush1.msra.mxu0 %v1507
    %1509 = vmatprep.subr.mxu0 0.0
    %v1510 = vand.u32 %v77, 4294901760
    %1511 = vmatpush1.msra.mxu0 %v1510
    %1512 = vmatprep.subr.mxu0 0.0
    %v1513 = vand.u32 %v78, 4294901760
    %1514 = vmatpush1.msra.mxu0 %v1513
    %1515 = vmatprep.subr.mxu0 0.0
    %v1516 = vand.u32 %v79, 4294901760
    %1517 = vmatpush1.msra.mxu0 %v1516
    %1518 = vmatprep.subr.mxu0 0.0
    %v1519 = vand.u32 %v80, 4294901760
    %1520 = vmatpush1.msra.mxu0 %v1519
    %1521 = vmatprep.subr.mxu0 0.0
    %v1522 = vand.u32 %v81, 4294901760
    %1523 = vmatpush1.msra.mxu0 %v1522
    %1524 = vmatprep.subr.mxu0 0.0
    %v1525 = vand.u32 %v82, 4294901760
    %1526 = vmatpush1.msra.mxu0 %v1525
    %1527 = vmatprep.subr.mxu0 0.0
    %v1528 = vand.u32 %v83, 4294901760
    %1529 = vmatpush1.msra.mxu0 %v1528
    %1530 = vmatprep.subr.mxu0 0.0
    %v1531 = vand.u32 %v84, 4294901760
    %1532 = vmatpush1.msra.mxu0 %v1531
    %1533 = vmatprep.subr.mxu0 0.0
    %v1534 = vand.u32 %v85, 4294901760
    %1535 = vmatpush1.msra.mxu0 %v1534
    %1536 = vmatprep.subr.mxu0 0.0
    %v1537 = vand.u32 %v86, 4294901760
    %1538 = vmatpush1.msra.mxu0 %v1537
    %1539 = vmatprep.subr.mxu0 0.0
    %v1540 = vand.u32 %v87, 4294901760
    %1541 = vmatpush1.msra.mxu0 %v1540
    %1542 = vmatprep.subr.mxu0 0.0
    %v1543 = vand.u32 %v88, 4294901760
    %1544 = vmatpush1.msra.mxu0 %v1543
    %1545 = vmatprep.subr.mxu0 0.0
    %v1546 = vand.u32 %v89, 4294901760
    %1547 = vmatpush1.msra.mxu0 %v1546
    %1548 = vmatprep.subr.mxu0 0.0
    %v1549 = vand.u32 %v90, 4294901760
    %1550 = vmatpush1.msra.mxu0 %v1549
    %1551 = vmatprep.subr.mxu0 0.0
    %v1552 = vand.u32 %v91, 4294901760
    %1553 = vmatpush1.msra.mxu0 %v1552
    %v1554 = vand.u32 %v109, 4294901760
    %v1555 = vsub.f32 %v109, %v1554
    %v1556 = vand.u32 %v1555, 4294901760
    %1557 = vmatprep.mubr.f32.mxu0 %v1556
    %v1558 = vand.u32 %v105, 4294901760
    %v1559 = vsub.f32 %v105, %v1558
    %v1560 = vand.u32 %v1559, 4294901760
    %1561 = vmatmul.mubr.f32.gmra.mrb[0].mxu0 %v1560
    %v1562 = vpop.f32.mrb[0].mxu0
    %v1563 = vadd.f32 %v1455, %v1562
    %v1564 = vpop.f32.mrb[0].mxu0
    %1565 = vdwg.mxu0
    %1566 = vmatprep.subr.mxu0 0.0
    %v1567 = vand.u32 %v60, 4294901760
    %v1568 = vsub.f32 %v60, %v1567
    %v1569 = vand.u32 %v1568, 4294901760
    %1570 = vmatpush1.msra.mxu0 %v1569
    %1571 = vmatprep.subr.mxu0 0.0
    %v1572 = vand.u32 %v61, 4294901760
    %v1573 = vsub.f32 %v61, %v1572
    %v1574 = vand.u32 %v1573, 4294901760
    %1575 = vmatpush1.msra.mxu0 %v1574
    %1576 = vmatprep.subr.mxu0 0.0
    %v1577 = vand.u32 %v62, 4294901760
    %v1578 = vsub.f32 %v62, %v1577
    %v1579 = vand.u32 %v1578, 4294901760
    %1580 = vmatpush1.msra.mxu0 %v1579
    %1581 = vmatprep.subr.mxu0 0.0
    %v1582 = vand.u32 %v63, 4294901760
    %v1583 = vsub.f32 %v63, %v1582
    %v1584 = vand.u32 %v1583, 4294901760
    %1585 = vmatpush1.msra.mxu0 %v1584
    %1586 = vmatprep.subr.mxu0 0.0
    %v1587 = vand.u32 %v64, 4294901760
    %v1588 = vsub.f32 %v64, %v1587
    %v1589 = vand.u32 %v1588, 4294901760
    %1590 = vmatpush1.msra.mxu0 %v1589
    %1591 = vmatprep.subr.mxu0 0.0
    %v1592 = vand.u32 %v65, 4294901760
    %v1593 = vsub.f32 %v65, %v1592
    %v1594 = vand.u32 %v1593, 4294901760
    %1595 = vmatpush1.msra.mxu0 %v1594
    %1596 = vmatprep.subr.mxu0 0.0
    %v1597 = vand.u32 %v66, 4294901760
    %v1598 = vsub.f32 %v66, %v1597
    %v1599 = vand.u32 %v1598, 4294901760
    %1600 = vmatpush1.msra.mxu0 %v1599
    %1601 = vmatprep.subr.mxu0 0.0
    %v1602 = vand.u32 %v67, 4294901760
    %v1603 = vsub.f32 %v67, %v1602
    %v1604 = vand.u32 %v1603, 4294901760
    %1605 = vmatpush1.msra.mxu0 %v1604
    %1606 = vmatprep.subr.mxu0 0.0
    %v1607 = vand.u32 %v68, 4294901760
    %v1608 = vsub.f32 %v68, %v1607
    %v1609 = vand.u32 %v1608, 4294901760
    %1610 = vmatpush1.msra.mxu0 %v1609
    %1611 = vmatprep.subr.mxu0 0.0
    %v1612 = vand.u32 %v69, 4294901760
    %v1613 = vsub.f32 %v69, %v1612
    %v1614 = vand.u32 %v1613, 4294901760
    %1615 = vmatpush1.msra.mxu0 %v1614
    %1616 = vmatprep.subr.mxu0 0.0
    %v1617 = vand.u32 %v70, 4294901760
    %v1618 = vsub.f32 %v70, %v1617
    %v1619 = vand.u32 %v1618, 4294901760
    %1620 = vmatpush1.msra.mxu0 %v1619
    %1621 = vmatprep.subr.mxu0 0.0
    %v1622 = vand.u32 %v71, 4294901760
    %v1623 = vsub.f32 %v71, %v1622
    %v1624 = vand.u32 %v1623, 4294901760
    %1625 = vmatpush1.msra.mxu0 %v1624
    %1626 = vmatprep.subr.mxu0 0.0
    %v1627 = vand.u32 %v72, 4294901760
    %v1628 = vsub.f32 %v72, %v1627
    %v1629 = vand.u32 %v1628, 4294901760
    %1630 = vmatpush1.msra.mxu0 %v1629
    %1631 = vmatprep.subr.mxu0 0.0
    %v1632 = vand.u32 %v73, 4294901760
    %v1633 = vsub.f32 %v73, %v1632
    %v1634 = vand.u32 %v1633, 4294901760
    %1635 = vmatpush1.msra.mxu0 %v1634
    %1636 = vmatprep.subr.mxu0 0.0
    %v1637 = vand.u32 %v74, 4294901760
    %v1638 = vsub.f32 %v74, %v1637
    %v1639 = vand.u32 %v1638, 4294901760
    %1640 = vmatpush1.msra.mxu0 %v1639
    %1641 = vmatprep.subr.mxu0 0.0
    %v1642 = vand.u32 %v75, 4294901760
    %v1643 = vsub.f32 %v75, %v1642
    %v1644 = vand.u32 %v1643, 4294901760
    %1645 = vmatpush1.msra.mxu0 %v1644
    %1646 = vmatprep.subr.mxu0 0.0
    %v1647 = vand.u32 %v76, 4294901760
    %v1648 = vsub.f32 %v76, %v1647
    %v1649 = vand.u32 %v1648, 4294901760
    %1650 = vmatpush1.msra.mxu0 %v1649
    %1651 = vmatprep.subr.mxu0 0.0
    %v1652 = vand.u32 %v77, 4294901760
    %v1653 = vsub.f32 %v77, %v1652
    %v1654 = vand.u32 %v1653, 4294901760
    %1655 = vmatpush1.msra.mxu0 %v1654
    %1656 = vmatprep.subr.mxu0 0.0
    %v1657 = vand.u32 %v78, 4294901760
    %v1658 = vsub.f32 %v78, %v1657
    %v1659 = vand.u32 %v1658, 4294901760
    %1660 = vmatpush1.msra.mxu0 %v1659
    %1661 = vmatprep.subr.mxu0 0.0
    %v1662 = vand.u32 %v79, 4294901760
    %v1663 = vsub.f32 %v79, %v1662
    %v1664 = vand.u32 %v1663, 4294901760
    %1665 = vmatpush1.msra.mxu0 %v1664
    %1666 = vmatprep.subr.mxu0 0.0
    %v1667 = vand.u32 %v80, 4294901760
    %v1668 = vsub.f32 %v80, %v1667
    %v1669 = vand.u32 %v1668, 4294901760
    %1670 = vmatpush1.msra.mxu0 %v1669
    %1671 = vmatprep.subr.mxu0 0.0
    %v1672 = vand.u32 %v81, 4294901760
    %v1673 = vsub.f32 %v81, %v1672
    %v1674 = vand.u32 %v1673, 4294901760
    %1675 = vmatpush1.msra.mxu0 %v1674
    %1676 = vmatprep.subr.mxu0 0.0
    %v1677 = vand.u32 %v82, 4294901760
    %v1678 = vsub.f32 %v82, %v1677
    %v1679 = vand.u32 %v1678, 4294901760
    %1680 = vmatpush1.msra.mxu0 %v1679
    %1681 = vmatprep.subr.mxu0 0.0
    %v1682 = vand.u32 %v83, 4294901760
    %v1683 = vsub.f32 %v83, %v1682
    %v1684 = vand.u32 %v1683, 4294901760
    %1685 = vmatpush1.msra.mxu0 %v1684
    %1686 = vmatprep.subr.mxu0 0.0
    %v1687 = vand.u32 %v84, 4294901760
    %v1688 = vsub.f32 %v84, %v1687
    %v1689 = vand.u32 %v1688, 4294901760
    %1690 = vmatpush1.msra.mxu0 %v1689
    %1691 = vmatprep.subr.mxu0 0.0
    %v1692 = vand.u32 %v85, 4294901760
    %v1693 = vsub.f32 %v85, %v1692
    %v1694 = vand.u32 %v1693, 4294901760
    %1695 = vmatpush1.msra.mxu0 %v1694
    %1696 = vmatprep.subr.mxu0 0.0
    %v1697 = vand.u32 %v86, 4294901760
    %v1698 = vsub.f32 %v86, %v1697
    %v1699 = vand.u32 %v1698, 4294901760
    %1700 = vmatpush1.msra.mxu0 %v1699
    %1701 = vmatprep.subr.mxu0 0.0
    %v1702 = vand.u32 %v87, 4294901760
    %v1703 = vsub.f32 %v87, %v1702
    %v1704 = vand.u32 %v1703, 4294901760
    %1705 = vmatpush1.msra.mxu0 %v1704
    %1706 = vmatprep.subr.mxu0 0.0
    %v1707 = vand.u32 %v88, 4294901760
    %v1708 = vsub.f32 %v88, %v1707
    %v1709 = vand.u32 %v1708, 4294901760
    %1710 = vmatpush1.msra.mxu0 %v1709
    %1711 = vmatprep.subr.mxu0 0.0
    %v1712 = vand.u32 %v89, 4294901760
    %v1713 = vsub.f32 %v89, %v1712
    %v1714 = vand.u32 %v1713, 4294901760
    %1715 = vmatpush1.msra.mxu0 %v1714
    %1716 = vmatprep.subr.mxu0 0.0
    %v1717 = vand.u32 %v90, 4294901760
    %v1718 = vsub.f32 %v90, %v1717
    %v1719 = vand.u32 %v1718, 4294901760
    %1720 = vmatpush1.msra.mxu0 %v1719
    %1721 = vmatprep.subr.mxu0 0.0
    %v1722 = vand.u32 %v91, 4294901760
    %v1723 = vsub.f32 %v91, %v1722
    %v1724 = vand.u32 %v1723, 4294901760
    %1725 = vmatpush1.msra.mxu0 %v1724
    %v1726 = vand.u32 %v109, 4294901760
    %1727 = vmatprep.mubr.f32.mxu0 %v1726
    %v1728 = vand.u32 %v105, 4294901760
    %1729 = vmatmul.mubr.f32.gmra.mrb[0].mxu0 %v1728
    %v1730 = vpop.f32.mrb[0].mxu0
    %v1731 = vadd.f32 %v1563, %v1730
    %v1732 = vpop.f32.mrb[0].mxu0
    %1733 = vdwg.mxu0
    %1734 = vmatprep.subr.mxu0 0.0
    %v1735 = vand.u32 %v60, 4294901760
    %1736 = vmatpush1.msra.mxu0 %v1735
    %1737 = vmatprep.subr.mxu0 0.0
    %v1738 = vand.u32 %v61, 4294901760
    %1739 = vmatpush1.msra.mxu0 %v1738
    %1740 = vmatprep.subr.mxu0 0.0
    %v1741 = vand.u32 %v62, 4294901760
    %1742 = vmatpush1.msra.mxu0 %v1741
    %1743 = vmatprep.subr.mxu0 0.0
    %v1744 = vand.u32 %v63, 4294901760
    %1745 = vmatpush1.msra.mxu0 %v1744
    %1746 = vmatprep.subr.mxu0 0.0
    %v1747 = vand.u32 %v64, 4294901760
    %1748 = vmatpush1.msra.mxu0 %v1747
    %1749 = vmatprep.subr.mxu0 0.0
    %v1750 = vand.u32 %v65, 4294901760
    %1751 = vmatpush1.msra.mxu0 %v1750
    %1752 = vmatprep.subr.mxu0 0.0
    %v1753 = vand.u32 %v66, 4294901760
    %1754 = vmatpush1.msra.mxu0 %v1753
    %1755 = vmatprep.subr.mxu0 0.0
    %v1756 = vand.u32 %v67, 4294901760
    %1757 = vmatpush1.msra.mxu0 %v1756
    %1758 = vmatprep.subr.mxu0 0.0
    %v1759 = vand.u32 %v68, 4294901760
    %1760 = vmatpush1.msra.mxu0 %v1759
    %1761 = vmatprep.subr.mxu0 0.0
    %v1762 = vand.u32 %v69, 4294901760
    %1763 = vmatpush1.msra.mxu0 %v1762
    %1764 = vmatprep.subr.mxu0 0.0
    %v1765 = vand.u32 %v70, 4294901760
    %1766 = vmatpush1.msra.mxu0 %v1765
    %1767 = vmatprep.subr.mxu0 0.0
    %v1768 = vand.u32 %v71, 4294901760
    %1769 = vmatpush1.msra.mxu0 %v1768
    %1770 = vmatprep.subr.mxu0 0.0
    %v1771 = vand.u32 %v72, 4294901760
    %1772 = vmatpush1.msra.mxu0 %v1771
    %1773 = vmatprep.subr.mxu0 0.0
    %v1774 = vand.u32 %v73, 4294901760
    %1775 = vmatpush1.msra.mxu0 %v1774
    %1776 = vmatprep.subr.mxu0 0.0
    %v1777 = vand.u32 %v74, 4294901760
    %1778 = vmatpush1.msra.mxu0 %v1777
    %1779 = vmatprep.subr.mxu0 0.0
    %v1780 = vand.u32 %v75, 4294901760
    %1781 = vmatpush1.msra.mxu0 %v1780
    %1782 = vmatprep.subr.mxu0 0.0
    %v1783 = vand.u32 %v76, 4294901760
    %1784 = vmatpush1.msra.mxu0 %v1783
    %1785 = vmatprep.subr.mxu0 0.0
    %v1786 = vand.u32 %v77, 4294901760
    %1787 = vmatpush1.msra.mxu0 %v1786
    %1788 = vmatprep.subr.mxu0 0.0
    %v1789 = vand.u32 %v78, 4294901760
    %1790 = vmatpush1.msra.mxu0 %v1789
    %1791 = vmatprep.subr.mxu0 0.0
    %v1792 = vand.u32 %v79, 4294901760
    %1793 = vmatpush1.msra.mxu0 %v1792
    %1794 = vmatprep.subr.mxu0 0.0
    %v1795 = vand.u32 %v80, 4294901760
    %1796 = vmatpush1.msra.mxu0 %v1795
    %1797 = vmatprep.subr.mxu0 0.0
    %v1798 = vand.u32 %v81, 4294901760
    %1799 = vmatpush1.msra.mxu0 %v1798
    %1800 = vmatprep.subr.mxu0 0.0
    %v1801 = vand.u32 %v82, 4294901760
    %1802 = vmatpush1.msra.mxu0 %v1801
    %1803 = vmatprep.subr.mxu0 0.0
    %v1804 = vand.u32 %v83, 4294901760
    %1805 = vmatpush1.msra.mxu0 %v1804
    %1806 = vmatprep.subr.mxu0 0.0
    %v1807 = vand.u32 %v84, 4294901760
    %1808 = vmatpush1.msra.mxu0 %v1807
    %1809 = vmatprep.subr.mxu0 0.0
    %v1810 = vand.u32 %v85, 4294901760
    %1811 = vmatpush1.msra.mxu0 %v1810
    %1812 = vmatprep.subr.mxu0 0.0
    %v1813 = vand.u32 %v86, 4294901760
    %1814 = vmatpush1.msra.mxu0 %v1813
    %1815 = vmatprep.subr.mxu0 0.0
    %v1816 = vand.u32 %v87, 4294901760
    %1817 = vmatpush1.msra.mxu0 %v1816
    %1818 = vmatprep.subr.mxu0 0.0
    %v1819 = vand.u32 %v88, 4294901760
    %1820 = vmatpush1.msra.mxu0 %v1819
    %1821 = vmatprep.subr.mxu0 0.0
    %v1822 = vand.u32 %v89, 4294901760
    %1823 = vmatpush1.msra.mxu0 %v1822
    %1824 = vmatprep.subr.mxu0 0.0
    %v1825 = vand.u32 %v90, 4294901760
    %1826 = vmatpush1.msra.mxu0 %v1825
    %1827 = vmatprep.subr.mxu0 0.0
    %v1828 = vand.u32 %v91, 4294901760
    %1829 = vmatpush1.msra.mxu0 %v1828
    %v1830 = vand.u32 %v109, 4294901760
    %1831 = vmatprep.mubr.f32.mxu0 %v1830
    %v1832 = vand.u32 %v105, 4294901760
    %1833 = vmatmul.mubr.f32.gmra.mrb[0].mxu0 %v1832
    %v1834 = vpop.f32.mrb[0].mxu0
    %v1835 = vadd.f32 %v1731, %v1834
    %v1836 = vpop.f32.mrb[0].mxu0
    %1837 = vdwg.mxu0
    %v1838 = vld [vmem:[%s3] sm:$0xff]
    %v1839 = vld [vmem:[%s3 + $0x8] sm:$0xff]
    %v1840 = vld [vmem:[%s3 + $0x10] sm:$0xff]
    %v1841 = vld [vmem:[%s3 + $0x18] sm:$0xff]
    %v1842 = vld [vmem:[%s3 + $0x20] sm:$0xff]
    %v1843 = vld [vmem:[%s3 + $0x28] sm:$0xff]
    %v1844 = vld [vmem:[%s3 + $0x30] sm:$0xff]
    %v1845 = vld [vmem:[%s3 + $0x38] sm:$0xff]
    %v1846 = vld [vmem:[%s3 + $0x40] sm:$0xff]
    %v1847 = vld [vmem:[%s3 + $0x48] sm:$0xff]
    %v1848 = vld [vmem:[%s3 + $0x50] sm:$0xff]
    %v1849 = vld [vmem:[%s3 + $0x58] sm:$0xff]
    %v1850 = vld [vmem:[%s3 + $0x60] sm:$0xff]
    %v1851 = vld [vmem:[%s3 + $0x68] sm:$0xff]
    %v1852 = vld [vmem:[%s3 + $0x70] sm:$0xff]
    %v1853 = vld [vmem:[%s3 + $0x78] sm:$0xff]
    %v1854 = vld [vmem:[%s3 + $0x80] sm:$0xff]
    %v1855 = vld [vmem:[%s3 + $0x88] sm:$0xff]
    %v1856 = vld [vmem:[%s3 + $0x90] sm:$0xff]
    %v1857 = vld [vmem:[%s3 + $0x98] sm:$0xff]
    %v1858 = vld [vmem:[%s3 + $0xa0] sm:$0xff]
    %v1859 = vld [vmem:[%s3 + $0xa8] sm:$0xff]
    %v1860 = vld [vmem:[%s3 + $0xb0] sm:$0xff]
    %v1861 = vld [vmem:[%s3 + $0xb8] sm:$0xff]
    %v1862 = vld [vmem:[%s3 + $0xc0] sm:$0xff]
    %v1863 = vld [vmem:[%s3 + $0xc8] sm:$0xff]
    %v1864 = vld [vmem:[%s3 + $0xd0] sm:$0xff]
    %v1865 = vld [vmem:[%s3 + $0xd8] sm:$0xff]
    %v1866 = vld [vmem:[%s3 + $0xe0] sm:$0xff]
    %v1867 = vld [vmem:[%s3 + $0xe8] sm:$0xff]
    %v1868 = vld [vmem:[%s3 + $0xf0] sm:$0xff]
    %v1869 = vld [vmem:[%s3 + $0xf8] sm:$0xff]
    %v1870 = vld [vmem:[%s3 + $0x100] sm:$0xff]
    %v1871 = vld [vmem:[%s3 + $0x108] sm:$0xff]
    %v1872 = vld [vmem:[%s3 + $0x110] sm:$0xff]
    %v1873 = vld [vmem:[%s3 + $0x118] sm:$0xff]
    %v1874 = vld [vmem:[%s4] sm:$0x3f]
    %v1876 = vlaneseq
    %v1877 = vshrl.u32 %v1876, 7
    %v1878 = vsub.s32 0, %v1877
    %v1879 = vrot.slane %v1874, %v1878
    %v1880 = vlaneseq
    %v1881 = vshrl.u32 %v1880, 7
    %v1882 = vsub.s32 1, %v1881
    %v1883 = vrot.slane %v1874, %v1882
    %v1884 = vlaneseq
    %v1885 = vshrl.u32 %v1884, 7
    %v1886 = vsub.s32 2, %v1885
    %v1887 = vrot.slane %v1874, %v1886
    %v1888 = vlaneseq
    %v1889 = vshrl.u32 %v1888, 7
    %v1890 = vsub.s32 3, %v1889
    %v1891 = vrot.slane %v1874, %v1890
    %v1892 = vlaneseq
    %v1893 = vshrl.u32 %v1892, 7
    %v1894 = vsub.s32 4, %v1893
    %v1895 = vrot.slane %v1874, %v1894
    %v1896 = vlaneseq
    %v1897 = vshrl.u32 %v1896, 7
    %v1898 = vsub.s32 5, %v1897
    %v1899 = vrot.slane %v1874, %v1898
    %vm1906 = vcmask 392192
    %v1908 = vsel %vm1906, %v1835, 0
    %v1910 = vand.u32 %v1839, 4294901760
    %1911 = vmatprep.subr.mxu0 %v1910
    %v1912 = vand.u32 %v1838, 4294901760
    %1913 = vmatpush1.msra.mxu0 %v1912
    %v1914 = vand.u32 %v1845, 4294901760
    %1915 = vmatprep.subr.mxu0 %v1914
    %v1916 = vand.u32 %v1844, 4294901760
    %1917 = vmatpush1.msra.mxu0 %v1916
    %v1918 = vand.u32 %v1851, 4294901760
    %1919 = vmatprep.subr.mxu0 %v1918
    %v1920 = vand.u32 %v1850, 4294901760
    %1921 = vmatpush1.msra.mxu0 %v1920
    %v1922 = vand.u32 %v1857, 4294901760
    %1923 = vmatprep.subr.mxu0 %v1922
    %v1924 = vand.u32 %v1856, 4294901760
    %1925 = vmatpush1.msra.mxu0 %v1924
    %v1926 = vand.u32 %v1863, 4294901760
    %1927 = vmatprep.subr.mxu0 %v1926
    %v1928 = vand.u32 %v1862, 4294901760
    %1929 = vmatpush1.msra.mxu0 %v1928
    %v1930 = vand.u32 %v1869, 4294901760
    %1931 = vmatprep.subr.mxu0 %v1930
    %v1932 = vand.u32 %v1868, 4294901760
    %1933 = vmatpush1.msra.mxu0 %v1932
    %1934 = vmatprep.subr.mxu0 0.0
    %1935 = vmatpush1.msra.mxu0 0.0
    %1936 = vmatprep.subr.mxu0 0.0
    %1937 = vmatpush1.msra.mxu0 0.0
    %1938 = vmatprep.subr.mxu0 0.0
    %1939 = vmatpush1.msra.mxu0 0.0
    %1940 = vmatprep.subr.mxu0 0.0
    %1941 = vmatpush1.msra.mxu0 0.0
    %1942 = vmatprep.subr.mxu0 0.0
    %1943 = vmatpush1.msra.mxu0 0.0
    %1944 = vmatprep.subr.mxu0 0.0
    %1945 = vmatpush1.msra.mxu0 0.0
    %1946 = vmatprep.subr.mxu0 0.0
    %1947 = vmatpush1.msra.mxu0 0.0
    %1948 = vmatprep.subr.mxu0 0.0
    %1949 = vmatpush1.msra.mxu0 0.0
    %1950 = vmatprep.subr.mxu0 0.0
    %1951 = vmatpush1.msra.mxu0 0.0
    %1952 = vmatprep.subr.mxu0 0.0
    %1953 = vmatpush1.msra.mxu0 0.0
    %1954 = vmatprep.subr.mxu0 0.0
    %1955 = vmatpush1.msra.mxu0 0.0
    %1956 = vmatprep.subr.mxu0 0.0
    %1957 = vmatpush1.msra.mxu0 0.0
    %1958 = vmatprep.subr.mxu0 0.0
    %1959 = vmatpush1.msra.mxu0 0.0
    %1960 = vmatprep.subr.mxu0 0.0
    %1961 = vmatpush1.msra.mxu0 0.0
    %1962 = vmatprep.subr.mxu0 0.0
    %1963 = vmatpush1.msra.mxu0 0.0
    %1964 = vmatprep.subr.mxu0 0.0
    %1965 = vmatpush1.msra.mxu0 0.0
    %1966 = vmatprep.subr.mxu0 0.0
    %1967 = vmatpush1.msra.mxu0 0.0
    %1968 = vmatprep.subr.mxu0 0.0
    %1969 = vmatpush1.msra.mxu0 0.0
    %1970 = vmatprep.subr.mxu0 0.0
    %1971 = vmatpush1.msra.mxu0 0.0
    %1972 = vmatprep.subr.mxu0 0.0
    %1973 = vmatpush1.msra.mxu0 0.0
    %1974 = vmatprep.subr.mxu0 0.0
    %1975 = vmatpush1.msra.mxu0 0.0
    %1976 = vmatprep.subr.mxu0 0.0
    %1977 = vmatpush1.msra.mxu0 0.0
    %1978 = vmatprep.subr.mxu0 0.0
    %1979 = vmatpush1.msra.mxu0 0.0
    %1980 = vmatprep.subr.mxu0 0.0
    %1981 = vmatpush1.msra.mxu0 0.0
    %1982 = vmatprep.subr.mxu0 0.0
    %1983 = vmatpush1.msra.mxu0 0.0
    %1984 = vmatprep.subr.mxu0 0.0
    %1985 = vmatpush1.msra.mxu0 0.0
    %1986 = vmatprep.mubr.f32.mxu0 0.0
    %v1987 = vand.u32 %v1908, 4294901760
    %v1988 = vsub.f32 %v1908, %v1987
    %v1989 = vand.u32 %v1988, 4294901760
    %v1990 = vsub.f32 %v1988, %v1989
    %v1991 = vand.u32 %v1990, 4294901760
    %1992 = vmatmul.mubr.f32.gmra.mrb[0].mxu0 %v1991
    %v1993 = vpop.f32.mrb[0].mxu0
    %v1994 = vadd.f32 %v1879, %v1993
    %v1995 = vpop.f32.mrb[0].mxu0
    %v1996 = vadd.f32 %v1883, %v1995
    %1997 = vdwg.mxu0
    %v1998 = vand.u32 %v1839, 4294901760
    %v1999 = vsub.f32 %v1839, %v1998
    %v2000 = vand.u32 %v1999, 4294901760
    %v2001 = vsub.f32 %v1999, %v2000
    %v2002 = vand.u32 %v2001, 4294901760
    %2003 = vmatprep.subr.mxu0 %v2002
    %v2004 = vand.u32 %v1838, 4294901760
    %v2005 = vsub.f32 %v1838, %v2004
    %v2006 = vand.u32 %v2005, 4294901760
    %v2007 = vsub.f32 %v2005, %v2006
    %v2008 = vand.u32 %v2007, 4294901760
    %2009 = vmatpush1.msra.mxu0 %v2008
    %v2010 = vand.u32 %v1845, 4294901760
    %v2011 = vsub.f32 %v1845, %v2010
    %v2012 = vand.u32 %v2011, 4294901760
    %v2013 = vsub.f32 %v2011, %v2012
    %v2014 = vand.u32 %v2013, 4294901760
    %2015 = vmatprep.subr.mxu0 %v2014
    %v2016 = vand.u32 %v1844, 4294901760
    %v2017 = vsub.f32 %v1844, %v2016
    %v2018 = vand.u32 %v2017, 4294901760
    %v2019 = vsub.f32 %v2017, %v2018
    %v2020 = vand.u32 %v2019, 4294901760
    %2021 = vmatpush1.msra.mxu0 %v2020
    %v2022 = vand.u32 %v1851, 4294901760
    %v2023 = vsub.f32 %v1851, %v2022
    %v2024 = vand.u32 %v2023, 4294901760
    %v2025 = vsub.f32 %v2023, %v2024
    %v2026 = vand.u32 %v2025, 4294901760
    %2027 = vmatprep.subr.mxu0 %v2026
    %v2028 = vand.u32 %v1850, 4294901760
    %v2029 = vsub.f32 %v1850, %v2028
    %v2030 = vand.u32 %v2029, 4294901760
    %v2031 = vsub.f32 %v2029, %v2030
    %v2032 = vand.u32 %v2031, 4294901760
    %2033 = vmatpush1.msra.mxu0 %v2032
    %v2034 = vand.u32 %v1857, 4294901760
    %v2035 = vsub.f32 %v1857, %v2034
    %v2036 = vand.u32 %v2035, 4294901760
    %v2037 = vsub.f32 %v2035, %v2036
    %v2038 = vand.u32 %v2037, 4294901760
    %2039 = vmatprep.subr.mxu0 %v2038
    %v2040 = vand.u32 %v1856, 4294901760
    %v2041 = vsub.f32 %v1856, %v2040
    %v2042 = vand.u32 %v2041, 4294901760
    %v2043 = vsub.f32 %v2041, %v2042
    %v2044 = vand.u32 %v2043, 4294901760
    %2045 = vmatpush1.msra.mxu0 %v2044
    %v2046 = vand.u32 %v1863, 4294901760
    %v2047 = vsub.f32 %v1863, %v2046
    %v2048 = vand.u32 %v2047, 4294901760
    %v2049 = vsub.f32 %v2047, %v2048
    %v2050 = vand.u32 %v2049, 4294901760
    %2051 = vmatprep.subr.mxu0 %v2050
    %v2052 = vand.u32 %v1862, 4294901760
    %v2053 = vsub.f32 %v1862, %v2052
    %v2054 = vand.u32 %v2053, 4294901760
    %v2055 = vsub.f32 %v2053, %v2054
    %v2056 = vand.u32 %v2055, 4294901760
    %2057 = vmatpush1.msra.mxu0 %v2056
    %v2058 = vand.u32 %v1869, 4294901760
    %v2059 = vsub.f32 %v1869, %v2058
    %v2060 = vand.u32 %v2059, 4294901760
    %v2061 = vsub.f32 %v2059, %v2060
    %v2062 = vand.u32 %v2061, 4294901760
    %2063 = vmatprep.subr.mxu0 %v2062
    %v2064 = vand.u32 %v1868, 4294901760
    %v2065 = vsub.f32 %v1868, %v2064
    %v2066 = vand.u32 %v2065, 4294901760
    %v2067 = vsub.f32 %v2065, %v2066
    %v2068 = vand.u32 %v2067, 4294901760
    %2069 = vmatpush1.msra.mxu0 %v2068
    %2070 = vmatprep.subr.mxu0 0.0
    %2071 = vmatpush1.msra.mxu0 0.0
    %2072 = vmatprep.subr.mxu0 0.0
    %2073 = vmatpush1.msra.mxu0 0.0
    %2074 = vmatprep.subr.mxu0 0.0
    %2075 = vmatpush1.msra.mxu0 0.0
    %2076 = vmatprep.subr.mxu0 0.0
    %2077 = vmatpush1.msra.mxu0 0.0
    %2078 = vmatprep.subr.mxu0 0.0
    %2079 = vmatpush1.msra.mxu0 0.0
    %2080 = vmatprep.subr.mxu0 0.0
    %2081 = vmatpush1.msra.mxu0 0.0
    %2082 = vmatprep.subr.mxu0 0.0
    %2083 = vmatpush1.msra.mxu0 0.0
    %2084 = vmatprep.subr.mxu0 0.0
    %2085 = vmatpush1.msra.mxu0 0.0
    %2086 = vmatprep.subr.mxu0 0.0
    %2087 = vmatpush1.msra.mxu0 0.0
    %2088 = vmatprep.subr.mxu0 0.0
    %2089 = vmatpush1.msra.mxu0 0.0
    %2090 = vmatprep.subr.mxu0 0.0
    %2091 = vmatpush1.msra.mxu0 0.0
    %2092 = vmatprep.subr.mxu0 0.0
    %2093 = vmatpush1.msra.mxu0 0.0
    %2094 = vmatprep.subr.mxu0 0.0
    %2095 = vmatpush1.msra.mxu0 0.0
    %2096 = vmatprep.subr.mxu0 0.0
    %2097 = vmatpush1.msra.mxu0 0.0
    %2098 = vmatprep.subr.mxu0 0.0
    %2099 = vmatpush1.msra.mxu0 0.0
    %2100 = vmatprep.subr.mxu0 0.0
    %2101 = vmatpush1.msra.mxu0 0.0
    %2102 = vmatprep.subr.mxu0 0.0
    %2103 = vmatpush1.msra.mxu0 0.0
    %2104 = vmatprep.subr.mxu0 0.0
    %2105 = vmatpush1.msra.mxu0 0.0
    %2106 = vmatprep.subr.mxu0 0.0
    %2107 = vmatpush1.msra.mxu0 0.0
    %2108 = vmatprep.subr.mxu0 0.0
    %2109 = vmatpush1.msra.mxu0 0.0
    %2110 = vmatprep.subr.mxu0 0.0
    %2111 = vmatpush1.msra.mxu0 0.0
    %2112 = vmatprep.subr.mxu0 0.0
    %2113 = vmatpush1.msra.mxu0 0.0
    %2114 = vmatprep.subr.mxu0 0.0
    %2115 = vmatpush1.msra.mxu0 0.0
    %2116 = vmatprep.subr.mxu0 0.0
    %2117 = vmatpush1.msra.mxu0 0.0
    %2118 = vmatprep.subr.mxu0 0.0
    %2119 = vmatpush1.msra.mxu0 0.0
    %2120 = vmatprep.subr.mxu0 0.0
    %2121 = vmatpush1.msra.mxu0 0.0
    %2122 = vmatprep.mubr.f32.mxu0 0.0
    %v2123 = vand.u32 %v1908, 4294901760
    %2124 = vmatmul.mubr.f32.gmra.mrb[0].mxu0 %v2123
    %v2125 = vpop.f32.mrb[0].mxu0
    %v2126 = vadd.f32 %v1994, %v2125
    %v2127 = vpop.f32.mrb[0].mxu0
    %v2128 = vadd.f32 %v1996, %v2127
    %2129 = vdwg.mxu0
    %v2130 = vand.u32 %v1839, 4294901760
    %v2131 = vsub.f32 %v1839, %v2130
    %2132 = vmatprep.subr.mxu0 %v2131
    %v2133 = vand.u32 %v1838, 4294901760
    %v2134 = vsub.f32 %v1838, %v2133
    %2135 = vmatpush1.msra.mxu0 %v2134
    %v2136 = vand.u32 %v1845, 4294901760
    %v2137 = vsub.f32 %v1845, %v2136
    %2138 = vmatprep.subr.mxu0 %v2137
    %v2139 = vand.u32 %v1844, 4294901760
    %v2140 = vsub.f32 %v1844, %v2139
    %2141 = vmatpush1.msra.mxu0 %v2140
    %v2142 = vand.u32 %v1851, 4294901760
    %v2143 = vsub.f32 %v1851, %v2142
    %2144 = vmatprep.subr.mxu0 %v2143
    %v2145 = vand.u32 %v1850, 4294901760
    %v2146 = vsub.f32 %v1850, %v2145
    %2147 = vmatpush1.msra.mxu0 %v2146
    %v2148 = vand.u32 %v1857, 4294901760
    %v2149 = vsub.f32 %v1857, %v2148
    %2150 = vmatprep.subr.mxu0 %v2149
    %v2151 = vand.u32 %v1856, 4294901760
    %v2152 = vsub.f32 %v1856, %v2151
    %2153 = vmatpush1.msra.mxu0 %v2152
    %v2154 = vand.u32 %v1863, 4294901760
    %v2155 = vsub.f32 %v1863, %v2154
    %2156 = vmatprep.subr.mxu0 %v2155
    %v2157 = vand.u32 %v1862, 4294901760
    %v2158 = vsub.f32 %v1862, %v2157
    %2159 = vmatpush1.msra.mxu0 %v2158
    %v2160 = vand.u32 %v1869, 4294901760
    %v2161 = vsub.f32 %v1869, %v2160
    %2162 = vmatprep.subr.mxu0 %v2161
    %v2163 = vand.u32 %v1868, 4294901760
    %v2164 = vsub.f32 %v1868, %v2163
    %2165 = vmatpush1.msra.mxu0 %v2164
    %2166 = vmatprep.subr.mxu0 0.0
    %2167 = vmatpush1.msra.mxu0 0.0
    %2168 = vmatprep.subr.mxu0 0.0
    %2169 = vmatpush1.msra.mxu0 0.0
    %2170 = vmatprep.subr.mxu0 0.0
    %2171 = vmatpush1.msra.mxu0 0.0
    %2172 = vmatprep.subr.mxu0 0.0
    %2173 = vmatpush1.msra.mxu0 0.0
    %2174 = vmatprep.subr.mxu0 0.0
    %2175 = vmatpush1.msra.mxu0 0.0
    %2176 = vmatprep.subr.mxu0 0.0
    %2177 = vmatpush1.msra.mxu0 0.0
    %2178 = vmatprep.subr.mxu0 0.0
    %2179 = vmatpush1.msra.mxu0 0.0
    %2180 = vmatprep.subr.mxu0 0.0
    %2181 = vmatpush1.msra.mxu0 0.0
    %2182 = vmatprep.subr.mxu0 0.0
    %2183 = vmatpush1.msra.mxu0 0.0
    %2184 = vmatprep.subr.mxu0 0.0
    %2185 = vmatpush1.msra.mxu0 0.0
    %2186 = vmatprep.subr.mxu0 0.0
    %2187 = vmatpush1.msra.mxu0 0.0
    %2188 = vmatprep.subr.mxu0 0.0
    %2189 = vmatpush1.msra.mxu0 0.0
    %2190 = vmatprep.subr.mxu0 0.0
    %2191 = vmatpush1.msra.mxu0 0.0
    %2192 = vmatprep.subr.mxu0 0.0
    %2193 = vmatpush1.msra.mxu0 0.0
    %2194 = vmatprep.subr.mxu0 0.0
    %2195 = vmatpush1.msra.mxu0 0.0
    %2196 = vmatprep.subr.mxu0 0.0
    %2197 = vmatpush1.msra.mxu0 0.0
    %2198 = vmatprep.subr.mxu0 0.0
    %2199 = vmatpush1.msra.mxu0 0.0
    %2200 = vmatprep.subr.mxu0 0.0
    %2201 = vmatpush1.msra.mxu0 0.0
    %2202 = vmatprep.subr.mxu0 0.0
    %2203 = vmatpush1.msra.mxu0 0.0
    %2204 = vmatprep.subr.mxu0 0.0
    %2205 = vmatpush1.msra.mxu0 0.0
    %2206 = vmatprep.subr.mxu0 0.0
    %2207 = vmatpush1.msra.mxu0 0.0
    %2208 = vmatprep.subr.mxu0 0.0
    %2209 = vmatpush1.msra.mxu0 0.0
    %2210 = vmatprep.subr.mxu0 0.0
    %2211 = vmatpush1.msra.mxu0 0.0
    %2212 = vmatprep.subr.mxu0 0.0
    %2213 = vmatpush1.msra.mxu0 0.0
    %2214 = vmatprep.subr.mxu0 0.0
    %2215 = vmatpush1.msra.mxu0 0.0
    %2216 = vmatprep.subr.mxu0 0.0
    %2217 = vmatpush1.msra.mxu0 0.0
    %2218 = vmatprep.mubr.f32.mxu0 0.0
    %v2219 = vand.u32 %v1908, 4294901760
    %v2220 = vsub.f32 %v1908, %v2219
    %2221 = vmatmul.mubr.f32.gmra.mrb[0].mxu0 %v2220
    %v2222 = vpop.f32.mrb[0].mxu0
    %v2223 = vadd.f32 %v2126, %v2222
    %v2224 = vpop.f32.mrb[0].mxu0
    %v2225 = vadd.f32 %v2128, %v2224
    %2226 = vdwg.mxu0
    %v2227 = vand.u32 %v1839, 4294901760
    %2228 = vmatprep.subr.mxu0 %v2227
    %v2229 = vand.u32 %v1838, 4294901760
    %2230 = vmatpush1.msra.mxu0 %v2229
    %v2231 = vand.u32 %v1845, 4294901760
    %2232 = vmatprep.subr.mxu0 %v2231
    %v2233 = vand.u32 %v1844, 4294901760
    %2234 = vmatpush1.msra.mxu0 %v2233
    %v2235 = vand.u32 %v1851, 4294901760
    %2236 = vmatprep.subr.mxu0 %v2235
    %v2237 = vand.u32 %v1850, 4294901760
    %2238 = vmatpush1.msra.mxu0 %v2237
    %v2239 = vand.u32 %v1857, 4294901760
    %2240 = vmatprep.subr.mxu0 %v2239
    %v2241 = vand.u32 %v1856, 4294901760
    %2242 = vmatpush1.msra.mxu0 %v2241
    %v2243 = vand.u32 %v1863, 4294901760
    %2244 = vmatprep.subr.mxu0 %v2243
    %v2245 = vand.u32 %v1862, 4294901760
    %2246 = vmatpush1.msra.mxu0 %v2245
    %v2247 = vand.u32 %v1869, 4294901760
    %2248 = vmatprep.subr.mxu0 %v2247
    %v2249 = vand.u32 %v1868, 4294901760
    %2250 = vmatpush1.msra.mxu0 %v2249
    %2251 = vmatprep.subr.mxu0 0.0
    %2252 = vmatpush1.msra.mxu0 0.0
    %2253 = vmatprep.subr.mxu0 0.0
    %2254 = vmatpush1.msra.mxu0 0.0
    %2255 = vmatprep.subr.mxu0 0.0
    %2256 = vmatpush1.msra.mxu0 0.0
    %2257 = vmatprep.subr.mxu0 0.0
    %2258 = vmatpush1.msra.mxu0 0.0
    %2259 = vmatprep.subr.mxu0 0.0
    %2260 = vmatpush1.msra.mxu0 0.0
    %2261 = vmatprep.subr.mxu0 0.0
    %2262 = vmatpush1.msra.mxu0 0.0
    %2263 = vmatprep.subr.mxu0 0.0
    %2264 = vmatpush1.msra.mxu0 0.0
    %2265 = vmatprep.subr.mxu0 0.0
    %2266 = vmatpush1.msra.mxu0 0.0
    %2267 = vmatprep.subr.mxu0 0.0
    %2268 = vmatpush1.msra.mxu0 0.0
    %2269 = vmatprep.subr.mxu0 0.0
    %2270 = vmatpush1.msra.mxu0 0.0
    %2271 = vmatprep.subr.mxu0 0.0
    %2272 = vmatpush1.msra.mxu0 0.0
    %2273 = vmatprep.subr.mxu0 0.0
    %2274 = vmatpush1.msra.mxu0 0.0
    %2275 = vmatprep.subr.mxu0 0.0
    %2276 = vmatpush1.msra.mxu0 0.0
    %2277 = vmatprep.subr.mxu0 0.0
    %2278 = vmatpush1.msra.mxu0 0.0
    %2279 = vmatprep.subr.mxu0 0.0
    %2280 = vmatpush1.msra.mxu0 0.0
    %2281 = vmatprep.subr.mxu0 0.0
    %2282 = vmatpush1.msra.mxu0 0.0
    %2283 = vmatprep.subr.mxu0 0.0
    %2284 = vmatpush1.msra.mxu0 0.0
    %2285 = vmatprep.subr.mxu0 0.0
    %2286 = vmatpush1.msra.mxu0 0.0
    %2287 = vmatprep.subr.mxu0 0.0
    %2288 = vmatpush1.msra.mxu0 0.0
    %2289 = vmatprep.subr.mxu0 0.0
    %2290 = vmatpush1.msra.mxu0 0.0
    %2291 = vmatprep.subr.mxu0 0.0
    %2292 = vmatpush1.msra.mxu0 0.0
    %2293 = vmatprep.subr.mxu0 0.0
    %2294 = vmatpush1.msra.mxu0 0.0
    %2295 = vmatprep.subr.mxu0 0.0
    %2296 = vmatpush1.msra.mxu0 0.0
    %2297 = vmatprep.subr.mxu0 0.0
    %2298 = vmatpush1.msra.mxu0 0.0
    %2299 = vmatprep.subr.mxu0 0.0
    %2300 = vmatpush1.msra.mxu0 0.0
    %2301 = vmatprep.subr.mxu0 0.0
    %2302 = vmatpush1.msra.mxu0 0.0
    %2303 = vmatprep.mubr.f32.mxu0 0.0
    %v2304 = vand.u32 %v1908, 4294901760
    %v2305 = vsub.f32 %v1908, %v2304
    %v2306 = vand.u32 %v2305, 4294901760
    %2307 = vmatmul.mubr.f32.gmra.mrb[0].mxu0 %v2306
    %v2308 = vpop.f32.mrb[0].mxu0
    %v2309 = vadd.f32 %v2223, %v2308
    %v2310 = vpop.f32.mrb[0].mxu0
    %v2311 = vadd.f32 %v2225, %v2310
    %2312 = vdwg.mxu0
    %v2313 = vand.u32 %v1839, 4294901760
    %v2314 = vsub.f32 %v1839, %v2313
    %v2315 = vand.u32 %v2314, 4294901760
    %2316 = vmatprep.subr.mxu0 %v2315
    %v2317 = vand.u32 %v1838, 4294901760
    %v2318 = vsub.f32 %v1838, %v2317
    %v2319 = vand.u32 %v2318, 4294901760
    %2320 = vmatpush1.msra.mxu0 %v2319
    %v2321 = vand.u32 %v1845, 4294901760
    %v2322 = vsub.f32 %v1845, %v2321
    %v2323 = vand.u32 %v2322, 4294901760
    %2324 = vmatprep.subr.mxu0 %v2323
    %v2325 = vand.u32 %v1844, 4294901760
    %v2326 = vsub.f32 %v1844, %v2325
    %v2327 = vand.u32 %v2326, 4294901760
    %2328 = vmatpush1.msra.mxu0 %v2327
    %v2329 = vand.u32 %v1851, 4294901760
    %v2330 = vsub.f32 %v1851, %v2329
    %v2331 = vand.u32 %v2330, 4294901760
    %2332 = vmatprep.subr.mxu0 %v2331
    %v2333 = vand.u32 %v1850, 4294901760
    %v2334 = vsub.f32 %v1850, %v2333
    %v2335 = vand.u32 %v2334, 4294901760
    %2336 = vmatpush1.msra.mxu0 %v2335
    %v2337 = vand.u32 %v1857, 4294901760
    %v2338 = vsub.f32 %v1857, %v2337
    %v2339 = vand.u32 %v2338, 4294901760
    %2340 = vmatprep.subr.mxu0 %v2339
    %v2341 = vand.u32 %v1856, 4294901760
    %v2342 = vsub.f32 %v1856, %v2341
    %v2343 = vand.u32 %v2342, 4294901760
    %2344 = vmatpush1.msra.mxu0 %v2343
    %v2345 = vand.u32 %v1863, 4294901760
    %v2346 = vsub.f32 %v1863, %v2345
    %v2347 = vand.u32 %v2346, 4294901760
    %2348 = vmatprep.subr.mxu0 %v2347
    %v2349 = vand.u32 %v1862, 4294901760
    %v2350 = vsub.f32 %v1862, %v2349
    %v2351 = vand.u32 %v2350, 4294901760
    %2352 = vmatpush1.msra.mxu0 %v2351
    %v2353 = vand.u32 %v1869, 4294901760
    %v2354 = vsub.f32 %v1869, %v2353
    %v2355 = vand.u32 %v2354, 4294901760
    %2356 = vmatprep.subr.mxu0 %v2355
    %v2357 = vand.u32 %v1868, 4294901760
    %v2358 = vsub.f32 %v1868, %v2357
    %v2359 = vand.u32 %v2358, 4294901760
    %2360 = vmatpush1.msra.mxu0 %v2359
    %2361 = vmatprep.subr.mxu0 0.0
    %2362 = vmatpush1.msra.mxu0 0.0
    %2363 = vmatprep.subr.mxu0 0.0
    %2364 = vmatpush1.msra.mxu0 0.0
    %2365 = vmatprep.subr.mxu0 0.0
    %2366 = vmatpush1.msra.mxu0 0.0
    %2367 = vmatprep.subr.mxu0 0.0
    %2368 = vmatpush1.msra.mxu0 0.0
    %2369 = vmatprep.subr.mxu0 0.0
    %2370 = vmatpush1.msra.mxu0 0.0
    %2371 = vmatprep.subr.mxu0 0.0
    %2372 = vmatpush1.msra.mxu0 0.0
    %2373 = vmatprep.subr.mxu0 0.0
    %2374 = vmatpush1.msra.mxu0 0.0
    %2375 = vmatprep.subr.mxu0 0.0
    %2376 = vmatpush1.msra.mxu0 0.0
    %2377 = vmatprep.subr.mxu0 0.0
    %2378 = vmatpush1.msra.mxu0 0.0
    %2379 = vmatprep.subr.mxu0 0.0
    %2380 = vmatpush1.msra.mxu0 0.0
    %2381 = vmatprep.subr.mxu0 0.0
    %2382 = vmatpush1.msra.mxu0 0.0
    %2383 = vmatprep.subr.mxu0 0.0
    %2384 = vmatpush1.msra.mxu0 0.0
    %2385 = vmatprep.subr.mxu0 0.0
    %2386 = vmatpush1.msra.mxu0 0.0
    %2387 = vmatprep.subr.mxu0 0.0
    %2388 = vmatpush1.msra.mxu0 0.0
    %2389 = vmatprep.subr.mxu0 0.0
    %2390 = vmatpush1.msra.mxu0 0.0
    %2391 = vmatprep.subr.mxu0 0.0
    %2392 = vmatpush1.msra.mxu0 0.0
    %2393 = vmatprep.subr.mxu0 0.0
    %2394 = vmatpush1.msra.mxu0 0.0
    %2395 = vmatprep.subr.mxu0 0.0
    %2396 = vmatpush1.msra.mxu0 0.0
    %2397 = vmatprep.subr.mxu0 0.0
    %2398 = vmatpush1.msra.mxu0 0.0
    %2399 = vmatprep.subr.mxu0 0.0
    %2400 = vmatpush1.msra.mxu0 0.0
    %2401 = vmatprep.subr.mxu0 0.0
    %2402 = vmatpush1.msra.mxu0 0.0
    %2403 = vmatprep.subr.mxu0 0.0
    %2404 = vmatpush1.msra.mxu0 0.0
    %2405 = vmatprep.subr.mxu0 0.0
    %2406 = vmatpush1.msra.mxu0 0.0
    %2407 = vmatprep.subr.mxu0 0.0
    %2408 = vmatpush1.msra.mxu0 0.0
    %2409 = vmatprep.subr.mxu0 0.0
    %2410 = vmatpush1.msra.mxu0 0.0
    %2411 = vmatprep.subr.mxu0 0.0
    %2412 = vmatpush1.msra.mxu0 0.0
    %2413 = vmatprep.mubr.f32.mxu0 0.0
    %v2414 = vand.u32 %v1908, 4294901760
    %2415 = vmatmul.mubr.f32.gmra.mrb[0].mxu0 %v2414
    %v2416 = vpop.f32.mrb[0].mxu0
    %v2417 = vadd.f32 %v2309, %v2416
    %v2418 = vpop.f32.mrb[0].mxu0
    %v2419 = vadd.f32 %v2311, %v2418
    %2420 = vdwg.mxu0
    %v2421 = vand.u32 %v1839, 4294901760
    %2422 = vmatprep.subr.mxu0 %v2421
    %v2423 = vand.u32 %v1838, 4294901760
    %2424 = vmatpush1.msra.mxu0 %v2423
    %v2425 = vand.u32 %v1845, 4294901760
    %2426 = vmatprep.subr.mxu0 %v2425
    %v2427 = vand.u32 %v1844, 4294901760
    %2428 = vmatpush1.msra.mxu0 %v2427
    %v2429 = vand.u32 %v1851, 4294901760
    %2430 = vmatprep.subr.mxu0 %v2429
    %v2431 = vand.u32 %v1850, 4294901760
    %2432 = vmatpush1.msra.mxu0 %v2431
    %v2433 = vand.u32 %v1857, 4294901760
    %2434 = vmatprep.subr.mxu0 %v2433
    %v2435 = vand.u32 %v1856, 4294901760
    %2436 = vmatpush1.msra.mxu0 %v2435
    %v2437 = vand.u32 %v1863, 4294901760
    %2438 = vmatprep.subr.mxu0 %v2437
    %v2439 = vand.u32 %v1862, 4294901760
    %2440 = vmatpush1.msra.mxu0 %v2439
    %v2441 = vand.u32 %v1869, 4294901760
    %2442 = vmatprep.subr.mxu0 %v2441
    %v2443 = vand.u32 %v1868, 4294901760
    %2444 = vmatpush1.msra.mxu0 %v2443
    %2445 = vmatprep.subr.mxu0 0.0
    %2446 = vmatpush1.msra.mxu0 0.0
    %2447 = vmatprep.subr.mxu0 0.0
    %2448 = vmatpush1.msra.mxu0 0.0
    %2449 = vmatprep.subr.mxu0 0.0
    %2450 = vmatpush1.msra.mxu0 0.0
    %2451 = vmatprep.subr.mxu0 0.0
    %2452 = vmatpush1.msra.mxu0 0.0
    %2453 = vmatprep.subr.mxu0 0.0
    %2454 = vmatpush1.msra.mxu0 0.0
    %2455 = vmatprep.subr.mxu0 0.0
    %2456 = vmatpush1.msra.mxu0 0.0
    %2457 = vmatprep.subr.mxu0 0.0
    %2458 = vmatpush1.msra.mxu0 0.0
    %2459 = vmatprep.subr.mxu0 0.0
    %2460 = vmatpush1.msra.mxu0 0.0
    %2461 = vmatprep.subr.mxu0 0.0
    %2462 = vmatpush1.msra.mxu0 0.0
    %2463 = vmatprep.subr.mxu0 0.0
    %2464 = vmatpush1.msra.mxu0 0.0
    %2465 = vmatprep.subr.mxu0 0.0
    %2466 = vmatpush1.msra.mxu0 0.0
    %2467 = vmatprep.subr.mxu0 0.0
    %2468 = vmatpush1.msra.mxu0 0.0
    %2469 = vmatprep.subr.mxu0 0.0
    %2470 = vmatpush1.msra.mxu0 0.0
    %2471 = vmatprep.subr.mxu0 0.0
    %2472 = vmatpush1.msra.mxu0 0.0
    %2473 = vmatprep.subr.mxu0 0.0
    %2474 = vmatpush1.msra.mxu0 0.0
    %2475 = vmatprep.subr.mxu0 0.0
    %2476 = vmatpush1.msra.mxu0 0.0
    %2477 = vmatprep.subr.mxu0 0.0
    %2478 = vmatpush1.msra.mxu0 0.0
    %2479 = vmatprep.subr.mxu0 0.0
    %2480 = vmatpush1.msra.mxu0 0.0
    %2481 = vmatprep.subr.mxu0 0.0
    %2482 = vmatpush1.msra.mxu0 0.0
    %2483 = vmatprep.subr.mxu0 0.0
    %2484 = vmatpush1.msra.mxu0 0.0
    %2485 = vmatprep.subr.mxu0 0.0
    %2486 = vmatpush1.msra.mxu0 0.0
    %2487 = vmatprep.subr.mxu0 0.0
    %2488 = vmatpush1.msra.mxu0 0.0
    %2489 = vmatprep.subr.mxu0 0.0
    %2490 = vmatpush1.msra.mxu0 0.0
    %2491 = vmatprep.subr.mxu0 0.0
    %2492 = vmatpush1.msra.mxu0 0.0
    %2493 = vmatprep.subr.mxu0 0.0
    %2494 = vmatpush1.msra.mxu0 0.0
    %2495 = vmatprep.subr.mxu0 0.0
    %2496 = vmatpush1.msra.mxu0 0.0
    %2497 = vmatprep.mubr.f32.mxu0 0.0
    %v2498 = vand.u32 %v1908, 4294901760
    %2499 = vmatmul.mubr.f32.gmra.mrb[0].mxu0 %v2498
    %v2500 = vpop.f32.mrb[0].mxu0
    %v2501 = vadd.f32 %v2417, %v2500
    %v2502 = vpop.f32.mrb[0].mxu0
    %v2503 = vadd.f32 %v2419, %v2502
    %2504 = vdwg.mxu0
    %v2505 = vand.u32 %v1841, 4294901760
    %2506 = vmatprep.subr.mxu0 %v2505
    %v2507 = vand.u32 %v1840, 4294901760
    %2508 = vmatpush1.msra.mxu0 %v2507
    %v2509 = vand.u32 %v1847, 4294901760
    %2510 = vmatprep.subr.mxu0 %v2509
    %v2511 = vand.u32 %v1846, 4294901760
    %2512 = vmatpush1.msra.mxu0 %v2511
    %v2513 = vand.u32 %v1853, 4294901760
    %2514 = vmatprep.subr.mxu0 %v2513
    %v2515 = vand.u32 %v1852, 4294901760
    %2516 = vmatpush1.msra.mxu0 %v2515
    %v2517 = vand.u32 %v1859, 4294901760
    %2518 = vmatprep.subr.mxu0 %v2517
    %v2519 = vand.u32 %v1858, 4294901760
    %2520 = vmatpush1.msra.mxu0 %v2519
    %v2521 = vand.u32 %v1865, 4294901760
    %2522 = vmatprep.subr.mxu0 %v2521
    %v2523 = vand.u32 %v1864, 4294901760
    %2524 = vmatpush1.msra.mxu0 %v2523
    %v2525 = vand.u32 %v1871, 4294901760
    %2526 = vmatprep.subr.mxu0 %v2525
    %v2527 = vand.u32 %v1870, 4294901760
    %2528 = vmatpush1.msra.mxu0 %v2527
    %2529 = vmatprep.subr.mxu0 0.0
    %2530 = vmatpush1.msra.mxu0 0.0
    %2531 = vmatprep.subr.mxu0 0.0
    %2532 = vmatpush1.msra.mxu0 0.0
    %2533 = vmatprep.subr.mxu0 0.0
    %2534 = vmatpush1.msra.mxu0 0.0
    %2535 = vmatprep.subr.mxu0 0.0
    %2536 = vmatpush1.msra.mxu0 0.0
    %2537 = vmatprep.subr.mxu0 0.0
    %2538 = vmatpush1.msra.mxu0 0.0
    %2539 = vmatprep.subr.mxu0 0.0
    %2540 = vmatpush1.msra.mxu0 0.0
    %2541 = vmatprep.subr.mxu0 0.0
    %2542 = vmatpush1.msra.mxu0 0.0
    %2543 = vmatprep.subr.mxu0 0.0
    %2544 = vmatpush1.msra.mxu0 0.0
    %2545 = vmatprep.subr.mxu0 0.0
    %2546 = vmatpush1.msra.mxu0 0.0
    %2547 = vmatprep.subr.mxu0 0.0
    %2548 = vmatpush1.msra.mxu0 0.0
    %2549 = vmatprep.subr.mxu0 0.0
    %2550 = vmatpush1.msra.mxu0 0.0
    %2551 = vmatprep.subr.mxu0 0.0
    %2552 = vmatpush1.msra.mxu0 0.0
    %2553 = vmatprep.subr.mxu0 0.0
    %2554 = vmatpush1.msra.mxu0 0.0
    %2555 = vmatprep.subr.mxu0 0.0
    %2556 = vmatpush1.msra.mxu0 0.0
    %2557 = vmatprep.subr.mxu0 0.0
    %2558 = vmatpush1.msra.mxu0 0.0
    %2559 = vmatprep.subr.mxu0 0.0
    %2560 = vmatpush1.msra.mxu0 0.0
    %2561 = vmatprep.subr.mxu0 0.0
    %2562 = vmatpush1.msra.mxu0 0.0
    %2563 = vmatprep.subr.mxu0 0.0
    %2564 = vmatpush1.msra.mxu0 0.0
    %2565 = vmatprep.subr.mxu0 0.0
    %2566 = vmatpush1.msra.mxu0 0.0
    %2567 = vmatprep.subr.mxu0 0.0
    %2568 = vmatpush1.msra.mxu0 0.0
    %2569 = vmatprep.subr.mxu0 0.0
    %2570 = vmatpush1.msra.mxu0 0.0
    %2571 = vmatprep.subr.mxu0 0.0
    %2572 = vmatpush1.msra.mxu0 0.0
    %2573 = vmatprep.subr.mxu0 0.0
    %2574 = vmatpush1.msra.mxu0 0.0
    %2575 = vmatprep.subr.mxu0 0.0
    %2576 = vmatpush1.msra.mxu0 0.0
    %2577 = vmatprep.subr.mxu0 0.0
    %2578 = vmatpush1.msra.mxu0 0.0
    %2579 = vmatprep.subr.mxu0 0.0
    %2580 = vmatpush1.msra.mxu0 0.0
    %2581 = vmatprep.mubr.f32.mxu0 0.0
    %v2582 = vand.u32 %v1908, 4294901760
    %v2583 = vsub.f32 %v1908, %v2582
    %v2584 = vand.u32 %v2583, 4294901760
    %v2585 = vsub.f32 %v2583, %v2584
    %v2586 = vand.u32 %v2585, 4294901760
    %2587 = vmatmul.mubr.f32.gmra.mrb[0].mxu0 %v2586
    %v2588 = vpop.f32.mrb[0].mxu0
    %v2589 = vadd.f32 %v1887, %v2588
    %v2590 = vpop.f32.mrb[0].mxu0
    %v2591 = vadd.f32 %v1891, %v2590
    %2592 = vdwg.mxu0
    %v2593 = vand.u32 %v1841, 4294901760
    %v2594 = vsub.f32 %v1841, %v2593
    %v2595 = vand.u32 %v2594, 4294901760
    %v2596 = vsub.f32 %v2594, %v2595
    %v2597 = vand.u32 %v2596, 4294901760
    %2598 = vmatprep.subr.mxu0 %v2597
    %v2599 = vand.u32 %v1840, 4294901760
    %v2600 = vsub.f32 %v1840, %v2599
    %v2601 = vand.u32 %v2600, 4294901760
    %v2602 = vsub.f32 %v2600, %v2601
    %v2603 = vand.u32 %v2602, 4294901760
    %2604 = vmatpush1.msra.mxu0 %v2603
    %v2605 = vand.u32 %v1847, 4294901760
    %v2606 = vsub.f32 %v1847, %v2605
    %v2607 = vand.u32 %v2606, 4294901760
    %v2608 = vsub.f32 %v2606, %v2607
    %v2609 = vand.u32 %v2608, 4294901760
    %2610 = vmatprep.subr.mxu0 %v2609
    %v2611 = vand.u32 %v1846, 4294901760
    %v2612 = vsub.f32 %v1846, %v2611
    %v2613 = vand.u32 %v2612, 4294901760
    %v2614 = vsub.f32 %v2612, %v2613
    %v2615 = vand.u32 %v2614, 4294901760
    %2616 = vmatpush1.msra.mxu0 %v2615
    %v2617 = vand.u32 %v1853, 4294901760
    %v2618 = vsub.f32 %v1853, %v2617
    %v2619 = vand.u32 %v2618, 4294901760
    %v2620 = vsub.f32 %v2618, %v2619
    %v2621 = vand.u32 %v2620, 4294901760
    %2622 = vmatprep.subr.mxu0 %v2621
    %v2623 = vand.u32 %v1852, 4294901760
    %v2624 = vsub.f32 %v1852, %v2623
    %v2625 = vand.u32 %v2624, 4294901760
    %v2626 = vsub.f32 %v2624, %v2625
    %v2627 = vand.u32 %v2626, 4294901760
    %2628 = vmatpush1.msra.mxu0 %v2627
    %v2629 = vand.u32 %v1859, 4294901760
    %v2630 = vsub.f32 %v1859, %v2629
    %v2631 = vand.u32 %v2630, 4294901760
    %v2632 = vsub.f32 %v2630, %v2631
    %v2633 = vand.u32 %v2632, 4294901760
    %2634 = vmatprep.subr.mxu0 %v2633
    %v2635 = vand.u32 %v1858, 4294901760
    %v2636 = vsub.f32 %v1858, %v2635
    %v2637 = vand.u32 %v2636, 4294901760
    %v2638 = vsub.f32 %v2636, %v2637
    %v2639 = vand.u32 %v2638, 4294901760
    %2640 = vmatpush1.msra.mxu0 %v2639
    %v2641 = vand.u32 %v1865, 4294901760
    %v2642 = vsub.f32 %v1865, %v2641
    %v2643 = vand.u32 %v2642, 4294901760
    %v2644 = vsub.f32 %v2642, %v2643
    %v2645 = vand.u32 %v2644, 4294901760
    %2646 = vmatprep.subr.mxu0 %v2645
    %v2647 = vand.u32 %v1864, 4294901760
    %v2648 = vsub.f32 %v1864, %v2647
    %v2649 = vand.u32 %v2648, 4294901760
    %v2650 = vsub.f32 %v2648, %v2649
    %v2651 = vand.u32 %v2650, 4294901760
    %2652 = vmatpush1.msra.mxu0 %v2651
    %v2653 = vand.u32 %v1871, 4294901760
    %v2654 = vsub.f32 %v1871, %v2653
    %v2655 = vand.u32 %v2654, 4294901760
    %v2656 = vsub.f32 %v2654, %v2655
    %v2657 = vand.u32 %v2656, 4294901760
    %2658 = vmatprep.subr.mxu0 %v2657
    %v2659 = vand.u32 %v1870, 4294901760
    %v2660 = vsub.f32 %v1870, %v2659
    %v2661 = vand.u32 %v2660, 4294901760
    %v2662 = vsub.f32 %v2660, %v2661
    %v2663 = vand.u32 %v2662, 4294901760
    %2664 = vmatpush1.msra.mxu0 %v2663
    %2665 = vmatprep.subr.mxu0 0.0
    %2666 = vmatpush1.msra.mxu0 0.0
    %2667 = vmatprep.subr.mxu0 0.0
    %2668 = vmatpush1.msra.mxu0 0.0
    %2669 = vmatprep.subr.mxu0 0.0
    %2670 = vmatpush1.msra.mxu0 0.0
    %2671 = vmatprep.subr.mxu0 0.0
    %2672 = vmatpush1.msra.mxu0 0.0
    %2673 = vmatprep.subr.mxu0 0.0
    %2674 = vmatpush1.msra.mxu0 0.0
    %2675 = vmatprep.subr.mxu0 0.0
    %2676 = vmatpush1.msra.mxu0 0.0
    %2677 = vmatprep.subr.mxu0 0.0
    %2678 = vmatpush1.msra.mxu0 0.0
    %2679 = vmatprep.subr.mxu0 0.0
    %2680 = vmatpush1.msra.mxu0 0.0
    %2681 = vmatprep.subr.mxu0 0.0
    %2682 = vmatpush1.msra.mxu0 0.0
    %2683 = vmatprep.subr.mxu0 0.0
    %2684 = vmatpush1.msra.mxu0 0.0
    %2685 = vmatprep.subr.mxu0 0.0
    %2686 = vmatpush1.msra.mxu0 0.0
    %2687 = vmatprep.subr.mxu0 0.0
    %2688 = vmatpush1.msra.mxu0 0.0
    %2689 = vmatprep.subr.mxu0 0.0
    %2690 = vmatpush1.msra.mxu0 0.0
    %2691 = vmatprep.subr.mxu0 0.0
    %2692 = vmatpush1.msra.mxu0 0.0
    %2693 = vmatprep.subr.mxu0 0.0
    %2694 = vmatpush1.msra.mxu0 0.0
    %2695 = vmatprep.subr.mxu0 0.0
    %2696 = vmatpush1.msra.mxu0 0.0
    %2697 = vmatprep.subr.mxu0 0.0
    %2698 = vmatpush1.msra.mxu0 0.0
    %2699 = vmatprep.subr.mxu0 0.0
    %2700 = vmatpush1.msra.mxu0 0.0
    %2701 = vmatprep.subr.mxu0 0.0
    %2702 = vmatpush1.msra.mxu0 0.0
    %2703 = vmatprep.subr.mxu0 0.0
    %2704 = vmatpush1.msra.mxu0 0.0
    %2705 = vmatprep.subr.mxu0 0.0
    %2706 = vmatpush1.msra.mxu0 0.0
    %2707 = vmatprep.subr.mxu0 0.0
    %2708 = vmatpush1.msra.mxu0 0.0
    %2709 = vmatprep.subr.mxu0 0.0
    %2710 = vmatpush1.msra.mxu0 0.0
    %2711 = vmatprep.subr.mxu0 0.0
    %2712 = vmatpush1.msra.mxu0 0.0
    %2713 = vmatprep.subr.mxu0 0.0
    %2714 = vmatpush1.msra.mxu0 0.0
    %2715 = vmatprep.subr.mxu0 0.0
    %2716 = vmatpush1.msra.mxu0 0.0
    %2717 = vmatprep.mubr.f32.mxu0 0.0
    %v2718 = vand.u32 %v1908, 4294901760
    %2719 = vmatmul.mubr.f32.gmra.mrb[0].mxu0 %v2718
    %v2720 = vpop.f32.mrb[0].mxu0
    %v2721 = vadd.f32 %v2589, %v2720
    %v2722 = vpop.f32.mrb[0].mxu0
    %v2723 = vadd.f32 %v2591, %v2722
    %2724 = vdwg.mxu0
    %v2725 = vand.u32 %v1841, 4294901760
    %v2726 = vsub.f32 %v1841, %v2725
    %2727 = vmatprep.subr.mxu0 %v2726
    %v2728 = vand.u32 %v1840, 4294901760
    %v2729 = vsub.f32 %v1840, %v2728
    %2730 = vmatpush1.msra.mxu0 %v2729
    %v2731 = vand.u32 %v1847, 4294901760
    %v2732 = vsub.f32 %v1847, %v2731
    %2733 = vmatprep.subr.mxu0 %v2732
    %v2734 = vand.u32 %v1846, 4294901760
    %v2735 = vsub.f32 %v1846, %v2734
    %2736 = vmatpush1.msra.mxu0 %v2735
    %v2737 = vand.u32 %v1853, 4294901760
    %v2738 = vsub.f32 %v1853, %v2737
    %2739 = vmatprep.subr.mxu0 %v2738
    %v2740 = vand.u32 %v1852, 4294901760
    %v2741 = vsub.f32 %v1852, %v2740
    %2742 = vmatpush1.msra.mxu0 %v2741
    %v2743 = vand.u32 %v1859, 4294901760
    %v2744 = vsub.f32 %v1859, %v2743
    %2745 = vmatprep.subr.mxu0 %v2744
    %v2746 = vand.u32 %v1858, 4294901760
    %v2747 = vsub.f32 %v1858, %v2746
    %2748 = vmatpush1.msra.mxu0 %v2747
    %v2749 = vand.u32 %v1865, 4294901760
    %v2750 = vsub.f32 %v1865, %v2749
    %2751 = vmatprep.subr.mxu0 %v2750
    %v2752 = vand.u32 %v1864, 4294901760
    %v2753 = vsub.f32 %v1864, %v2752
    %2754 = vmatpush1.msra.mxu0 %v2753
    %v2755 = vand.u32 %v1871, 4294901760
    %v2756 = vsub.f32 %v1871, %v2755
    %2757 = vmatprep.subr.mxu0 %v2756
    %v2758 = vand.u32 %v1870, 4294901760
    %v2759 = vsub.f32 %v1870, %v2758
    %2760 = vmatpush1.msra.mxu0 %v2759
    %2761 = vmatprep.subr.mxu0 0.0
    %2762 = vmatpush1.msra.mxu0 0.0
    %2763 = vmatprep.subr.mxu0 0.0
    %2764 = vmatpush1.msra.mxu0 0.0
    %2765 = vmatprep.subr.mxu0 0.0
    %2766 = vmatpush1.msra.mxu0 0.0
    %2767 = vmatprep.subr.mxu0 0.0
    %2768 = vmatpush1.msra.mxu0 0.0
    %2769 = vmatprep.subr.mxu0 0.0
    %2770 = vmatpush1.msra.mxu0 0.0
    %2771 = vmatprep.subr.mxu0 0.0
    %2772 = vmatpush1.msra.mxu0 0.0
    %2773 = vmatprep.subr.mxu0 0.0
    %2774 = vmatpush1.msra.mxu0 0.0
    %2775 = vmatprep.subr.mxu0 0.0
    %2776 = vmatpush1.msra.mxu0 0.0
    %2777 = vmatprep.subr.mxu0 0.0
    %2778 = vmatpush1.msra.mxu0 0.0
    %2779 = vmatprep.subr.mxu0 0.0
    %2780 = vmatpush1.msra.mxu0 0.0
    %2781 = vmatprep.subr.mxu0 0.0
    %2782 = vmatpush1.msra.mxu0 0.0
    %2783 = vmatprep.subr.mxu0 0.0
    %2784 = vmatpush1.msra.mxu0 0.0
    %2785 = vmatprep.subr.mxu0 0.0
    %2786 = vmatpush1.msra.mxu0 0.0
    %2787 = vmatprep.subr.mxu0 0.0
    %2788 = vmatpush1.msra.mxu0 0.0
    %2789 = vmatprep.subr.mxu0 0.0
    %2790 = vmatpush1.msra.mxu0 0.0
    %2791 = vmatprep.subr.mxu0 0.0
    %2792 = vmatpush1.msra.mxu0 0.0
    %2793 = vmatprep.subr.mxu0 0.0
    %2794 = vmatpush1.msra.mxu0 0.0
    %2795 = vmatprep.subr.mxu0 0.0
    %2796 = vmatpush1.msra.mxu0 0.0
    %2797 = vmatprep.subr.mxu0 0.0
    %2798 = vmatpush1.msra.mxu0 0.0
    %2799 = vmatprep.subr.mxu0 0.0
    %2800 = vmatpush1.msra.mxu0 0.0
    %2801 = vmatprep.subr.mxu0 0.0
    %2802 = vmatpush1.msra.mxu0 0.0
    %2803 = vmatprep.subr.mxu0 0.0
    %2804 = vmatpush1.msra.mxu0 0.0
    %2805 = vmatprep.subr.mxu0 0.0
    %2806 = vmatpush1.msra.mxu0 0.0
    %2807 = vmatprep.subr.mxu0 0.0
    %2808 = vmatpush1.msra.mxu0 0.0
    %2809 = vmatprep.subr.mxu0 0.0
    %2810 = vmatpush1.msra.mxu0 0.0
    %2811 = vmatprep.subr.mxu0 0.0
    %2812 = vmatpush1.msra.mxu0 0.0
    %2813 = vmatprep.mubr.f32.mxu0 0.0
    %v2814 = vand.u32 %v1908, 4294901760
    %v2815 = vsub.f32 %v1908, %v2814
    %2816 = vmatmul.mubr.f32.gmra.mrb[0].mxu0 %v2815
    %v2817 = vpop.f32.mrb[0].mxu0
    %v2818 = vadd.f32 %v2721, %v2817
    %v2819 = vpop.f32.mrb[0].mxu0
    %v2820 = vadd.f32 %v2723, %v2819
    %2821 = vdwg.mxu0
    %v2822 = vand.u32 %v1841, 4294901760
    %2823 = vmatprep.subr.mxu0 %v2822
    %v2824 = vand.u32 %v1840, 4294901760
    %2825 = vmatpush1.msra.mxu0 %v2824
    %v2826 = vand.u32 %v1847, 4294901760
    %2827 = vmatprep.subr.mxu0 %v2826
    %v2828 = vand.u32 %v1846, 4294901760
    %2829 = vmatpush1.msra.mxu0 %v2828
    %v2830 = vand.u32 %v1853, 4294901760
    %2831 = vmatprep.subr.mxu0 %v2830
    %v2832 = vand.u32 %v1852, 4294901760
    %2833 = vmatpush1.msra.mxu0 %v2832
    %v2834 = vand.u32 %v1859, 4294901760
    %2835 = vmatprep.subr.mxu0 %v2834
    %v2836 = vand.u32 %v1858, 4294901760
    %2837 = vmatpush1.msra.mxu0 %v2836
    %v2838 = vand.u32 %v1865, 4294901760
    %2839 = vmatprep.subr.mxu0 %v2838
    %v2840 = vand.u32 %v1864, 4294901760
    %2841 = vmatpush1.msra.mxu0 %v2840
    %v2842 = vand.u32 %v1871, 4294901760
    %2843 = vmatprep.subr.mxu0 %v2842
    %v2844 = vand.u32 %v1870, 4294901760
    %2845 = vmatpush1.msra.mxu0 %v2844
    %2846 = vmatprep.subr.mxu0 0.0
    %2847 = vmatpush1.msra.mxu0 0.0
    %2848 = vmatprep.subr.mxu0 0.0
    %2849 = vmatpush1.msra.mxu0 0.0
    %2850 = vmatprep.subr.mxu0 0.0
    %2851 = vmatpush1.msra.mxu0 0.0
    %2852 = vmatprep.subr.mxu0 0.0
    %2853 = vmatpush1.msra.mxu0 0.0
    %2854 = vmatprep.subr.mxu0 0.0
    %2855 = vmatpush1.msra.mxu0 0.0
    %2856 = vmatprep.subr.mxu0 0.0
    %2857 = vmatpush1.msra.mxu0 0.0
    %2858 = vmatprep.subr.mxu0 0.0
    %2859 = vmatpush1.msra.mxu0 0.0
    %2860 = vmatprep.subr.mxu0 0.0
    %2861 = vmatpush1.msra.mxu0 0.0
    %2862 = vmatprep.subr.mxu0 0.0
    %2863 = vmatpush1.msra.mxu0 0.0
    %2864 = vmatprep.subr.mxu0 0.0
    %2865 = vmatpush1.msra.mxu0 0.0
    %2866 = vmatprep.subr.mxu0 0.0
    %2867 = vmatpush1.msra.mxu0 0.0
    %2868 = vmatprep.subr.mxu0 0.0
    %2869 = vmatpush1.msra.mxu0 0.0
    %2870 = vmatprep.subr.mxu0 0.0
    %2871 = vmatpush1.msra.mxu0 0.0
    %2872 = vmatprep.subr.mxu0 0.0
    %2873 = vmatpush1.msra.mxu0 0.0
    %2874 = vmatprep.subr.mxu0 0.0
    %2875 = vmatpush1.msra.mxu0 0.0
    %2876 = vmatprep.subr.mxu0 0.0
    %2877 = vmatpush1.msra.mxu0 0.0
    %2878 = vmatprep.subr.mxu0 0.0
    %2879 = vmatpush1.msra.mxu0 0.0
    %2880 = vmatprep.subr.mxu0 0.0
    %2881 = vmatpush1.msra.mxu0 0.0
    %2882 = vmatprep.subr.mxu0 0.0
    %2883 = vmatpush1.msra.mxu0 0.0
    %2884 = vmatprep.subr.mxu0 0.0
    %2885 = vmatpush1.msra.mxu0 0.0
    %2886 = vmatprep.subr.mxu0 0.0
    %2887 = vmatpush1.msra.mxu0 0.0
    %2888 = vmatprep.subr.mxu0 0.0
    %2889 = vmatpush1.msra.mxu0 0.0
    %2890 = vmatprep.subr.mxu0 0.0
    %2891 = vmatpush1.msra.mxu0 0.0
    %2892 = vmatprep.subr.mxu0 0.0
    %2893 = vmatpush1.msra.mxu0 0.0
    %2894 = vmatprep.subr.mxu0 0.0
    %2895 = vmatpush1.msra.mxu0 0.0
    %2896 = vmatprep.subr.mxu0 0.0
    %2897 = vmatpush1.msra.mxu0 0.0
    %2898 = vmatprep.mubr.f32.mxu0 0.0
    %v2899 = vand.u32 %v1908, 4294901760
    %v2900 = vsub.f32 %v1908, %v2899
    %v2901 = vand.u32 %v2900, 4294901760
    %2902 = vmatmul.mubr.f32.gmra.mrb[0].mxu0 %v2901
    %v2903 = vpop.f32.mrb[0].mxu0
    %v2904 = vadd.f32 %v2818, %v2903
    %v2905 = vpop.f32.mrb[0].mxu0
    %v2906 = vadd.f32 %v2820, %v2905
    %2907 = vdwg.mxu0
    %v2908 = vand.u32 %v1841, 4294901760
    %v2909 = vsub.f32 %v1841, %v2908
    %v2910 = vand.u32 %v2909, 4294901760
    %2911 = vmatprep.subr.mxu0 %v2910
    %v2912 = vand.u32 %v1840, 4294901760
    %v2913 = vsub.f32 %v1840, %v2912
    %v2914 = vand.u32 %v2913, 4294901760
    %2915 = vmatpush1.msra.mxu0 %v2914
    %v2916 = vand.u32 %v1847, 4294901760
    %v2917 = vsub.f32 %v1847, %v2916
    %v2918 = vand.u32 %v2917, 4294901760
    %2919 = vmatprep.subr.mxu0 %v2918
    %v2920 = vand.u32 %v1846, 4294901760
    %v2921 = vsub.f32 %v1846, %v2920
    %v2922 = vand.u32 %v2921, 4294901760
    %2923 = vmatpush1.msra.mxu0 %v2922
    %v2924 = vand.u32 %v1853, 4294901760
    %v2925 = vsub.f32 %v1853, %v2924
    %v2926 = vand.u32 %v2925, 4294901760
    %2927 = vmatprep.subr.mxu0 %v2926
    %v2928 = vand.u32 %v1852, 4294901760
    %v2929 = vsub.f32 %v1852, %v2928
    %v2930 = vand.u32 %v2929, 4294901760
    %2931 = vmatpush1.msra.mxu0 %v2930
    %v2932 = vand.u32 %v1859, 4294901760
    %v2933 = vsub.f32 %v1859, %v2932
    %v2934 = vand.u32 %v2933, 4294901760
    %2935 = vmatprep.subr.mxu0 %v2934
    %v2936 = vand.u32 %v1858, 4294901760
    %v2937 = vsub.f32 %v1858, %v2936
    %v2938 = vand.u32 %v2937, 4294901760
    %2939 = vmatpush1.msra.mxu0 %v2938
    %v2940 = vand.u32 %v1865, 4294901760
    %v2941 = vsub.f32 %v1865, %v2940
    %v2942 = vand.u32 %v2941, 4294901760
    %2943 = vmatprep.subr.mxu0 %v2942
    %v2944 = vand.u32 %v1864, 4294901760
    %v2945 = vsub.f32 %v1864, %v2944
    %v2946 = vand.u32 %v2945, 4294901760
    %2947 = vmatpush1.msra.mxu0 %v2946
    %v2948 = vand.u32 %v1871, 4294901760
    %v2949 = vsub.f32 %v1871, %v2948
    %v2950 = vand.u32 %v2949, 4294901760
    %2951 = vmatprep.subr.mxu0 %v2950
    %v2952 = vand.u32 %v1870, 4294901760
    %v2953 = vsub.f32 %v1870, %v2952
    %v2954 = vand.u32 %v2953, 4294901760
    %2955 = vmatpush1.msra.mxu0 %v2954
    %2956 = vmatprep.subr.mxu0 0.0
    %2957 = vmatpush1.msra.mxu0 0.0
    %2958 = vmatprep.subr.mxu0 0.0
    %2959 = vmatpush1.msra.mxu0 0.0
    %2960 = vmatprep.subr.mxu0 0.0
    %2961 = vmatpush1.msra.mxu0 0.0
    %2962 = vmatprep.subr.mxu0 0.0
    %2963 = vmatpush1.msra.mxu0 0.0
    %2964 = vmatprep.subr.mxu0 0.0
    %2965 = vmatpush1.msra.mxu0 0.0
    %2966 = vmatprep.subr.mxu0 0.0
    %2967 = vmatpush1.msra.mxu0 0.0
    %2968 = vmatprep.subr.mxu0 0.0
    %2969 = vmatpush1.msra.mxu0 0.0
    %2970 = vmatprep.subr.mxu0 0.0
    %2971 = vmatpush1.msra.mxu0 0.0
    %2972 = vmatprep.subr.mxu0 0.0
    %2973 = vmatpush1.msra.mxu0 0.0
    %2974 = vmatprep.subr.mxu0 0.0
    %2975 = vmatpush1.msra.mxu0 0.0
    %2976 = vmatprep.subr.mxu0 0.0
    %2977 = vmatpush1.msra.mxu0 0.0
    %2978 = vmatprep.subr.mxu0 0.0
    %2979 = vmatpush1.msra.mxu0 0.0
    %2980 = vmatprep.subr.mxu0 0.0
    %2981 = vmatpush1.msra.mxu0 0.0
    %2982 = vmatprep.subr.mxu0 0.0
    %2983 = vmatpush1.msra.mxu0 0.0
    %2984 = vmatprep.subr.mxu0 0.0
    %2985 = vmatpush1.msra.mxu0 0.0
    %2986 = vmatprep.subr.mxu0 0.0
    %2987 = vmatpush1.msra.mxu0 0.0
    %2988 = vmatprep.subr.mxu0 0.0
    %2989 = vmatpush1.msra.mxu0 0.0
    %2990 = vmatprep.subr.mxu0 0.0
    %2991 = vmatpush1.msra.mxu0 0.0
    %2992 = vmatprep.subr.mxu0 0.0
    %2993 = vmatpush1.msra.mxu0 0.0
    %2994 = vmatprep.subr.mxu0 0.0
    %2995 = vmatpush1.msra.mxu0 0.0
    %2996 = vmatprep.subr.mxu0 0.0
    %2997 = vmatpush1.msra.mxu0 0.0
    %2998 = vmatprep.subr.mxu0 0.0
    %2999 = vmatpush1.msra.mxu0 0.0
    %3000 = vmatprep.subr.mxu0 0.0
    %3001 = vmatpush1.msra.mxu0 0.0
    %3002 = vmatprep.subr.mxu0 0.0
    %3003 = vmatpush1.msra.mxu0 0.0
    %3004 = vmatprep.subr.mxu0 0.0
    %3005 = vmatpush1.msra.mxu0 0.0
    %3006 = vmatprep.subr.mxu0 0.0
    %3007 = vmatpush1.msra.mxu0 0.0
    %3008 = vmatprep.mubr.f32.mxu0 0.0
    %v3009 = vand.u32 %v1908, 4294901760
    %3010 = vmatmul.mubr.f32.gmra.mrb[0].mxu0 %v3009
    %v3011 = vpop.f32.mrb[0].mxu0
    %v3012 = vadd.f32 %v2904, %v3011
    %v3013 = vpop.f32.mrb[0].mxu0
    %v3014 = vadd.f32 %v2906, %v3013
    %3015 = vdwg.mxu0
    %v3016 = vand.u32 %v1841, 4294901760
    %3017 = vmatprep.subr.mxu0 %v3016
    %v3018 = vand.u32 %v1840, 4294901760
    %3019 = vmatpush1.msra.mxu0 %v3018
    %v3020 = vand.u32 %v1847, 4294901760
    %3021 = vmatprep.subr.mxu0 %v3020
    %v3022 = vand.u32 %v1846, 4294901760
    %3023 = vmatpush1.msra.mxu0 %v3022
    %v3024 = vand.u32 %v1853, 4294901760
    %3025 = vmatprep.subr.mxu0 %v3024
    %v3026 = vand.u32 %v1852, 4294901760
    %3027 = vmatpush1.msra.mxu0 %v3026
    %v3028 = vand.u32 %v1859, 4294901760
    %3029 = vmatprep.subr.mxu0 %v3028
    %v3030 = vand.u32 %v1858, 4294901760
    %3031 = vmatpush1.msra.mxu0 %v3030
    %v3032 = vand.u32 %v1865, 4294901760
    %3033 = vmatprep.subr.mxu0 %v3032
    %v3034 = vand.u32 %v1864, 4294901760
    %3035 = vmatpush1.msra.mxu0 %v3034
    %v3036 = vand.u32 %v1871, 4294901760
    %3037 = vmatprep.subr.mxu0 %v3036
    %v3038 = vand.u32 %v1870, 4294901760
    %3039 = vmatpush1.msra.mxu0 %v3038
    %3040 = vmatprep.subr.mxu0 0.0
    %3041 = vmatpush1.msra.mxu0 0.0
    %3042 = vmatprep.subr.mxu0 0.0
    %3043 = vmatpush1.msra.mxu0 0.0
    %3044 = vmatprep.subr.mxu0 0.0
    %3045 = vmatpush1.msra.mxu0 0.0
    %3046 = vmatprep.subr.mxu0 0.0
    %3047 = vmatpush1.msra.mxu0 0.0
    %3048 = vmatprep.subr.mxu0 0.0
    %3049 = vmatpush1.msra.mxu0 0.0
    %3050 = vmatprep.subr.mxu0 0.0
    %3051 = vmatpush1.msra.mxu0 0.0
    %3052 = vmatprep.subr.mxu0 0.0
    %3053 = vmatpush1.msra.mxu0 0.0
    %3054 = vmatprep.subr.mxu0 0.0
    %3055 = vmatpush1.msra.mxu0 0.0
    %3056 = vmatprep.subr.mxu0 0.0
    %3057 = vmatpush1.msra.mxu0 0.0
    %3058 = vmatprep.subr.mxu0 0.0
    %3059 = vmatpush1.msra.mxu0 0.0
    %3060 = vmatprep.subr.mxu0 0.0
    %3061 = vmatpush1.msra.mxu0 0.0
    %3062 = vmatprep.subr.mxu0 0.0
    %3063 = vmatpush1.msra.mxu0 0.0
    %3064 = vmatprep.subr.mxu0 0.0
    %3065 = vmatpush1.msra.mxu0 0.0
    %3066 = vmatprep.subr.mxu0 0.0
    %3067 = vmatpush1.msra.mxu0 0.0
    %3068 = vmatprep.subr.mxu0 0.0
    %3069 = vmatpush1.msra.mxu0 0.0
    %3070 = vmatprep.subr.mxu0 0.0
    %3071 = vmatpush1.msra.mxu0 0.0
    %3072 = vmatprep.subr.mxu0 0.0
    %3073 = vmatpush1.msra.mxu0 0.0
    %3074 = vmatprep.subr.mxu0 0.0
    %3075 = vmatpush1.msra.mxu0 0.0
    %3076 = vmatprep.subr.mxu0 0.0
    %3077 = vmatpush1.msra.mxu0 0.0
    %3078 = vmatprep.subr.mxu0 0.0
    %3079 = vmatpush1.msra.mxu0 0.0
    %3080 = vmatprep.subr.mxu0 0.0
    %3081 = vmatpush1.msra.mxu0 0.0
    %3082 = vmatprep.subr.mxu0 0.0
    %3083 = vmatpush1.msra.mxu0 0.0
    %3084 = vmatprep.subr.mxu0 0.0
    %3085 = vmatpush1.msra.mxu0 0.0
    %3086 = vmatprep.subr.mxu0 0.0
    %3087 = vmatpush1.msra.mxu0 0.0
    %3088 = vmatprep.subr.mxu0 0.0
    %3089 = vmatpush1.msra.mxu0 0.0
    %3090 = vmatprep.subr.mxu0 0.0
    %3091 = vmatpush1.msra.mxu0 0.0
    %3092 = vmatprep.mubr.f32.mxu0 0.0
    %v3093 = vand.u32 %v1908, 4294901760
    %3094 = vmatmul.mubr.f32.gmra.mrb[0].mxu0 %v3093
    %v3095 = vpop.f32.mrb[0].mxu0
    %v3096 = vadd.f32 %v3012, %v3095
    %v3097 = vpop.f32.mrb[0].mxu0
    %v3098 = vadd.f32 %v3014, %v3097
    %3099 = vdwg.mxu0
    %v3100 = vand.u32 %v1843, 4294901760
    %3101 = vmatprep.subr.mxu0 %v3100
    %v3102 = vand.u32 %v1842, 4294901760
    %3103 = vmatpush1.msra.mxu0 %v3102
    %v3104 = vand.u32 %v1849, 4294901760
    %3105 = vmatprep.subr.mxu0 %v3104
    %v3106 = vand.u32 %v1848, 4294901760
    %3107 = vmatpush1.msra.mxu0 %v3106
    %v3108 = vand.u32 %v1855, 4294901760
    %3109 = vmatprep.subr.mxu0 %v3108
    %v3110 = vand.u32 %v1854, 4294901760
    %3111 = vmatpush1.msra.mxu0 %v3110
    %v3112 = vand.u32 %v1861, 4294901760
    %3113 = vmatprep.subr.mxu0 %v3112
    %v3114 = vand.u32 %v1860, 4294901760
    %3115 = vmatpush1.msra.mxu0 %v3114
    %v3116 = vand.u32 %v1867, 4294901760
    %3117 = vmatprep.subr.mxu0 %v3116
    %v3118 = vand.u32 %v1866, 4294901760
    %3119 = vmatpush1.msra.mxu0 %v3118
    %v3120 = vand.u32 %v1873, 4294901760
    %3121 = vmatprep.subr.mxu0 %v3120
    %v3122 = vand.u32 %v1872, 4294901760
    %3123 = vmatpush1.msra.mxu0 %v3122
    %3124 = vmatprep.subr.mxu0 0.0
    %3125 = vmatpush1.msra.mxu0 0.0
    %3126 = vmatprep.subr.mxu0 0.0
    %3127 = vmatpush1.msra.mxu0 0.0
    %3128 = vmatprep.subr.mxu0 0.0
    %3129 = vmatpush1.msra.mxu0 0.0
    %3130 = vmatprep.subr.mxu0 0.0
    %3131 = vmatpush1.msra.mxu0 0.0
    %3132 = vmatprep.subr.mxu0 0.0
    %3133 = vmatpush1.msra.mxu0 0.0
    %3134 = vmatprep.subr.mxu0 0.0
    %3135 = vmatpush1.msra.mxu0 0.0
    %3136 = vmatprep.subr.mxu0 0.0
    %3137 = vmatpush1.msra.mxu0 0.0
    %3138 = vmatprep.subr.mxu0 0.0
    %3139 = vmatpush1.msra.mxu0 0.0
    %3140 = vmatprep.subr.mxu0 0.0
    %3141 = vmatpush1.msra.mxu0 0.0
    %3142 = vmatprep.subr.mxu0 0.0
    %3143 = vmatpush1.msra.mxu0 0.0
    %3144 = vmatprep.subr.mxu0 0.0
    %3145 = vmatpush1.msra.mxu0 0.0
    %3146 = vmatprep.subr.mxu0 0.0
    %3147 = vmatpush1.msra.mxu0 0.0
    %3148 = vmatprep.subr.mxu0 0.0
    %3149 = vmatpush1.msra.mxu0 0.0
    %3150 = vmatprep.subr.mxu0 0.0
    %3151 = vmatpush1.msra.mxu0 0.0
    %3152 = vmatprep.subr.mxu0 0.0
    %3153 = vmatpush1.msra.mxu0 0.0
    %3154 = vmatprep.subr.mxu0 0.0
    %3155 = vmatpush1.msra.mxu0 0.0
    %3156 = vmatprep.subr.mxu0 0.0
    %3157 = vmatpush1.msra.mxu0 0.0
    %3158 = vmatprep.subr.mxu0 0.0
    %3159 = vmatpush1.msra.mxu0 0.0
    %3160 = vmatprep.subr.mxu0 0.0
    %3161 = vmatpush1.msra.mxu0 0.0
    %3162 = vmatprep.subr.mxu0 0.0
    %3163 = vmatpush1.msra.mxu0 0.0
    %3164 = vmatprep.subr.mxu0 0.0
    %3165 = vmatpush1.msra.mxu0 0.0
    %3166 = vmatprep.subr.mxu0 0.0
    %3167 = vmatpush1.msra.mxu0 0.0
    %3168 = vmatprep.subr.mxu0 0.0
    %3169 = vmatpush1.msra.mxu0 0.0
    %3170 = vmatprep.subr.mxu0 0.0
    %3171 = vmatpush1.msra.mxu0 0.0
    %3172 = vmatprep.subr.mxu0 0.0
    %3173 = vmatpush1.msra.mxu0 0.0
    %3174 = vmatprep.subr.mxu0 0.0
    %3175 = vmatpush1.msra.mxu0 0.0
    %3176 = vmatprep.mubr.f32.mxu0 0.0
    %v3177 = vand.u32 %v1908, 4294901760
    %v3178 = vsub.f32 %v1908, %v3177
    %v3179 = vand.u32 %v3178, 4294901760
    %v3180 = vsub.f32 %v3178, %v3179
    %v3181 = vand.u32 %v3180, 4294901760
    %3182 = vmatmul.mubr.f32.gmra.mrb[0].mxu0 %v3181
    %v3183 = vpop.f32.mrb[0].mxu0
    %v3184 = vadd.f32 %v1895, %v3183
    %v3185 = vpop.f32.mrb[0].mxu0
    %v3186 = vadd.f32 %v1899, %v3185
    %3187 = vdwg.mxu0
    %v3188 = vand.u32 %v1843, 4294901760
    %v3189 = vsub.f32 %v1843, %v3188
    %v3190 = vand.u32 %v3189, 4294901760
    %v3191 = vsub.f32 %v3189, %v3190
    %v3192 = vand.u32 %v3191, 4294901760
    %3193 = vmatprep.subr.mxu0 %v3192
    %v3194 = vand.u32 %v1842, 4294901760
    %v3195 = vsub.f32 %v1842, %v3194
    %v3196 = vand.u32 %v3195, 4294901760
    %v3197 = vsub.f32 %v3195, %v3196
    %v3198 = vand.u32 %v3197, 4294901760
    %3199 = vmatpush1.msra.mxu0 %v3198
    %v3200 = vand.u32 %v1849, 4294901760
    %v3201 = vsub.f32 %v1849, %v3200
    %v3202 = vand.u32 %v3201, 4294901760
    %v3203 = vsub.f32 %v3201, %v3202
    %v3204 = vand.u32 %v3203, 4294901760
    %3205 = vmatprep.subr.mxu0 %v3204
    %v3206 = vand.u32 %v1848, 4294901760
    %v3207 = vsub.f32 %v1848, %v3206
    %v3208 = vand.u32 %v3207, 4294901760
    %v3209 = vsub.f32 %v3207, %v3208
    %v3210 = vand.u32 %v3209, 4294901760
    %3211 = vmatpush1.msra.mxu0 %v3210
    %v3212 = vand.u32 %v1855, 4294901760
    %v3213 = vsub.f32 %v1855, %v3212
    %v3214 = vand.u32 %v3213, 4294901760
    %v3215 = vsub.f32 %v3213, %v3214
    %v3216 = vand.u32 %v3215, 4294901760
    %3217 = vmatprep.subr.mxu0 %v3216
    %v3218 = vand.u32 %v1854, 4294901760
    %v3219 = vsub.f32 %v1854, %v3218
    %v3220 = vand.u32 %v3219, 4294901760
    %v3221 = vsub.f32 %v3219, %v3220
    %v3222 = vand.u32 %v3221, 4294901760
    %3223 = vmatpush1.msra.mxu0 %v3222
    %v3224 = vand.u32 %v1861, 4294901760
    %v3225 = vsub.f32 %v1861, %v3224
    %v3226 = vand.u32 %v3225, 4294901760
    %v3227 = vsub.f32 %v3225, %v3226
    %v3228 = vand.u32 %v3227, 4294901760
    %3229 = vmatprep.subr.mxu0 %v3228
    %v3230 = vand.u32 %v1860, 4294901760
    %v3231 = vsub.f32 %v1860, %v3230
    %v3232 = vand.u32 %v3231, 4294901760
    %v3233 = vsub.f32 %v3231, %v3232
    %v3234 = vand.u32 %v3233, 4294901760
    %3235 = vmatpush1.msra.mxu0 %v3234
    %v3236 = vand.u32 %v1867, 4294901760
    %v3237 = vsub.f32 %v1867, %v3236
    %v3238 = vand.u32 %v3237, 4294901760
    %v3239 = vsub.f32 %v3237, %v3238
    %v3240 = vand.u32 %v3239, 4294901760
    %3241 = vmatprep.subr.mxu0 %v3240
    %v3242 = vand.u32 %v1866, 4294901760
    %v3243 = vsub.f32 %v1866, %v3242
    %v3244 = vand.u32 %v3243, 4294901760
    %v3245 = vsub.f32 %v3243, %v3244
    %v3246 = vand.u32 %v3245, 4294901760
    %3247 = vmatpush1.msra.mxu0 %v3246
    %v3248 = vand.u32 %v1873, 4294901760
    %v3249 = vsub.f32 %v1873, %v3248
    %v3250 = vand.u32 %v3249, 4294901760
    %v3251 = vsub.f32 %v3249, %v3250
    %v3252 = vand.u32 %v3251, 4294901760
    %3253 = vmatprep.subr.mxu0 %v3252
    %v3254 = vand.u32 %v1872, 4294901760
    %v3255 = vsub.f32 %v1872, %v3254
    %v3256 = vand.u32 %v3255, 4294901760
    %v3257 = vsub.f32 %v3255, %v3256
    %v3258 = vand.u32 %v3257, 4294901760
    %3259 = vmatpush1.msra.mxu0 %v3258
    %3260 = vmatprep.subr.mxu0 0.0
    %3261 = vmatpush1.msra.mxu0 0.0
    %3262 = vmatprep.subr.mxu0 0.0
    %3263 = vmatpush1.msra.mxu0 0.0
    %3264 = vmatprep.subr.mxu0 0.0
    %3265 = vmatpush1.msra.mxu0 0.0
    %3266 = vmatprep.subr.mxu0 0.0
    %3267 = vmatpush1.msra.mxu0 0.0
    %3268 = vmatprep.subr.mxu0 0.0
    %3269 = vmatpush1.msra.mxu0 0.0
    %3270 = vmatprep.subr.mxu0 0.0
    %3271 = vmatpush1.msra.mxu0 0.0
    %3272 = vmatprep.subr.mxu0 0.0
    %3273 = vmatpush1.msra.mxu0 0.0
    %3274 = vmatprep.subr.mxu0 0.0
    %3275 = vmatpush1.msra.mxu0 0.0
    %3276 = vmatprep.subr.mxu0 0.0
    %3277 = vmatpush1.msra.mxu0 0.0
    %3278 = vmatprep.subr.mxu0 0.0
    %3279 = vmatpush1.msra.mxu0 0.0
    %3280 = vmatprep.subr.mxu0 0.0
    %3281 = vmatpush1.msra.mxu0 0.0
    %3282 = vmatprep.subr.mxu0 0.0
    %3283 = vmatpush1.msra.mxu0 0.0
    %3284 = vmatprep.subr.mxu0 0.0
    %3285 = vmatpush1.msra.mxu0 0.0
    %3286 = vmatprep.subr.mxu0 0.0
    %3287 = vmatpush1.msra.mxu0 0.0
    %3288 = vmatprep.subr.mxu0 0.0
    %3289 = vmatpush1.msra.mxu0 0.0
    %3290 = vmatprep.subr.mxu0 0.0
    %3291 = vmatpush1.msra.mxu0 0.0
    %3292 = vmatprep.subr.mxu0 0.0
    %3293 = vmatpush1.msra.mxu0 0.0
    %3294 = vmatprep.subr.mxu0 0.0
    %3295 = vmatpush1.msra.mxu0 0.0
    %3296 = vmatprep.subr.mxu0 0.0
    %3297 = vmatpush1.msra.mxu0 0.0
    %3298 = vmatprep.subr.mxu0 0.0
    %3299 = vmatpush1.msra.mxu0 0.0
    %3300 = vmatprep.subr.mxu0 0.0
    %3301 = vmatpush1.msra.mxu0 0.0
    %3302 = vmatprep.subr.mxu0 0.0
    %3303 = vmatpush1.msra.mxu0 0.0
    %3304 = vmatprep.subr.mxu0 0.0
    %3305 = vmatpush1.msra.mxu0 0.0
    %3306 = vmatprep.subr.mxu0 0.0
    %3307 = vmatpush1.msra.mxu0 0.0
    %3308 = vmatprep.subr.mxu0 0.0
    %3309 = vmatpush1.msra.mxu0 0.0
    %3310 = vmatprep.subr.mxu0 0.0
    %3311 = vmatpush1.msra.mxu0 0.0
    %3312 = vmatprep.mubr.f32.mxu0 0.0
    %v3313 = vand.u32 %v1908, 4294901760
    %3314 = vmatmul.mubr.f32.gmra.mrb[0].mxu0 %v3313
    %v3315 = vpop.f32.mrb[0].mxu0
    %v3316 = vadd.f32 %v3184, %v3315
    %v3317 = vpop.f32.mrb[0].mxu0
    %v3318 = vadd.f32 %v3186, %v3317
    %3319 = vdwg.mxu0
    %v3320 = vand.u32 %v1843, 4294901760
    %v3321 = vsub.f32 %v1843, %v3320
    %3322 = vmatprep.subr.mxu0 %v3321
    %v3323 = vand.u32 %v1842, 4294901760
    %v3324 = vsub.f32 %v1842, %v3323
    %3325 = vmatpush1.msra.mxu0 %v3324
    %v3326 = vand.u32 %v1849, 4294901760
    %v3327 = vsub.f32 %v1849, %v3326
    %3328 = vmatprep.subr.mxu0 %v3327
    %v3329 = vand.u32 %v1848, 4294901760
    %v3330 = vsub.f32 %v1848, %v3329
    %3331 = vmatpush1.msra.mxu0 %v3330
    %v3332 = vand.u32 %v1855, 4294901760
    %v3333 = vsub.f32 %v1855, %v3332
    %3334 = vmatprep.subr.mxu0 %v3333
    %v3335 = vand.u32 %v1854, 4294901760
    %v3336 = vsub.f32 %v1854, %v3335
    %3337 = vmatpush1.msra.mxu0 %v3336
    %v3338 = vand.u32 %v1861, 4294901760
    %v3339 = vsub.f32 %v1861, %v3338
    %3340 = vmatprep.subr.mxu0 %v3339
    %v3341 = vand.u32 %v1860, 4294901760
    %v3342 = vsub.f32 %v1860, %v3341
    %3343 = vmatpush1.msra.mxu0 %v3342
    %v3344 = vand.u32 %v1867, 4294901760
    %v3345 = vsub.f32 %v1867, %v3344
    %3346 = vmatprep.subr.mxu0 %v3345
    %v3347 = vand.u32 %v1866, 4294901760
    %v3348 = vsub.f32 %v1866, %v3347
    %3349 = vmatpush1.msra.mxu0 %v3348
    %v3350 = vand.u32 %v1873, 4294901760
    %v3351 = vsub.f32 %v1873, %v3350
    %3352 = vmatprep.subr.mxu0 %v3351
    %v3353 = vand.u32 %v1872, 4294901760
    %v3354 = vsub.f32 %v1872, %v3353
    %3355 = vmatpush1.msra.mxu0 %v3354
    %3356 = vmatprep.subr.mxu0 0.0
    %3357 = vmatpush1.msra.mxu0 0.0
    %3358 = vmatprep.subr.mxu0 0.0
    %3359 = vmatpush1.msra.mxu0 0.0
    %3360 = vmatprep.subr.mxu0 0.0
    %3361 = vmatpush1.msra.mxu0 0.0
    %3362 = vmatprep.subr.mxu0 0.0
    %3363 = vmatpush1.msra.mxu0 0.0
    %3364 = vmatprep.subr.mxu0 0.0
    %3365 = vmatpush1.msra.mxu0 0.0
    %3366 = vmatprep.subr.mxu0 0.0
    %3367 = vmatpush1.msra.mxu0 0.0
    %3368 = vmatprep.subr.mxu0 0.0
    %3369 = vmatpush1.msra.mxu0 0.0
    %3370 = vmatprep.subr.mxu0 0.0
    %3371 = vmatpush1.msra.mxu0 0.0
    %3372 = vmatprep.subr.mxu0 0.0
    %3373 = vmatpush1.msra.mxu0 0.0
    %3374 = vmatprep.subr.mxu0 0.0
    %3375 = vmatpush1.msra.mxu0 0.0
    %3376 = vmatprep.subr.mxu0 0.0
    %3377 = vmatpush1.msra.mxu0 0.0
    %3378 = vmatprep.subr.mxu0 0.0
    %3379 = vmatpush1.msra.mxu0 0.0
    %3380 = vmatprep.subr.mxu0 0.0
    %3381 = vmatpush1.msra.mxu0 0.0
    %3382 = vmatprep.subr.mxu0 0.0
    %3383 = vmatpush1.msra.mxu0 0.0
    %3384 = vmatprep.subr.mxu0 0.0
    %3385 = vmatpush1.msra.mxu0 0.0
    %3386 = vmatprep.subr.mxu0 0.0
    %3387 = vmatpush1.msra.mxu0 0.0
    %3388 = vmatprep.subr.mxu0 0.0
    %3389 = vmatpush1.msra.mxu0 0.0
    %3390 = vmatprep.subr.mxu0 0.0
    %3391 = vmatpush1.msra.mxu0 0.0
    %3392 = vmatprep.subr.mxu0 0.0
    %3393 = vmatpush1.msra.mxu0 0.0
    %3394 = vmatprep.subr.mxu0 0.0
    %3395 = vmatpush1.msra.mxu0 0.0
    %3396 = vmatprep.subr.mxu0 0.0
    %3397 = vmatpush1.msra.mxu0 0.0
    %3398 = vmatprep.subr.mxu0 0.0
    %3399 = vmatpush1.msra.mxu0 0.0
    %3400 = vmatprep.subr.mxu0 0.0
    %3401 = vmatpush1.msra.mxu0 0.0
    %3402 = vmatprep.subr.mxu0 0.0
    %3403 = vmatpush1.msra.mxu0 0.0
    %3404 = vmatprep.subr.mxu0 0.0
    %3405 = vmatpush1.msra.mxu0 0.0
    %3406 = vmatprep.subr.mxu0 0.0
    %3407 = vmatpush1.msra.mxu0 0.0
    %3408 = vmatprep.mubr.f32.mxu0 0.0
    %v3409 = vand.u32 %v1908, 4294901760
    %v3410 = vsub.f32 %v1908, %v3409
    %3411 = vmatmul.mubr.f32.gmra.mrb[0].mxu0 %v3410
    %v3412 = vpop.f32.mrb[0].mxu0
    %v3413 = vadd.f32 %v3316, %v3412
    %v3414 = vpop.f32.mrb[0].mxu0
    %v3415 = vadd.f32 %v3318, %v3414
    %3416 = vdwg.mxu0
    %v3417 = vand.u32 %v1843, 4294901760
    %3418 = vmatprep.subr.mxu0 %v3417
    %v3419 = vand.u32 %v1842, 4294901760
    %3420 = vmatpush1.msra.mxu0 %v3419
    %v3421 = vand.u32 %v1849, 4294901760
    %3422 = vmatprep.subr.mxu0 %v3421
    %v3423 = vand.u32 %v1848, 4294901760
    %3424 = vmatpush1.msra.mxu0 %v3423
    %v3425 = vand.u32 %v1855, 4294901760
    %3426 = vmatprep.subr.mxu0 %v3425
    %v3427 = vand.u32 %v1854, 4294901760
    %3428 = vmatpush1.msra.mxu0 %v3427
    %v3429 = vand.u32 %v1861, 4294901760
    %3430 = vmatprep.subr.mxu0 %v3429
    %v3431 = vand.u32 %v1860, 4294901760
    %3432 = vmatpush1.msra.mxu0 %v3431
    %v3433 = vand.u32 %v1867, 4294901760
    %3434 = vmatprep.subr.mxu0 %v3433
    %v3435 = vand.u32 %v1866, 4294901760
    %3436 = vmatpush1.msra.mxu0 %v3435
    %v3437 = vand.u32 %v1873, 4294901760
    %3438 = vmatprep.subr.mxu0 %v3437
    %v3439 = vand.u32 %v1872, 4294901760
    %3440 = vmatpush1.msra.mxu0 %v3439
    %3441 = vmatprep.subr.mxu0 0.0
    %3442 = vmatpush1.msra.mxu0 0.0
    %3443 = vmatprep.subr.mxu0 0.0
    %3444 = vmatpush1.msra.mxu0 0.0
    %3445 = vmatprep.subr.mxu0 0.0
    %3446 = vmatpush1.msra.mxu0 0.0
    %3447 = vmatprep.subr.mxu0 0.0
    %3448 = vmatpush1.msra.mxu0 0.0
    %3449 = vmatprep.subr.mxu0 0.0
    %3450 = vmatpush1.msra.mxu0 0.0
    %3451 = vmatprep.subr.mxu0 0.0
    %3452 = vmatpush1.msra.mxu0 0.0
    %3453 = vmatprep.subr.mxu0 0.0
    %3454 = vmatpush1.msra.mxu0 0.0
    %3455 = vmatprep.subr.mxu0 0.0
    %3456 = vmatpush1.msra.mxu0 0.0
    %3457 = vmatprep.subr.mxu0 0.0
    %3458 = vmatpush1.msra.mxu0 0.0
    %3459 = vmatprep.subr.mxu0 0.0
    %3460 = vmatpush1.msra.mxu0 0.0
    %3461 = vmatprep.subr.mxu0 0.0
    %3462 = vmatpush1.msra.mxu0 0.0
    %3463 = vmatprep.subr.mxu0 0.0
    %3464 = vmatpush1.msra.mxu0 0.0
    %3465 = vmatprep.subr.mxu0 0.0
    %3466 = vmatpush1.msra.mxu0 0.0
    %3467 = vmatprep.subr.mxu0 0.0
    %3468 = vmatpush1.msra.mxu0 0.0
    %3469 = vmatprep.subr.mxu0 0.0
    %3470 = vmatpush1.msra.mxu0 0.0
    %3471 = vmatprep.subr.mxu0 0.0
    %3472 = vmatpush1.msra.mxu0 0.0
    %3473 = vmatprep.subr.mxu0 0.0
    %3474 = vmatpush1.msra.mxu0 0.0
    %3475 = vmatprep.subr.mxu0 0.0
    %3476 = vmatpush1.msra.mxu0 0.0
    %3477 = vmatprep.subr.mxu0 0.0
    %3478 = vmatpush1.msra.mxu0 0.0
    %3479 = vmatprep.subr.mxu0 0.0
    %3480 = vmatpush1.msra.mxu0 0.0
    %3481 = vmatprep.subr.mxu0 0.0
    %3482 = vmatpush1.msra.mxu0 0.0
    %3483 = vmatprep.subr.mxu0 0.0
    %3484 = vmatpush1.msra.mxu0 0.0
    %3485 = vmatprep.subr.mxu0 0.0
    %3486 = vmatpush1.msra.mxu0 0.0
    %3487 = vmatprep.subr.mxu0 0.0
    %3488 = vmatpush1.msra.mxu0 0.0
    %3489 = vmatprep.subr.mxu0 0.0
    %3490 = vmatpush1.msra.mxu0 0.0
    %3491 = vmatprep.subr.mxu0 0.0
    %3492 = vmatpush1.msra.mxu0 0.0
    %3493 = vmatprep.mubr.f32.mxu0 0.0
    %v3494 = vand.u32 %v1908, 4294901760
    %v3495 = vsub.f32 %v1908, %v3494
    %v3496 = vand.u32 %v3495, 4294901760
    %3497 = vmatmul.mubr.f32.gmra.mrb[0].mxu0 %v3496
    %v3498 = vpop.f32.mrb[0].mxu0
    %v3499 = vadd.f32 %v3413, %v3498
    %v3500 = vpop.f32.mrb[0].mxu0
    %v3501 = vadd.f32 %v3415, %v3500
    %3502 = vdwg.mxu0
    %v3503 = vand.u32 %v1843, 4294901760
    %v3504 = vsub.f32 %v1843, %v3503
    %v3505 = vand.u32 %v3504, 4294901760
    %3506 = vmatprep.subr.mxu0 %v3505
    %v3507 = vand.u32 %v1842, 4294901760
    %v3508 = vsub.f32 %v1842, %v3507
    %v3509 = vand.u32 %v3508, 4294901760
    %3510 = vmatpush1.msra.mxu0 %v3509
    %v3511 = vand.u32 %v1849, 4294901760
    %v3512 = vsub.f32 %v1849, %v3511
    %v3513 = vand.u32 %v3512, 4294901760
    %3514 = vmatprep.subr.mxu0 %v3513
    %v3515 = vand.u32 %v1848, 4294901760
    %v3516 = vsub.f32 %v1848, %v3515
    %v3517 = vand.u32 %v3516, 4294901760
    %3518 = vmatpush1.msra.mxu0 %v3517
    %v3519 = vand.u32 %v1855, 4294901760
    %v3520 = vsub.f32 %v1855, %v3519
    %v3521 = vand.u32 %v3520, 4294901760
    %3522 = vmatprep.subr.mxu0 %v3521
    %v3523 = vand.u32 %v1854, 4294901760
    %v3524 = vsub.f32 %v1854, %v3523
    %v3525 = vand.u32 %v3524, 4294901760
    %3526 = vmatpush1.msra.mxu0 %v3525
    %v3527 = vand.u32 %v1861, 4294901760
    %v3528 = vsub.f32 %v1861, %v3527
    %v3529 = vand.u32 %v3528, 4294901760
    %3530 = vmatprep.subr.mxu0 %v3529
    %v3531 = vand.u32 %v1860, 4294901760
    %v3532 = vsub.f32 %v1860, %v3531
    %v3533 = vand.u32 %v3532, 4294901760
    %3534 = vmatpush1.msra.mxu0 %v3533
    %v3535 = vand.u32 %v1867, 4294901760
    %v3536 = vsub.f32 %v1867, %v3535
    %v3537 = vand.u32 %v3536, 4294901760
    %3538 = vmatprep.subr.mxu0 %v3537
    %v3539 = vand.u32 %v1866, 4294901760
    %v3540 = vsub.f32 %v1866, %v3539
    %v3541 = vand.u32 %v3540, 4294901760
    %3542 = vmatpush1.msra.mxu0 %v3541
    %v3543 = vand.u32 %v1873, 4294901760
    %v3544 = vsub.f32 %v1873, %v3543
    %v3545 = vand.u32 %v3544, 4294901760
    %3546 = vmatprep.subr.mxu0 %v3545
    %v3547 = vand.u32 %v1872, 4294901760
    %v3548 = vsub.f32 %v1872, %v3547
    %v3549 = vand.u32 %v3548, 4294901760
    %3550 = vmatpush1.msra.mxu0 %v3549
    %3551 = vmatprep.subr.mxu0 0.0
    %3552 = vmatpush1.msra.mxu0 0.0
    %3553 = vmatprep.subr.mxu0 0.0
    %3554 = vmatpush1.msra.mxu0 0.0
    %3555 = vmatprep.subr.mxu0 0.0
    %3556 = vmatpush1.msra.mxu0 0.0
    %3557 = vmatprep.subr.mxu0 0.0
    %3558 = vmatpush1.msra.mxu0 0.0
    %3559 = vmatprep.subr.mxu0 0.0
    %3560 = vmatpush1.msra.mxu0 0.0
    %3561 = vmatprep.subr.mxu0 0.0
    %3562 = vmatpush1.msra.mxu0 0.0
    %3563 = vmatprep.subr.mxu0 0.0
    %3564 = vmatpush1.msra.mxu0 0.0
    %3565 = vmatprep.subr.mxu0 0.0
    %3566 = vmatpush1.msra.mxu0 0.0
    %3567 = vmatprep.subr.mxu0 0.0
    %3568 = vmatpush1.msra.mxu0 0.0
    %3569 = vmatprep.subr.mxu0 0.0
    %3570 = vmatpush1.msra.mxu0 0.0
    %3571 = vmatprep.subr.mxu0 0.0
    %3572 = vmatpush1.msra.mxu0 0.0
    %3573 = vmatprep.subr.mxu0 0.0
    %3574 = vmatpush1.msra.mxu0 0.0
    %3575 = vmatprep.subr.mxu0 0.0
    %3576 = vmatpush1.msra.mxu0 0.0
    %3577 = vmatprep.subr.mxu0 0.0
    %3578 = vmatpush1.msra.mxu0 0.0
    %3579 = vmatprep.subr.mxu0 0.0
    %3580 = vmatpush1.msra.mxu0 0.0
    %3581 = vmatprep.subr.mxu0 0.0
    %3582 = vmatpush1.msra.mxu0 0.0
    %3583 = vmatprep.subr.mxu0 0.0
    %3584 = vmatpush1.msra.mxu0 0.0
    %3585 = vmatprep.subr.mxu0 0.0
    %3586 = vmatpush1.msra.mxu0 0.0
    %3587 = vmatprep.subr.mxu0 0.0
    %3588 = vmatpush1.msra.mxu0 0.0
    %3589 = vmatprep.subr.mxu0 0.0
    %3590 = vmatpush1.msra.mxu0 0.0
    %3591 = vmatprep.subr.mxu0 0.0
    %3592 = vmatpush1.msra.mxu0 0.0
    %3593 = vmatprep.subr.mxu0 0.0
    %3594 = vmatpush1.msra.mxu0 0.0
    %3595 = vmatprep.subr.mxu0 0.0
    %3596 = vmatpush1.msra.mxu0 0.0
    %3597 = vmatprep.subr.mxu0 0.0
    %3598 = vmatpush1.msra.mxu0 0.0
    %3599 = vmatprep.subr.mxu0 0.0
    %3600 = vmatpush1.msra.mxu0 0.0
    %3601 = vmatprep.subr.mxu0 0.0
    %3602 = vmatpush1.msra.mxu0 0.0
    %3603 = vmatprep.mubr.f32.mxu0 0.0
    %v3604 = vand.u32 %v1908, 4294901760
    %3605 = vmatmul.mubr.f32.gmra.mrb[0].mxu0 %v3604
    %v3606 = vpop.f32.mrb[0].mxu0
    %v3607 = vadd.f32 %v3499, %v3606
    %v3608 = vpop.f32.mrb[0].mxu0
    %v3609 = vadd.f32 %v3501, %v3608
    %3610 = vdwg.mxu0
    %v3611 = vand.u32 %v1843, 4294901760
    %3612 = vmatprep.subr.mxu0 %v3611
    %v3613 = vand.u32 %v1842, 4294901760
    %3614 = vmatpush1.msra.mxu0 %v3613
    %v3615 = vand.u32 %v1849, 4294901760
    %3616 = vmatprep.subr.mxu0 %v3615
    %v3617 = vand.u32 %v1848, 4294901760
    %3618 = vmatpush1.msra.mxu0 %v3617
    %v3619 = vand.u32 %v1855, 4294901760
    %3620 = vmatprep.subr.mxu0 %v3619
    %v3621 = vand.u32 %v1854, 4294901760
    %3622 = vmatpush1.msra.mxu0 %v3621
    %v3623 = vand.u32 %v1861, 4294901760
    %3624 = vmatprep.subr.mxu0 %v3623
    %v3625 = vand.u32 %v1860, 4294901760
    %3626 = vmatpush1.msra.mxu0 %v3625
    %v3627 = vand.u32 %v1867, 4294901760
    %3628 = vmatprep.subr.mxu0 %v3627
    %v3629 = vand.u32 %v1866, 4294901760
    %3630 = vmatpush1.msra.mxu0 %v3629
    %v3631 = vand.u32 %v1873, 4294901760
    %3632 = vmatprep.subr.mxu0 %v3631
    %v3633 = vand.u32 %v1872, 4294901760
    %3634 = vmatpush1.msra.mxu0 %v3633
    %3635 = vmatprep.subr.mxu0 0.0
    %3636 = vmatpush1.msra.mxu0 0.0
    %3637 = vmatprep.subr.mxu0 0.0
    %3638 = vmatpush1.msra.mxu0 0.0
    %3639 = vmatprep.subr.mxu0 0.0
    %3640 = vmatpush1.msra.mxu0 0.0
    %3641 = vmatprep.subr.mxu0 0.0
    %3642 = vmatpush1.msra.mxu0 0.0
    %3643 = vmatprep.subr.mxu0 0.0
    %3644 = vmatpush1.msra.mxu0 0.0
    %3645 = vmatprep.subr.mxu0 0.0
    %3646 = vmatpush1.msra.mxu0 0.0
    %3647 = vmatprep.subr.mxu0 0.0
    %3648 = vmatpush1.msra.mxu0 0.0
    %3649 = vmatprep.subr.mxu0 0.0
    %3650 = vmatpush1.msra.mxu0 0.0
    %3651 = vmatprep.subr.mxu0 0.0
    %3652 = vmatpush1.msra.mxu0 0.0
    %3653 = vmatprep.subr.mxu0 0.0
    %3654 = vmatpush1.msra.mxu0 0.0
    %3655 = vmatprep.subr.mxu0 0.0
    %3656 = vmatpush1.msra.mxu0 0.0
    %3657 = vmatprep.subr.mxu0 0.0
    %3658 = vmatpush1.msra.mxu0 0.0
    %3659 = vmatprep.subr.mxu0 0.0
    %3660 = vmatpush1.msra.mxu0 0.0
    %3661 = vmatprep.subr.mxu0 0.0
    %3662 = vmatpush1.msra.mxu0 0.0
    %3663 = vmatprep.subr.mxu0 0.0
    %3664 = vmatpush1.msra.mxu0 0.0
    %3665 = vmatprep.subr.mxu0 0.0
    %3666 = vmatpush1.msra.mxu0 0.0
    %3667 = vmatprep.subr.mxu0 0.0
    %3668 = vmatpush1.msra.mxu0 0.0
    %3669 = vmatprep.subr.mxu0 0.0
    %3670 = vmatpush1.msra.mxu0 0.0
    %3671 = vmatprep.subr.mxu0 0.0
    %3672 = vmatpush1.msra.mxu0 0.0
    %3673 = vmatprep.subr.mxu0 0.0
    %3674 = vmatpush1.msra.mxu0 0.0
    %3675 = vmatprep.subr.mxu0 0.0
    %3676 = vmatpush1.msra.mxu0 0.0
    %3677 = vmatprep.subr.mxu0 0.0
    %3678 = vmatpush1.msra.mxu0 0.0
    %3679 = vmatprep.subr.mxu0 0.0
    %3680 = vmatpush1.msra.mxu0 0.0
    %3681 = vmatprep.subr.mxu0 0.0
    %3682 = vmatpush1.msra.mxu0 0.0
    %3683 = vmatprep.subr.mxu0 0.0
    %3684 = vmatpush1.msra.mxu0 0.0
    %3685 = vmatprep.subr.mxu0 0.0
    %3686 = vmatpush1.msra.mxu0 0.0
    %3687 = vmatprep.mubr.f32.mxu0 0.0
    %v3688 = vand.u32 %v1908, 4294901760
    %3689 = vmatmul.mubr.f32.gmra.mrb[0].mxu0 %v3688
    %v3690 = vpop.f32.mrb[0].mxu0
    %v3691 = vadd.f32 %v3607, %v3690
    %v3692 = vpop.f32.mrb[0].mxu0
    %v3693 = vadd.f32 %v3609, %v3692
    %3694 = vdwg.mxu0
    %v3695 = vlaneseq
    %v3696 = vshrl.u32 %v3695, 7
    %v3697 = vadd.s32 %v3696, 8
    %v3698 = vadd.s32 %v3696, 16
    %v3699 = vadd.s32 %v3696, 24
    %v3700 = vadd.s32 %v3696, 32
    %v3701 = vadd.s32 %v3696, 40
    %v3702 = vlaneseq
    %v3703 = vand.u32 %v3702, 127
    %v3704 = vadd.s32 %v3703, 128
    %v3705 = vadd.s32 %v3703, 256
    %v3706 = vadd.s32 %v3703, 384
    %v3707 = vadd.s32 %v3703, 512
    %v3708 = vadd.s32 %v3703, 640
    %v3709 = vshrl.u32 %v3703, 4
    %v3710 = vshrl.u32 %v3704, 4
    %v3711 = vshrl.u32 %v3705, 4
    %v3712 = vshrl.u32 %v3706, 4
    %v3713 = vshrl.u32 %v3707, 4
    %v3714 = vshrl.u32 %v3708, 4
    %vm3715 = vcmp.eq.s32.totalorder %v3696, %v3709
    %vm3716 = vcmp.eq.s32.totalorder %v3696, %v3710
    %vm3717 = vcmp.eq.s32.totalorder %v3696, %v3711
    %vm3718 = vcmp.eq.s32.totalorder %v3696, %v3712
    %vm3719 = vcmp.eq.s32.totalorder %v3696, %v3713
    %vm3720 = vcmp.eq.s32.totalorder %v3696, %v3714
    %vm3721 = vcmp.eq.s32.totalorder %v3697, %v3709
    %vm3722 = vcmp.eq.s32.totalorder %v3697, %v3710
    %vm3723 = vcmp.eq.s32.totalorder %v3697, %v3711
    %vm3724 = vcmp.eq.s32.totalorder %v3697, %v3712
    %vm3725 = vcmp.eq.s32.totalorder %v3697, %v3713
    %vm3726 = vcmp.eq.s32.totalorder %v3697, %v3714
    %vm3727 = vcmp.eq.s32.totalorder %v3698, %v3709
    %vm3728 = vcmp.eq.s32.totalorder %v3698, %v3710
    %vm3729 = vcmp.eq.s32.totalorder %v3698, %v3711
    %vm3730 = vcmp.eq.s32.totalorder %v3698, %v3712
    %vm3731 = vcmp.eq.s32.totalorder %v3698, %v3713
    %vm3732 = vcmp.eq.s32.totalorder %v3698, %v3714
    %vm3733 = vcmp.eq.s32.totalorder %v3699, %v3709
    %vm3734 = vcmp.eq.s32.totalorder %v3699, %v3710
    %vm3735 = vcmp.eq.s32.totalorder %v3699, %v3711
    %vm3736 = vcmp.eq.s32.totalorder %v3699, %v3712
    %vm3737 = vcmp.eq.s32.totalorder %v3699, %v3713
    %vm3738 = vcmp.eq.s32.totalorder %v3699, %v3714
    %vm3739 = vcmp.eq.s32.totalorder %v3700, %v3709
    %vm3740 = vcmp.eq.s32.totalorder %v3700, %v3710
    %vm3741 = vcmp.eq.s32.totalorder %v3700, %v3711
    %vm3742 = vcmp.eq.s32.totalorder %v3700, %v3712
    %vm3743 = vcmp.eq.s32.totalorder %v3700, %v3713
    %vm3744 = vcmp.eq.s32.totalorder %v3700, %v3714
    %vm3745 = vcmp.eq.s32.totalorder %v3701, %v3709
    %vm3746 = vcmp.eq.s32.totalorder %v3701, %v3710
    %vm3747 = vcmp.eq.s32.totalorder %v3701, %v3711
    %vm3748 = vcmp.eq.s32.totalorder %v3701, %v3712
    %vm3749 = vcmp.eq.s32.totalorder %v3701, %v3713
    %vm3750 = vcmp.eq.s32.totalorder %v3701, %v3714
    %v3751 = vlaneseq
    %v3752 = vshrl.u32 %v3751, 7
    %v3753 = vsub.s32 0, %v3752
    %v3754 = vrot.slane %v2501, %v3753
    %v3755 = vlaneseq
    %v3756 = vshrl.u32 %v3755, 7
    %v3757 = vsub.s32 0, %v3756
    %v3758 = vrot.slane %v2503, %v3757
    %v3759 = vlaneseq
    %v3760 = vshrl.u32 %v3759, 7
    %v3761 = vsub.s32 0, %v3760
    %v3762 = vrot.slane %v3096, %v3761
    %v3763 = vlaneseq
    %v3764 = vshrl.u32 %v3763, 7
    %v3765 = vsub.s32 0, %v3764
    %v3766 = vrot.slane %v3098, %v3765
    %v3767 = vlaneseq
    %v3768 = vshrl.u32 %v3767, 7
    %v3769 = vsub.s32 0, %v3768
    %v3770 = vrot.slane %v3691, %v3769
    %v3771 = vlaneseq
    %v3772 = vshrl.u32 %v3771, 7
    %v3773 = vsub.s32 0, %v3772
    %v3774 = vrot.slane %v3693, %v3773
    %v3775 = vsel %vm3715, %v3754, 0.0
    %v3776 = vsel %vm3716, %v3758, 0.0
    %v3777 = vsel %vm3717, %v3762, 0.0
    %v3778 = vsel %vm3718, %v3766, 0.0
    %v3779 = vsel %vm3719, %v3770, 0.0
    %v3780 = vsel %vm3720, %v3774, 0.0
    %v3781 = vsel %vm3721, %v3754, 0.0
    %v3782 = vsel %vm3722, %v3758, 0.0
    %v3783 = vsel %vm3723, %v3762, 0.0
    %v3784 = vsel %vm3724, %v3766, 0.0
    %v3785 = vsel %vm3725, %v3770, 0.0
    %v3786 = vsel %vm3726, %v3774, 0.0
    %v3787 = vsel %vm3727, %v3754, 0.0
    %v3788 = vsel %vm3728, %v3758, 0.0
    %v3789 = vsel %vm3729, %v3762, 0.0
    %v3790 = vsel %vm3730, %v3766, 0.0
    %v3791 = vsel %vm3731, %v3770, 0.0
    %v3792 = vsel %vm3732, %v3774, 0.0
    %v3793 = vsel %vm3733, %v3754, 0.0
    %v3794 = vsel %vm3734, %v3758, 0.0
    %v3795 = vsel %vm3735, %v3762, 0.0
    %v3796 = vsel %vm3736, %v3766, 0.0
    %v3797 = vsel %vm3737, %v3770, 0.0
    %v3798 = vsel %vm3738, %v3774, 0.0
    %v3799 = vsel %vm3739, %v3754, 0.0
    %v3800 = vsel %vm3740, %v3758, 0.0
    %v3801 = vsel %vm3741, %v3762, 0.0
    %v3802 = vsel %vm3742, %v3766, 0.0
    %v3803 = vsel %vm3743, %v3770, 0.0
    %v3804 = vsel %vm3744, %v3774, 0.0
    %v3805 = vsel %vm3745, %v3754, 0.0
    %v3806 = vsel %vm3746, %v3758, 0.0
    %v3807 = vsel %vm3747, %v3762, 0.0
    %v3808 = vsel %vm3748, %v3766, 0.0
    %v3809 = vsel %vm3749, %v3770, 0.0
    %v3810 = vsel %vm3750, %v3774, 0.0
    %v3811 = vadd.f32 %v3775, %v3778
    %v3812 = vadd.f32 %v3776, %v3779
    %v3813 = vadd.f32 %v3777, %v3780
    %v3814 = vadd.f32 %v3781, %v3784
    %v3815 = vadd.f32 %v3782, %v3785
    %v3816 = vadd.f32 %v3783, %v3786
    %v3817 = vadd.f32 %v3787, %v3790
    %v3818 = vadd.f32 %v3788, %v3791
    %v3819 = vadd.f32 %v3789, %v3792
    %v3820 = vadd.f32 %v3793, %v3796
    %v3821 = vadd.f32 %v3794, %v3797
    %v3822 = vadd.f32 %v3795, %v3798
    %v3823 = vadd.f32 %v3799, %v3802
    %v3824 = vadd.f32 %v3800, %v3803
    %v3825 = vadd.f32 %v3801, %v3804
    %v3826 = vadd.f32 %v3805, %v3808
    %v3827 = vadd.f32 %v3806, %v3809
    %v3828 = vadd.f32 %v3807, %v3810
    %3829 = vrot.lane.b32.xlu0 %v3812, 64
    %v3830 = vpop.permute.xlu0 %3829
    %3831 = vrot.lane.b32.xlu0 %v3815, 64
    %v3832 = vpop.permute.xlu0 %3831
    %3833 = vrot.lane.b32.xlu0 %v3818, 64
    %v3834 = vpop.permute.xlu0 %3833
    %3835 = vrot.lane.b32.xlu0 %v3821, 64
    %v3836 = vpop.permute.xlu0 %3835
    %3837 = vrot.lane.b32.xlu0 %v3824, 64
    %v3838 = vpop.permute.xlu0 %3837
    %3839 = vrot.lane.b32.xlu0 %v3827, 64
    %v3840 = vpop.permute.xlu0 %3839
    %3841 = vrot.lane.b32.xlu0 %v3813, 64
    %v3842 = vpop.permute.xlu0 %3841
    %3843 = vrot.lane.b32.xlu0 %v3816, 64
    %v3844 = vpop.permute.xlu0 %3843
    %3845 = vrot.lane.b32.xlu0 %v3819, 64
    %v3846 = vpop.permute.xlu0 %3845
    %3847 = vrot.lane.b32.xlu0 %v3822, 64
    %v3848 = vpop.permute.xlu0 %3847
    %3849 = vrot.lane.b32.xlu0 %v3825, 64
    %v3850 = vpop.permute.xlu0 %3849
    %3851 = vrot.lane.b32.xlu0 %v3828, 64
    %v3852 = vpop.permute.xlu0 %3851
    %3853 = vrot.lane.b32.xlu0 %v3811, 64
    %v3854 = vpop.permute.xlu0 %3853
    %3855 = vrot.lane.b32.xlu0 %v3814, 64
    %v3856 = vpop.permute.xlu0 %3855
    %3857 = vrot.lane.b32.xlu0 %v3817, 64
    %v3858 = vpop.permute.xlu0 %3857
    %3859 = vrot.lane.b32.xlu0 %v3820, 64
    %v3860 = vpop.permute.xlu0 %3859
    %3861 = vrot.lane.b32.xlu0 %v3823, 64
    %v3862 = vpop.permute.xlu0 %3861
    %3863 = vrot.lane.b32.xlu0 %v3826, 64
    %v3864 = vpop.permute.xlu0 %3863
    %vm3865 = vcmp.lt.s32.totalorder %v3703, 64
    %v3866 = vsel %vm3865, %v3830, %v3842
    %v3867 = vsel %vm3865, %v3832, %v3844
    %v3868 = vsel %vm3865, %v3834, %v3846
    %v3869 = vsel %vm3865, %v3836, %v3848
    %v3870 = vsel %vm3865, %v3838, %v3850
    %v3871 = vsel %vm3865, %v3840, %v3852
    %v3872 = vsel %vm3865, %v3854, %v3830
    %v3873 = vsel %vm3865, %v3856, %v3832
    %v3874 = vsel %vm3865, %v3858, %v3834
    %v3875 = vsel %vm3865, %v3860, %v3836
    %v3876 = vsel %vm3865, %v3862, %v3838
    %v3877 = vsel %vm3865, %v3864, %v3840
    %v3878 = vsel %vm3865, %v3842, %v3854
    %v3879 = vsel %vm3865, %v3844, %v3856
    %v3880 = vsel %vm3865, %v3846, %v3858
    %v3881 = vsel %vm3865, %v3848, %v3860
    %v3882 = vsel %vm3865, %v3850, %v3862
    %v3883 = vsel %vm3865, %v3852, %v3864
    %v3884 = vadd.f32 %v3811, %v3866
    %v3885 = vadd.f32 %v3812, %v3878
    %v3886 = vadd.f32 %v3813, %v3872
    %v3887 = vadd.f32 %v3814, %v3867
    %v3888 = vadd.f32 %v3815, %v3879
    %v3889 = vadd.f32 %v3816, %v3873
    %v3890 = vadd.f32 %v3817, %v3868
    %v3891 = vadd.f32 %v3818, %v3880
    %v3892 = vadd.f32 %v3819, %v3874
    %v3893 = vadd.f32 %v3820, %v3869
    %v3894 = vadd.f32 %v3821, %v3881
    %v3895 = vadd.f32 %v3822, %v3875
    %v3896 = vadd.f32 %v3823, %v3870
    %v3897 = vadd.f32 %v3824, %v3882
    %v3898 = vadd.f32 %v3825, %v3876
    %v3899 = vadd.f32 %v3826, %v3871
    %v3900 = vadd.f32 %v3827, %v3883
    %v3901 = vadd.f32 %v3828, %v3877
    %3902 = vrot.lane.b32.xlu0 %v3884, 96
    %v3903 = vpop.permute.xlu0 %3902
    %3904 = vrot.lane.b32.xlu0 %v3887, 96
    %v3905 = vpop.permute.xlu0 %3904
    %3906 = vrot.lane.b32.xlu0 %v3890, 96
    %v3907 = vpop.permute.xlu0 %3906
    %3908 = vrot.lane.b32.xlu0 %v3893, 96
    %v3909 = vpop.permute.xlu0 %3908
    %3910 = vrot.lane.b32.xlu0 %v3896, 96
    %v3911 = vpop.permute.xlu0 %3910
    %3912 = vrot.lane.b32.xlu0 %v3899, 96
    %v3913 = vpop.permute.xlu0 %3912
    %3914 = vrot.lane.b32.xlu0 %v3885, 96
    %v3915 = vpop.permute.xlu0 %3914
    %3916 = vrot.lane.b32.xlu0 %v3888, 96
    %v3917 = vpop.permute.xlu0 %3916
    %3918 = vrot.lane.b32.xlu0 %v3891, 96
    %v3919 = vpop.permute.xlu0 %3918
    %3920 = vrot.lane.b32.xlu0 %v3894, 96
    %v3921 = vpop.permute.xlu0 %3920
    %3922 = vrot.lane.b32.xlu0 %v3897, 96
    %v3923 = vpop.permute.xlu0 %3922
    %3924 = vrot.lane.b32.xlu0 %v3900, 96
    %v3925 = vpop.permute.xlu0 %3924
    %3926 = vrot.lane.b32.xlu0 %v3886, 96
    %v3927 = vpop.permute.xlu0 %3926
    %3928 = vrot.lane.b32.xlu0 %v3889, 96
    %v3929 = vpop.permute.xlu0 %3928
    %3930 = vrot.lane.b32.xlu0 %v3892, 96
    %v3931 = vpop.permute.xlu0 %3930
    %3932 = vrot.lane.b32.xlu0 %v3895, 96
    %v3933 = vpop.permute.xlu0 %3932
    %3934 = vrot.lane.b32.xlu0 %v3898, 96
    %v3935 = vpop.permute.xlu0 %3934
    %3936 = vrot.lane.b32.xlu0 %v3901, 96
    %v3937 = vpop.permute.xlu0 %3936
    %vm3938 = vcmp.lt.s32.totalorder %v3703, 96
    %v3939 = vsel %vm3938, %v3915, %v3927
    %v3940 = vsel %vm3938, %v3917, %v3929
    %v3941 = vsel %vm3938, %v3919, %v3931
    %v3942 = vsel %vm3938, %v3921, %v3933
    %v3943 = vsel %vm3938, %v3923, %v3935
    %v3944 = vsel %vm3938, %v3925, %v3937
    %v3945 = vsel %vm3938, %v3903, %v3915
    %v3946 = vsel %vm3938, %v3905, %v3917
    %v3947 = vsel %vm3938, %v3907, %v3919
    %v3948 = vsel %vm3938, %v3909, %v3921
    %v3949 = vsel %vm3938, %v3911, %v3923
    %v3950 = vsel %vm3938, %v3913, %v3925
    %v3951 = vsel %vm3938, %v3927, %v3903
    %v3952 = vsel %vm3938, %v3929, %v3905
    %v3953 = vsel %vm3938, %v3931, %v3907
    %v3954 = vsel %vm3938, %v3933, %v3909
    %v3955 = vsel %vm3938, %v3935, %v3911
    %v3956 = vsel %vm3938, %v3937, %v3913
    %v3957 = vadd.f32 %v3884, %v3951
    %v3958 = vadd.f32 %v3885, %v3945
    %v3959 = vadd.f32 %v3886, %v3939
    %v3960 = vadd.f32 %v3887, %v3952
    %v3961 = vadd.f32 %v3888, %v3946
    %v3962 = vadd.f32 %v3889, %v3940
    %v3963 = vadd.f32 %v3890, %v3953
    %v3964 = vadd.f32 %v3891, %v3947
    %v3965 = vadd.f32 %v3892, %v3941
    %v3966 = vadd.f32 %v3893, %v3954
    %v3967 = vadd.f32 %v3894, %v3948
    %v3968 = vadd.f32 %v3895, %v3942
    %v3969 = vadd.f32 %v3896, %v3955
    %v3970 = vadd.f32 %v3897, %v3949
    %v3971 = vadd.f32 %v3898, %v3943
    %v3972 = vadd.f32 %v3899, %v3956
    %v3973 = vadd.f32 %v3900, %v3950
    %v3974 = vadd.f32 %v3901, %v3944
    %3975 = vrot.lane.b32.xlu0 %v3957, 48
    %v3976 = vpop.permute.xlu0 %3975
    %3977 = vrot.lane.b32.xlu0 %v3960, 48
    %v3978 = vpop.permute.xlu0 %3977
    %3979 = vrot.lane.b32.xlu0 %v3963, 48
    %v3980 = vpop.permute.xlu0 %3979
    %3981 = vrot.lane.b32.xlu0 %v3966, 48
    %v3982 = vpop.permute.xlu0 %3981
    %3983 = vrot.lane.b32.xlu0 %v3969, 48
    %v3984 = vpop.permute.xlu0 %3983
    %3985 = vrot.lane.b32.xlu0 %v3972, 48
    %v3986 = vpop.permute.xlu0 %3985
    %3987 = vrot.lane.b32.xlu0 %v3958, 48
    %v3988 = vpop.permute.xlu0 %3987
    %3989 = vrot.lane.b32.xlu0 %v3961, 48
    %v3990 = vpop.permute.xlu0 %3989
    %3991 = vrot.lane.b32.xlu0 %v3964, 48
    %v3992 = vpop.permute.xlu0 %3991
    %3993 = vrot.lane.b32.xlu0 %v3967, 48
    %v3994 = vpop.permute.xlu0 %3993
    %3995 = vrot.lane.b32.xlu0 %v3970, 48
    %v3996 = vpop.permute.xlu0 %3995
    %3997 = vrot.lane.b32.xlu0 %v3973, 48
    %v3998 = vpop.permute.xlu0 %3997
    %3999 = vrot.lane.b32.xlu0 %v3959, 48
    %v4000 = vpop.permute.xlu0 %3999
    %4001 = vrot.lane.b32.xlu0 %v3962, 48
    %v4002 = vpop.permute.xlu0 %4001
    %4003 = vrot.lane.b32.xlu0 %v3965, 48
    %v4004 = vpop.permute.xlu0 %4003
    %4005 = vrot.lane.b32.xlu0 %v3968, 48
    %v4006 = vpop.permute.xlu0 %4005
    %4007 = vrot.lane.b32.xlu0 %v3971, 48
    %v4008 = vpop.permute.xlu0 %4007
    %4009 = vrot.lane.b32.xlu0 %v3974, 48
    %v4010 = vpop.permute.xlu0 %4009
    %vm4011 = vcmp.lt.s32.totalorder %v3703, 48
    %v4012 = vsel %vm4011, %v3988, %v4000
    %v4013 = vsel %vm4011, %v3990, %v4002
    %v4014 = vsel %vm4011, %v3992, %v4004
    %v4015 = vsel %vm4011, %v3994, %v4006
    %v4016 = vsel %vm4011, %v3996, %v4008
    %v4017 = vsel %vm4011, %v3998, %v4010
    %v4018 = vsel %vm4011, %v4000, %v3976
    %v4019 = vsel %vm4011, %v4002, %v3978
    %v4020 = vsel %vm4011, %v4004, %v3980
    %v4021 = vsel %vm4011, %v4006, %v3982
    %v4022 = vsel %vm4011, %v4008, %v3984
    %v4023 = vsel %vm4011, %v4010, %v3986
    %v4024 = vadd.f32 %v3957, %v4018
    %v4025 = vadd.f32 %v3959, %v4012
    %v4026 = vadd.f32 %v3960, %v4019
    %v4027 = vadd.f32 %v3962, %v4013
    %v4028 = vadd.f32 %v3963, %v4020
    %v4029 = vadd.f32 %v3965, %v4014
    %v4030 = vadd.f32 %v3966, %v4021
    %v4031 = vadd.f32 %v3968, %v4015
    %v4032 = vadd.f32 %v3969, %v4022
    %v4033 = vadd.f32 %v3971, %v4016
    %v4034 = vadd.f32 %v3972, %v4023
    %v4035 = vadd.f32 %v3974, %v4017
    %4036 = vrot.lane.b32.xlu0 %v4024, 16
    %v4037 = vpop.permute.xlu0 %4036
    %4038 = vrot.lane.b32.xlu0 %v4026, 16
    %v4039 = vpop.permute.xlu0 %4038
    %4040 = vrot.lane.b32.xlu0 %v4028, 16
    %v4041 = vpop.permute.xlu0 %4040
    %4042 = vrot.lane.b32.xlu0 %v4030, 16
    %v4043 = vpop.permute.xlu0 %4042
    %4044 = vrot.lane.b32.xlu0 %v4032, 16
    %v4045 = vpop.permute.xlu0 %4044
    %4046 = vrot.lane.b32.xlu0 %v4034, 16
    %v4047 = vpop.permute.xlu0 %4046
    %4048 = vrot.lane.b32.xlu0 %v4025, 16
    %v4049 = vpop.permute.xlu0 %4048
    %4050 = vrot.lane.b32.xlu0 %v4027, 16
    %v4051 = vpop.permute.xlu0 %4050
    %4052 = vrot.lane.b32.xlu0 %v4029, 16
    %v4053 = vpop.permute.xlu0 %4052
    %4054 = vrot.lane.b32.xlu0 %v4031, 16
    %v4055 = vpop.permute.xlu0 %4054
    %4056 = vrot.lane.b32.xlu0 %v4033, 16
    %v4057 = vpop.permute.xlu0 %4056
    %4058 = vrot.lane.b32.xlu0 %v4035, 16
    %v4059 = vpop.permute.xlu0 %4058
    %vm4060 = vcmp.lt.s32.totalorder %v3703, 16
    %v4061 = vsel %vm4060, %v4049, %v4037
    %v4062 = vsel %vm4060, %v4051, %v4039
    %v4063 = vsel %vm4060, %v4053, %v4041
    %v4064 = vsel %vm4060, %v4055, %v4043
    %v4065 = vsel %vm4060, %v4057, %v4045
    %v4066 = vsel %vm4060, %v4059, %v4047
    %v4067 = vadd.f32 %v4024, %v4061
    %v4068 = vadd.f32 %v4026, %v4062
    %v4069 = vadd.f32 %v4028, %v4063
    %v4070 = vadd.f32 %v4030, %v4064
    %v4071 = vadd.f32 %v4032, %v4065
    %v4072 = vadd.f32 %v4034, %v4066
    %4073 = vrot.lane.b32.xlu0 %v4024, 32
    %v4074 = vpop.permute.xlu0 %4073
    %4075 = vrot.lane.b32.xlu0 %v4026, 32
    %v4076 = vpop.permute.xlu0 %4075
    %4077 = vrot.lane.b32.xlu0 %v4028, 32
    %v4078 = vpop.permute.xlu0 %4077
    %4079 = vrot.lane.b32.xlu0 %v4030, 32
    %v4080 = vpop.permute.xlu0 %4079
    %4081 = vrot.lane.b32.xlu0 %v4032, 32
    %v4082 = vpop.permute.xlu0 %4081
    %4083 = vrot.lane.b32.xlu0 %v4034, 32
    %v4084 = vpop.permute.xlu0 %4083
    %4085 = vrot.lane.b32.xlu0 %v4025, 32
    %v4086 = vpop.permute.xlu0 %4085
    %4087 = vrot.lane.b32.xlu0 %v4027, 32
    %v4088 = vpop.permute.xlu0 %4087
    %4089 = vrot.lane.b32.xlu0 %v4029, 32
    %v4090 = vpop.permute.xlu0 %4089
    %4091 = vrot.lane.b32.xlu0 %v4031, 32
    %v4092 = vpop.permute.xlu0 %4091
    %4093 = vrot.lane.b32.xlu0 %v4033, 32
    %v4094 = vpop.permute.xlu0 %4093
    %4095 = vrot.lane.b32.xlu0 %v4035, 32
    %v4096 = vpop.permute.xlu0 %4095
    %vm4097 = vcmp.lt.s32.totalorder %v3703, 32
    %v4098 = vsel %vm4097, %v4086, %v4074
    %v4099 = vsel %vm4097, %v4088, %v4076
    %v4100 = vsel %vm4097, %v4090, %v4078
    %v4101 = vsel %vm4097, %v4092, %v4080
    %v4102 = vsel %vm4097, %v4094, %v4082
    %v4103 = vsel %vm4097, %v4096, %v4084
    %v4104 = vadd.f32 %v4067, %v4098
    %v4105 = vadd.f32 %v4068, %v4099
    %v4106 = vadd.f32 %v4069, %v4100
    %v4107 = vadd.f32 %v4070, %v4101
    %v4108 = vadd.f32 %v4071, %v4102
    %v4109 = vadd.f32 %v4072, %v4103
    %vm4110 = vcmask 130048
    %v4111 = vsel %vm4110, %v4104, 0.0
    %4112 = vadd.xlane.f32.xlu0 %v4111
    %v4113 = vpop.xlane.xlu0 %4112
    %v4114 = vsel %vm4110, %v4105, 0.0
    %4115 = vadd.xlane.f32.xlu0 %v4114
    %v4116 = vpop.xlane.xlu0 %4115
    %v4117 = vsel %vm4110, %v4106, 0.0
    %4118 = vadd.xlane.f32.xlu0 %v4117
    %v4119 = vpop.xlane.xlu0 %4118
    %v4120 = vsel %vm4110, %v4107, 0.0
    %4121 = vadd.xlane.f32.xlu0 %v4120
    %v4122 = vpop.xlane.xlu0 %4121
    %v4123 = vsel %vm4110, %v4108, 0.0
    %4124 = vadd.xlane.f32.xlu0 %v4123
    %v4125 = vpop.xlane.xlu0 %4124
    %v4126 = vsel %vm4110, %v4109, 0.0
    %4127 = vadd.xlane.f32.xlu0 %v4126
    %v4128 = vpop.xlane.xlu0 %4127
    %v4129 = vrcp.pop 16.0
    %v4130 = vmul.f32 %v4113, %v4129
    %v4131 = vmul.f32 %v4116, %v4129
    %v4132 = vmul.f32 %v4119, %v4129
    %v4133 = vmul.f32 %v4122, %v4129
    %v4134 = vmul.f32 %v4125, %v4129
    %v4135 = vmul.f32 %v4128, %v4129
    %v4136 = vsub.f32 %v4104, %v4130
    %v4137 = vsub.f32 %v4105, %v4131
    %v4138 = vsub.f32 %v4106, %v4132
    %v4139 = vsub.f32 %v4107, %v4133
    %v4140 = vsub.f32 %v4108, %v4134
    %v4141 = vsub.f32 %v4109, %v4135
    %v4142 = vmul.f32 %v4136, %v4136
    %v4143 = vmul.f32 %v4137, %v4137
    %v4144 = vmul.f32 %v4138, %v4138
    %v4145 = vmul.f32 %v4139, %v4139
    %v4146 = vmul.f32 %v4140, %v4140
    %v4147 = vmul.f32 %v4141, %v4141
    %v4148 = vsel %vm4110, %v4142, 0.0
    %4149 = vadd.xlane.f32.xlu0 %v4148
    %v4150 = vpop.xlane.xlu0 %4149
    %v4151 = vsel %vm4110, %v4143, 0.0
    %4152 = vadd.xlane.f32.xlu0 %v4151
    %v4153 = vpop.xlane.xlu0 %4152
    %v4154 = vsel %vm4110, %v4144, 0.0
    %4155 = vadd.xlane.f32.xlu0 %v4154
    %v4156 = vpop.xlane.xlu0 %4155
    %v4157 = vsel %vm4110, %v4145, 0.0
    %4158 = vadd.xlane.f32.xlu0 %v4157
    %v4159 = vpop.xlane.xlu0 %4158
    %v4160 = vsel %vm4110, %v4146, 0.0
    %4161 = vadd.xlane.f32.xlu0 %v4160
    %v4162 = vpop.xlane.xlu0 %4161
    %v4163 = vsel %vm4110, %v4147, 0.0
    %4164 = vadd.xlane.f32.xlu0 %v4163
    %v4165 = vpop.xlane.xlu0 %4164
    %v4166 = vmul.f32 %v4150, %v4129
    %v4167 = vmul.f32 %v4153, %v4129
    %v4168 = vmul.f32 %v4156, %v4129
    %v4169 = vmul.f32 %v4159, %v4129
    %v4170 = vmul.f32 %v4162, %v4129
    %v4171 = vmul.f32 %v4165, %v4129
    %v4172 = vadd.f32 %v4166, 1e-05
    %v4173 = vadd.f32 %v4167, 1e-05
    %v4174 = vadd.f32 %v4168, 1e-05
    %v4175 = vadd.f32 %v4169, 1e-05
    %v4176 = vadd.f32 %v4170, 1e-05
    %v4177 = vadd.f32 %v4171, 1e-05
    %v4178 = vrsqrt.pop %v4172
    %v4179 = vrsqrt.pop %v4173
    %v4180 = vrsqrt.pop %v4174
    %v4181 = vrsqrt.pop %v4175
    %v4182 = vrsqrt.pop %v4176
    %v4183 = vrsqrt.pop %v4177
    %v4184 = vmul.f32 %v4136, %v4178
    %v4185 = vmul.f32 %v4137, %v4179
    %v4186 = vmul.f32 %v4138, %v4180
    %v4187 = vmul.f32 %v4139, %v4181
    %v4188 = vmul.f32 %v4140, %v4182
    %v4189 = vmul.f32 %v4141, %v4183
    %v4190 = vld [vmem:[%s5] sm:$0xff]
    %v4191 = vld [vmem:[%s5 + $0x8] sm:$0xff]
    %v4192 = vld [vmem:[%s6] sm:$0x1]
    %v4194 = vlaneseq
    %v4195 = vshrl.u32 %v4194, 7
    %v4196 = vsub.s32 0, %v4195
    %v4197 = vrot.slane %v4192, %v4196
    %v4200 = vsel %vm4110, %v4184, 0
    %v4203 = vsel %vm4110, %v4185, 0
    %v4206 = vsel %vm4110, %v4186, 0
    %v4209 = vsel %vm4110, %v4187, 0
    %v4212 = vsel %vm4110, %v4188, 0
    %v4215 = vsel %vm4110, %v4189, 0
    %4217 = vmatprep.subr.mxu0 0.0
    %v4218 = vand.u32 %v4190, 4294901760
    %4219 = vmatpush1.msra.mxu0 %v4218
    %4220 = vmatprep.subr.mxu0 0.0
    %v4221 = vand.u32 %v4191, 4294901760
    %4222 = vmatpush1.msra.mxu0 %v4221
    %4223 = vmatprep.subr.mxu0 0.0
    %4224 = vmatpush1.msra.mxu0 0.0
    %4225 = vmatprep.subr.mxu0 0.0
    %4226 = vmatpush1.msra.mxu0 0.0
    %4227 = vmatprep.subr.mxu0 0.0
    %4228 = vmatpush1.msra.mxu0 0.0
    %4229 = vmatprep.subr.mxu0 0.0
    %4230 = vmatpush1.msra.mxu0 0.0
    %4231 = vmatprep.subr.mxu0 0.0
    %4232 = vmatpush1.msra.mxu0 0.0
    %4233 = vmatprep.subr.mxu0 0.0
    %4234 = vmatpush1.msra.mxu0 0.0
    %4235 = vmatprep.subr.mxu0 0.0
    %4236 = vmatpush1.msra.mxu0 0.0
    %4237 = vmatprep.subr.mxu0 0.0
    %4238 = vmatpush1.msra.mxu0 0.0
    %4239 = vmatprep.subr.mxu0 0.0
    %4240 = vmatpush1.msra.mxu0 0.0
    %4241 = vmatprep.subr.mxu0 0.0
    %4242 = vmatpush1.msra.mxu0 0.0
    %4243 = vmatprep.subr.mxu0 0.0
    %4244 = vmatpush1.msra.mxu0 0.0
    %4245 = vmatprep.subr.mxu0 0.0
    %4246 = vmatpush1.msra.mxu0 0.0
    %4247 = vmatprep.subr.mxu0 0.0
    %4248 = vmatpush1.msra.mxu0 0.0
    %4249 = vmatprep.subr.mxu0 0.0
    %4250 = vmatpush1.msra.mxu0 0.0
    %4251 = vmatprep.subr.mxu0 0.0
    %4252 = vmatpush1.msra.mxu0 0.0
    %4253 = vmatprep.subr.mxu0 0.0
    %4254 = vmatpush1.msra.mxu0 0.0
    %4255 = vmatprep.subr.mxu0 0.0
    %4256 = vmatpush1.msra.mxu0 0.0
    %4257 = vmatprep.subr.mxu0 0.0
    %4258 = vmatpush1.msra.mxu0 0.0
    %4259 = vmatprep.subr.mxu0 0.0
    %4260 = vmatpush1.msra.mxu0 0.0
    %4261 = vmatprep.subr.mxu0 0.0
    %4262 = vmatpush1.msra.mxu0 0.0
    %4263 = vmatprep.subr.mxu0 0.0
    %4264 = vmatpush1.msra.mxu0 0.0
    %4265 = vmatprep.subr.mxu0 0.0
    %4266 = vmatpush1.msra.mxu0 0.0
    %4267 = vmatprep.subr.mxu0 0.0
    %4268 = vmatpush1.msra.mxu0 0.0
    %4269 = vmatprep.subr.mxu0 0.0
    %4270 = vmatpush1.msra.mxu0 0.0
    %4271 = vmatprep.subr.mxu0 0.0
    %4272 = vmatpush1.msra.mxu0 0.0
    %4273 = vmatprep.subr.mxu0 0.0
    %4274 = vmatpush1.msra.mxu0 0.0
    %4275 = vmatprep.subr.mxu0 0.0
    %4276 = vmatpush1.msra.mxu0 0.0
    %4277 = vmatprep.subr.mxu0 0.0
    %4278 = vmatpush1.msra.mxu0 0.0
    %4279 = vmatprep.subr.mxu0 0.0
    %4280 = vmatpush1.msra.mxu0 0.0
    %4281 = vmatprep.subr.mxu0 0.0
    %4282 = vmatpush1.msra.mxu0 0.0
    %4283 = vmatprep.mubr.f32.mxu0 0.0
    %v4284 = vand.u32 %v4200, 4294901760
    %v4285 = vsub.f32 %v4200, %v4284
    %v4286 = vand.u32 %v4285, 4294901760
    %v4287 = vsub.f32 %v4285, %v4286
    %v4288 = vand.u32 %v4287, 4294901760
    %4289 = vmatmul.mubr.f32.gmra.mrb[0].mxu0 %v4288
    %v4290 = vpop.f32.mrb[0].mxu0
    %v4291 = vadd.f32 %v4197, %v4290
    %v4292 = vpop.f32.mrb[0].mxu0
    %4293 = vmatprep.mubr.f32.mxu0 0.0
    %v4294 = vand.u32 %v4203, 4294901760
    %v4295 = vsub.f32 %v4203, %v4294
    %v4296 = vand.u32 %v4295, 4294901760
    %v4297 = vsub.f32 %v4295, %v4296
    %v4298 = vand.u32 %v4297, 4294901760
    %4299 = vmatmul.mubr.f32.gmra.mrb[0].mxu0 %v4298
    %v4300 = vpop.f32.mrb[0].mxu0
    %v4301 = vadd.f32 %v4197, %v4300
    %v4302 = vpop.f32.mrb[0].mxu0
    %4303 = vmatprep.mubr.f32.mxu0 0.0
    %v4304 = vand.u32 %v4206, 4294901760
    %v4305 = vsub.f32 %v4206, %v4304
    %v4306 = vand.u32 %v4305, 4294901760
    %v4307 = vsub.f32 %v4305, %v4306
    %v4308 = vand.u32 %v4307, 4294901760
    %4309 = vmatmul.mubr.f32.gmra.mrb[0].mxu0 %v4308
    %v4310 = vpop.f32.mrb[0].mxu0
    %v4311 = vadd.f32 %v4197, %v4310
    %v4312 = vpop.f32.mrb[0].mxu0
    %4313 = vmatprep.mubr.f32.mxu0 0.0
    %v4314 = vand.u32 %v4209, 4294901760
    %v4315 = vsub.f32 %v4209, %v4314
    %v4316 = vand.u32 %v4315, 4294901760
    %v4317 = vsub.f32 %v4315, %v4316
    %v4318 = vand.u32 %v4317, 4294901760
    %4319 = vmatmul.mubr.f32.gmra.mrb[0].mxu0 %v4318
    %v4320 = vpop.f32.mrb[0].mxu0
    %v4321 = vadd.f32 %v4197, %v4320
    %v4322 = vpop.f32.mrb[0].mxu0
    %4323 = vmatprep.mubr.f32.mxu0 0.0
    %v4324 = vand.u32 %v4212, 4294901760
    %v4325 = vsub.f32 %v4212, %v4324
    %v4326 = vand.u32 %v4325, 4294901760
    %v4327 = vsub.f32 %v4325, %v4326
    %v4328 = vand.u32 %v4327, 4294901760
    %4329 = vmatmul.mubr.f32.gmra.mrb[0].mxu0 %v4328
    %v4330 = vpop.f32.mrb[0].mxu0
    %v4331 = vadd.f32 %v4197, %v4330
    %v4332 = vpop.f32.mrb[0].mxu0
    %4333 = vmatprep.mubr.f32.mxu0 0.0
    %v4334 = vand.u32 %v4215, 4294901760
    %v4335 = vsub.f32 %v4215, %v4334
    %v4336 = vand.u32 %v4335, 4294901760
    %v4337 = vsub.f32 %v4335, %v4336
    %v4338 = vand.u32 %v4337, 4294901760
    %4339 = vmatmul.mubr.f32.gmra.mrb[0].mxu0 %v4338
    %v4340 = vpop.f32.mrb[0].mxu0
    %v4341 = vadd.f32 %v4197, %v4340
    %v4342 = vpop.f32.mrb[0].mxu0
    %4343 = vdwg.mxu0
    %4344 = vmatprep.subr.mxu0 0.0
    %v4345 = vand.u32 %v4190, 4294901760
    %v4346 = vsub.f32 %v4190, %v4345
    %v4347 = vand.u32 %v4346, 4294901760
    %v4348 = vsub.f32 %v4346, %v4347
    %v4349 = vand.u32 %v4348, 4294901760
    %4350 = vmatpush1.msra.mxu0 %v4349
    %4351 = vmatprep.subr.mxu0 0.0
    %v4352 = vand.u32 %v4191, 4294901760
    %v4353 = vsub.f32 %v4191, %v4352
    %v4354 = vand.u32 %v4353, 4294901760
    %v4355 = vsub.f32 %v4353, %v4354
    %v4356 = vand.u32 %v4355, 4294901760
    %4357 = vmatpush1.msra.mxu0 %v4356
    %4358 = vmatprep.subr.mxu0 0.0
    %4359 = vmatpush1.msra.mxu0 0.0
    %4360 = vmatprep.subr.mxu0 0.0
    %4361 = vmatpush1.msra.mxu0 0.0
    %4362 = vmatprep.subr.mxu0 0.0
    %4363 = vmatpush1.msra.mxu0 0.0
    %4364 = vmatprep.subr.mxu0 0.0
    %4365 = vmatpush1.msra.mxu0 0.0
    %4366 = vmatprep.subr.mxu0 0.0
    %4367 = vmatpush1.msra.mxu0 0.0
    %4368 = vmatprep.subr.mxu0 0.0
    %4369 = vmatpush1.msra.mxu0 0.0
    %4370 = vmatprep.subr.mxu0 0.0
    %4371 = vmatpush1.msra.mxu0 0.0
    %4372 = vmatprep.subr.mxu0 0.0
    %4373 = vmatpush1.msra.mxu0 0.0
    %4374 = vmatprep.subr.mxu0 0.0
    %4375 = vmatpush1.msra.mxu0 0.0
    %4376 = vmatprep.subr.mxu0 0.0
    %4377 = vmatpush1.msra.mxu0 0.0
    %4378 = vmatprep.subr.mxu0 0.0
    %4379 = vmatpush1.msra.mxu0 0.0
    %4380 = vmatprep.subr.mxu0 0.0
    %4381 = vmatpush1.msra.mxu0 0.0
    %4382 = vmatprep.subr.mxu0 0.0
    %4383 = vmatpush1.msra.mxu0 0.0
    %4384 = vmatprep.subr.mxu0 0.0
    %4385 = vmatpush1.msra.mxu0 0.0
    %4386 = vmatprep.subr.mxu0 0.0
    %4387 = vmatpush1.msra.mxu0 0.0
    %4388 = vmatprep.subr.mxu0 0.0
    %4389 = vmatpush1.msra.mxu0 0.0
    %4390 = vmatprep.subr.mxu0 0.0
    %4391 = vmatpush1.msra.mxu0 0.0
    %4392 = vmatprep.subr.mxu0 0.0
    %4393 = vmatpush1.msra.mxu0 0.0
    %4394 = vmatprep.subr.mxu0 0.0
    %4395 = vmatpush1.msra.mxu0 0.0
    %4396 = vmatprep.subr.mxu0 0.0
    %4397 = vmatpush1.msra.mxu0 0.0
    %4398 = vmatprep.subr.mxu0 0.0
    %4399 = vmatpush1.msra.mxu0 0.0
    %4400 = vmatprep.subr.mxu0 0.0
    %4401 = vmatpush1.msra.mxu0 0.0
    %4402 = vmatprep.subr.mxu0 0.0
    %4403 = vmatpush1.msra.mxu0 0.0
    %4404 = vmatprep.subr.mxu0 0.0
    %4405 = vmatpush1.msra.mxu0 0.0
    %4406 = vmatprep.subr.mxu0 0.0
    %4407 = vmatpush1.msra.mxu0 0.0
    %4408 = vmatprep.subr.mxu0 0.0
    %4409 = vmatpush1.msra.mxu0 0.0
    %4410 = vmatprep.subr.mxu0 0.0
    %4411 = vmatpush1.msra.mxu0 0.0
    %4412 = vmatprep.subr.mxu0 0.0
    %4413 = vmatpush1.msra.mxu0 0.0
    %4414 = vmatprep.subr.mxu0 0.0
    %4415 = vmatpush1.msra.mxu0 0.0
    %4416 = vmatprep.subr.mxu0 0.0
    %4417 = vmatpush1.msra.mxu0 0.0
    %4418 = vmatprep.mubr.f32.mxu0 0.0
    %v4419 = vand.u32 %v4200, 4294901760
    %4420 = vmatmul.mubr.f32.gmra.mrb[0].mxu0 %v4419
    %v4421 = vpop.f32.mrb[0].mxu0
    %v4422 = vadd.f32 %v4291, %v4421
    %v4423 = vpop.f32.mrb[0].mxu0
    %4424 = vmatprep.mubr.f32.mxu0 0.0
    %v4425 = vand.u32 %v4203, 4294901760
    %4426 = vmatmul.mubr.f32.gmra.mrb[0].mxu0 %v4425
    %v4427 = vpop.f32.mrb[0].mxu0
    %v4428 = vadd.f32 %v4301, %v4427
    %v4429 = vpop.f32.mrb[0].mxu0
    %4430 = vmatprep.mubr.f32.mxu0 0.0
    %v4431 = vand.u32 %v4206, 4294901760
    %4432 = vmatmul.mubr.f32.gmra.mrb[0].mxu0 %v4431
    %v4433 = vpop.f32.mrb[0].mxu0
    %v4434 = vadd.f32 %v4311, %v4433
    %v4435 = vpop.f32.mrb[0].mxu0
    %4436 = vmatprep.mubr.f32.mxu0 0.0
    %v4437 = vand.u32 %v4209, 4294901760
    %4438 = vmatmul.mubr.f32.gmra.mrb[0].mxu0 %v4437
    %v4439 = vpop.f32.mrb[0].mxu0
    %v4440 = vadd.f32 %v4321, %v4439
    %v4441 = vpop.f32.mrb[0].mxu0
    %4442 = vmatprep.mubr.f32.mxu0 0.0
    %v4443 = vand.u32 %v4212, 4294901760
    %4444 = vmatmul.mubr.f32.gmra.mrb[0].mxu0 %v4443
    %v4445 = vpop.f32.mrb[0].mxu0
    %v4446 = vadd.f32 %v4331, %v4445
    %v4447 = vpop.f32.mrb[0].mxu0
    %4448 = vmatprep.mubr.f32.mxu0 0.0
    %v4449 = vand.u32 %v4215, 4294901760
    %4450 = vmatmul.mubr.f32.gmra.mrb[0].mxu0 %v4449
    %v4451 = vpop.f32.mrb[0].mxu0
    %v4452 = vadd.f32 %v4341, %v4451
    %v4453 = vpop.f32.mrb[0].mxu0
    %4454 = vdwg.mxu0
    %4455 = vmatprep.subr.mxu0 0.0
    %v4456 = vand.u32 %v4190, 4294901760
    %v4457 = vsub.f32 %v4190, %v4456
    %4458 = vmatpush1.msra.mxu0 %v4457
    %4459 = vmatprep.subr.mxu0 0.0
    %v4460 = vand.u32 %v4191, 4294901760
    %v4461 = vsub.f32 %v4191, %v4460
    %4462 = vmatpush1.msra.mxu0 %v4461
    %4463 = vmatprep.subr.mxu0 0.0
    %4464 = vmatpush1.msra.mxu0 0.0
    %4465 = vmatprep.subr.mxu0 0.0
    %4466 = vmatpush1.msra.mxu0 0.0
    %4467 = vmatprep.subr.mxu0 0.0
    %4468 = vmatpush1.msra.mxu0 0.0
    %4469 = vmatprep.subr.mxu0 0.0
    %4470 = vmatpush1.msra.mxu0 0.0
    %4471 = vmatprep.subr.mxu0 0.0
    %4472 = vmatpush1.msra.mxu0 0.0
    %4473 = vmatprep.subr.mxu0 0.0
    %4474 = vmatpush1.msra.mxu0 0.0
    %4475 = vmatprep.subr.mxu0 0.0
    %4476 = vmatpush1.msra.mxu0 0.0
    %4477 = vmatprep.subr.mxu0 0.0
    %4478 = vmatpush1.msra.mxu0 0.0
    %4479 = vmatprep.subr.mxu0 0.0
    %4480 = vmatpush1.msra.mxu0 0.0
    %4481 = vmatprep.subr.mxu0 0.0
    %4482 = vmatpush1.msra.mxu0 0.0
    %4483 = vmatprep.subr.mxu0 0.0
    %4484 = vmatpush1.msra.mxu0 0.0
    %4485 = vmatprep.subr.mxu0 0.0
    %4486 = vmatpush1.msra.mxu0 0.0
    %4487 = vmatprep.subr.mxu0 0.0
    %4488 = vmatpush1.msra.mxu0 0.0
    %4489 = vmatprep.subr.mxu0 0.0
    %4490 = vmatpush1.msra.mxu0 0.0
    %4491 = vmatprep.subr.mxu0 0.0
    %4492 = vmatpush1.msra.mxu0 0.0
    %4493 = vmatprep.subr.mxu0 0.0
    %4494 = vmatpush1.msra.mxu0 0.0
    %4495 = vmatprep.subr.mxu0 0.0
    %4496 = vmatpush1.msra.mxu0 0.0
    %4497 = vmatprep.subr.mxu0 0.0
    %4498 = vmatpush1.msra.mxu0 0.0
    %4499 = vmatprep.subr.mxu0 0.0
    %4500 = vmatpush1.msra.mxu0 0.0
    %4501 = vmatprep.subr.mxu0 0.0
    %4502 = vmatpush1.msra.mxu0 0.0
    %4503 = vmatprep.subr.mxu0 0.0
    %4504 = vmatpush1.msra.mxu0 0.0
    %4505 = vmatprep.subr.mxu0 0.0
    %4506 = vmatpush1.msra.mxu0 0.0
    %4507 = vmatprep.subr.mxu0 0.0
    %4508 = vmatpush1.msra.mxu0 0.0
    %4509 = vmatprep.subr.mxu0 0.0
    %4510 = vmatpush1.msra.mxu0 0.0
    %4511 = vmatprep.subr.mxu0 0.0
    %4512 = vmatpush1.msra.mxu0 0.0
    %4513 = vmatprep.subr.mxu0 0.0
    %4514 = vmatpush1.msra.mxu0 0.0
    %4515 = vmatprep.subr.mxu0 0.0
    %4516 = vmatpush1.msra.mxu0 0.0
    %4517 = vmatprep.subr.mxu0 0.0
    %4518 = vmatpush1.msra.mxu0 0.0
    %4519 = vmatprep.subr.mxu0 0.0
    %4520 = vmatpush1.msra.mxu0 0.0
    %4521 = vmatprep.subr.mxu0 0.0
    %4522 = vmatpush1.msra.mxu0 0.0
    %4523 = vmatprep.mubr.f32.mxu0 0.0
    %v4524 = vand.u32 %v4200, 4294901760
    %v4525 = vsub.f32 %v4200, %v4524
    %4526 = vmatmul.mubr.f32.gmra.mrb[0].mxu0 %v4525
    %v4527 = vpop.f32.mrb[0].mxu0
    %v4528 = vadd.f32 %v4422, %v4527
    %v4529 = vpop.f32.mrb[0].mxu0
    %4530 = vmatprep.mubr.f32.mxu0 0.0
    %v4531 = vand.u32 %v4203, 4294901760
    %v4532 = vsub.f32 %v4203, %v4531
    %4533 = vmatmul.mubr.f32.gmra.mrb[0].mxu0 %v4532
    %v4534 = vpop.f32.mrb[0].mxu0
    %v4535 = vadd.f32 %v4428, %v4534
    %v4536 = vpop.f32.mrb[0].mxu0
    %4537 = vmatprep.mubr.f32.mxu0 0.0
    %v4538 = vand.u32 %v4206, 4294901760
    %v4539 = vsub.f32 %v4206, %v4538
    %4540 = vmatmul.mubr.f32.gmra.mrb[0].mxu0 %v4539
    %v4541 = vpop.f32.mrb[0].mxu0
    %v4542 = vadd.f32 %v4434, %v4541
    %v4543 = vpop.f32.mrb[0].mxu0
    %4544 = vmatprep.mubr.f32.mxu0 0.0
    %v4545 = vand.u32 %v4209, 4294901760
    %v4546 = vsub.f32 %v4209, %v4545
    %4547 = vmatmul.mubr.f32.gmra.mrb[0].mxu0 %v4546
    %v4548 = vpop.f32.mrb[0].mxu0
    %v4549 = vadd.f32 %v4440, %v4548
    %v4550 = vpop.f32.mrb[0].mxu0
    %4551 = vmatprep.mubr.f32.mxu0 0.0
    %v4552 = vand.u32 %v4212, 4294901760
    %v4553 = vsub.f32 %v4212, %v4552
    %4554 = vmatmul.mubr.f32.gmra.mrb[0].mxu0 %v4553
    %v4555 = vpop.f32.mrb[0].mxu0
    %v4556 = vadd.f32 %v4446, %v4555
    %v4557 = vpop.f32.mrb[0].mxu0
    %4558 = vmatprep.mubr.f32.mxu0 0.0
    %v4559 = vand.u32 %v4215, 4294901760
    %v4560 = vsub.f32 %v4215, %v4559
    %4561 = vmatmul.mubr.f32.gmra.mrb[0].mxu0 %v4560
    %v4562 = vpop.f32.mrb[0].mxu0
    %v4563 = vadd.f32 %v4452, %v4562
    %v4564 = vpop.f32.mrb[0].mxu0
    %4565 = vdwg.mxu0
    %4566 = vmatprep.subr.mxu0 0.0
    %v4567 = vand.u32 %v4190, 4294901760
    %4568 = vmatpush1.msra.mxu0 %v4567
    %4569 = vmatprep.subr.mxu0 0.0
    %v4570 = vand.u32 %v4191, 4294901760
    %4571 = vmatpush1.msra.mxu0 %v4570
    %4572 = vmatprep.subr.mxu0 0.0
    %4573 = vmatpush1.msra.mxu0 0.0
    %4574 = vmatprep.subr.mxu0 0.0
    %4575 = vmatpush1.msra.mxu0 0.0
    %4576 = vmatprep.subr.mxu0 0.0
    %4577 = vmatpush1.msra.mxu0 0.0
    %4578 = vmatprep.subr.mxu0 0.0
    %4579 = vmatpush1.msra.mxu0 0.0
    %4580 = vmatprep.subr.mxu0 0.0
    %4581 = vmatpush1.msra.mxu0 0.0
    %4582 = vmatprep.subr.mxu0 0.0
    %4583 = vmatpush1.msra.mxu0 0.0
    %4584 = vmatprep.subr.mxu0 0.0
    %4585 = vmatpush1.msra.mxu0 0.0
    %4586 = vmatprep.subr.mxu0 0.0
    %4587 = vmatpush1.msra.mxu0 0.0
    %4588 = vmatprep.subr.mxu0 0.0
    %4589 = vmatpush1.msra.mxu0 0.0
    %4590 = vmatprep.subr.mxu0 0.0
    %4591 = vmatpush1.msra.mxu0 0.0
    %4592 = vmatprep.subr.mxu0 0.0
    %4593 = vmatpush1.msra.mxu0 0.0
    %4594 = vmatprep.subr.mxu0 0.0
    %4595 = vmatpush1.msra.mxu0 0.0
    %4596 = vmatprep.subr.mxu0 0.0
    %4597 = vmatpush1.msra.mxu0 0.0
    %4598 = vmatprep.subr.mxu0 0.0
    %4599 = vmatpush1.msra.mxu0 0.0
    %4600 = vmatprep.subr.mxu0 0.0
    %4601 = vmatpush1.msra.mxu0 0.0
    %4602 = vmatprep.subr.mxu0 0.0
    %4603 = vmatpush1.msra.mxu0 0.0
    %4604 = vmatprep.subr.mxu0 0.0
    %4605 = vmatpush1.msra.mxu0 0.0
    %4606 = vmatprep.subr.mxu0 0.0
    %4607 = vmatpush1.msra.mxu0 0.0
    %4608 = vmatprep.subr.mxu0 0.0
    %4609 = vmatpush1.msra.mxu0 0.0
    %4610 = vmatprep.subr.mxu0 0.0
    %4611 = vmatpush1.msra.mxu0 0.0
    %4612 = vmatprep.subr.mxu0 0.0
    %4613 = vmatpush1.msra.mxu0 0.0
    %4614 = vmatprep.subr.mxu0 0.0
    %4615 = vmatpush1.msra.mxu0 0.0
    %4616 = vmatprep.subr.mxu0 0.0
    %4617 = vmatpush1.msra.mxu0 0.0
    %4618 = vmatprep.subr.mxu0 0.0
    %4619 = vmatpush1.msra.mxu0 0.0
    %4620 = vmatprep.subr.mxu0 0.0
    %4621 = vmatpush1.msra.mxu0 0.0
    %4622 = vmatprep.subr.mxu0 0.0
    %4623 = vmatpush1.msra.mxu0 0.0
    %4624 = vmatprep.subr.mxu0 0.0
    %4625 = vmatpush1.msra.mxu0 0.0
    %4626 = vmatprep.subr.mxu0 0.0
    %4627 = vmatpush1.msra.mxu0 0.0
    %4628 = vmatprep.subr.mxu0 0.0
    %4629 = vmatpush1.msra.mxu0 0.0
    %4630 = vmatprep.subr.mxu0 0.0
    %4631 = vmatpush1.msra.mxu0 0.0
    %4632 = vmatprep.mubr.f32.mxu0 0.0
    %v4633 = vand.u32 %v4200, 4294901760
    %v4634 = vsub.f32 %v4200, %v4633
    %v4635 = vand.u32 %v4634, 4294901760
    %4636 = vmatmul.mubr.f32.gmra.mrb[0].mxu0 %v4635
    %v4637 = vpop.f32.mrb[0].mxu0
    %v4638 = vadd.f32 %v4528, %v4637
    %v4639 = vpop.f32.mrb[0].mxu0
    %4640 = vmatprep.mubr.f32.mxu0 0.0
    %v4641 = vand.u32 %v4203, 4294901760
    %v4642 = vsub.f32 %v4203, %v4641
    %v4643 = vand.u32 %v4642, 4294901760
    %4644 = vmatmul.mubr.f32.gmra.mrb[0].mxu0 %v4643
    %v4645 = vpop.f32.mrb[0].mxu0
    %v4646 = vadd.f32 %v4535, %v4645
    %v4647 = vpop.f32.mrb[0].mxu0
    %4648 = vmatprep.mubr.f32.mxu0 0.0
    %v4649 = vand.u32 %v4206, 4294901760
    %v4650 = vsub.f32 %v4206, %v4649
    %v4651 = vand.u32 %v4650, 4294901760
    %4652 = vmatmul.mubr.f32.gmra.mrb[0].mxu0 %v4651
    %v4653 = vpop.f32.mrb[0].mxu0
    %v4654 = vadd.f32 %v4542, %v4653
    %v4655 = vpop.f32.mrb[0].mxu0
    %4656 = vmatprep.mubr.f32.mxu0 0.0
    %v4657 = vand.u32 %v4209, 4294901760
    %v4658 = vsub.f32 %v4209, %v4657
    %v4659 = vand.u32 %v4658, 4294901760
    %4660 = vmatmul.mubr.f32.gmra.mrb[0].mxu0 %v4659
    %v4661 = vpop.f32.mrb[0].mxu0
    %v4662 = vadd.f32 %v4549, %v4661
    %v4663 = vpop.f32.mrb[0].mxu0
    %4664 = vmatprep.mubr.f32.mxu0 0.0
    %v4665 = vand.u32 %v4212, 4294901760
    %v4666 = vsub.f32 %v4212, %v4665
    %v4667 = vand.u32 %v4666, 4294901760
    %4668 = vmatmul.mubr.f32.gmra.mrb[0].mxu0 %v4667
    %v4669 = vpop.f32.mrb[0].mxu0
    %v4670 = vadd.f32 %v4556, %v4669
    %v4671 = vpop.f32.mrb[0].mxu0
    %4672 = vmatprep.mubr.f32.mxu0 0.0
    %v4673 = vand.u32 %v4215, 4294901760
    %v4674 = vsub.f32 %v4215, %v4673
    %v4675 = vand.u32 %v4674, 4294901760
    %4676 = vmatmul.mubr.f32.gmra.mrb[0].mxu0 %v4675
    %v4677 = vpop.f32.mrb[0].mxu0
    %v4678 = vadd.f32 %v4563, %v4677
    %v4679 = vpop.f32.mrb[0].mxu0
    %4680 = vdwg.mxu0
    %4681 = vmatprep.subr.mxu0 0.0
    %v4682 = vand.u32 %v4190, 4294901760
    %v4683 = vsub.f32 %v4190, %v4682
    %v4684 = vand.u32 %v4683, 4294901760
    %4685 = vmatpush1.msra.mxu0 %v4684
    %4686 = vmatprep.subr.mxu0 0.0
    %v4687 = vand.u32 %v4191, 4294901760
    %v4688 = vsub.f32 %v4191, %v4687
    %v4689 = vand.u32 %v4688, 4294901760
    %4690 = vmatpush1.msra.mxu0 %v4689
    %4691 = vmatprep.subr.mxu0 0.0
    %4692 = vmatpush1.msra.mxu0 0.0
    %4693 = vmatprep.subr.mxu0 0.0
    %4694 = vmatpush1.msra.mxu0 0.0
    %4695 = vmatprep.subr.mxu0 0.0
    %4696 = vmatpush1.msra.mxu0 0.0
    %4697 = vmatprep.subr.mxu0 0.0
    %4698 = vmatpush1.msra.mxu0 0.0
    %4699 = vmatprep.subr.mxu0 0.0
    %4700 = vmatpush1.msra.mxu0 0.0
    %4701 = vmatprep.subr.mxu0 0.0
    %4702 = vmatpush1.msra.mxu0 0.0
    %4703 = vmatprep.subr.mxu0 0.0
    %4704 = vmatpush1.msra.mxu0 0.0
    %4705 = vmatprep.subr.mxu0 0.0
    %4706 = vmatpush1.msra.mxu0 0.0
    %4707 = vmatprep.subr.mxu0 0.0
    %4708 = vmatpush1.msra.mxu0 0.0
    %4709 = vmatprep.subr.mxu0 0.0
    %4710 = vmatpush1.msra.mxu0 0.0
    %4711 = vmatprep.subr.mxu0 0.0
    %4712 = vmatpush1.msra.mxu0 0.0
    %4713 = vmatprep.subr.mxu0 0.0
    %4714 = vmatpush1.msra.mxu0 0.0
    %4715 = vmatprep.subr.mxu0 0.0
    %4716 = vmatpush1.msra.mxu0 0.0
    %4717 = vmatprep.subr.mxu0 0.0
    %4718 = vmatpush1.msra.mxu0 0.0
    %4719 = vmatprep.subr.mxu0 0.0
    %4720 = vmatpush1.msra.mxu0 0.0
    %4721 = vmatprep.subr.mxu0 0.0
    %4722 = vmatpush1.msra.mxu0 0.0
    %4723 = vmatprep.subr.mxu0 0.0
    %4724 = vmatpush1.msra.mxu0 0.0
    %4725 = vmatprep.subr.mxu0 0.0
    %4726 = vmatpush1.msra.mxu0 0.0
    %4727 = vmatprep.subr.mxu0 0.0
    %4728 = vmatpush1.msra.mxu0 0.0
    %4729 = vmatprep.subr.mxu0 0.0
    %4730 = vmatpush1.msra.mxu0 0.0
    %4731 = vmatprep.subr.mxu0 0.0
    %4732 = vmatpush1.msra.mxu0 0.0
    %4733 = vmatprep.subr.mxu0 0.0
    %4734 = vmatpush1.msra.mxu0 0.0
    %4735 = vmatprep.subr.mxu0 0.0
    %4736 = vmatpush1.msra.mxu0 0.0
    %4737 = vmatprep.subr.mxu0 0.0
    %4738 = vmatpush1.msra.mxu0 0.0
    %4739 = vmatprep.subr.mxu0 0.0
    %4740 = vmatpush1.msra.mxu0 0.0
    %4741 = vmatprep.subr.mxu0 0.0
    %4742 = vmatpush1.msra.mxu0 0.0
    %4743 = vmatprep.subr.mxu0 0.0
    %4744 = vmatpush1.msra.mxu0 0.0
    %4745 = vmatprep.subr.mxu0 0.0
    %4746 = vmatpush1.msra.mxu0 0.0
    %4747 = vmatprep.subr.mxu0 0.0
    %4748 = vmatpush1.msra.mxu0 0.0
    %4749 = vmatprep.subr.mxu0 0.0
    %4750 = vmatpush1.msra.mxu0 0.0
    %4751 = vmatprep.mubr.f32.mxu0 0.0
    %v4752 = vand.u32 %v4200, 4294901760
    %4753 = vmatmul.mubr.f32.gmra.mrb[0].mxu0 %v4752
    %v4754 = vpop.f32.mrb[0].mxu0
    %v4755 = vadd.f32 %v4638, %v4754
    %v4756 = vpop.f32.mrb[0].mxu0
    %4757 = vmatprep.mubr.f32.mxu0 0.0
    %v4758 = vand.u32 %v4203, 4294901760
    %4759 = vmatmul.mubr.f32.gmra.mrb[0].mxu0 %v4758
    %v4760 = vpop.f32.mrb[0].mxu0
    %v4761 = vadd.f32 %v4646, %v4760
    %v4762 = vpop.f32.mrb[0].mxu0
    %4763 = vmatprep.mubr.f32.mxu0 0.0
    %v4764 = vand.u32 %v4206, 4294901760
    %4765 = vmatmul.mubr.f32.gmra.mrb[0].mxu0 %v4764
    %v4766 = vpop.f32.mrb[0].mxu0
    %v4767 = vadd.f32 %v4654, %v4766
    %v4768 = vpop.f32.mrb[0].mxu0
    %4769 = vmatprep.mubr.f32.mxu0 0.0
    %v4770 = vand.u32 %v4209, 4294901760
    %4771 = vmatmul.mubr.f32.gmra.mrb[0].mxu0 %v4770
    %v4772 = vpop.f32.mrb[0].mxu0
    %v4773 = vadd.f32 %v4662, %v4772
    %v4774 = vpop.f32.mrb[0].mxu0
    %4775 = vmatprep.mubr.f32.mxu0 0.0
    %v4776 = vand.u32 %v4212, 4294901760
    %4777 = vmatmul.mubr.f32.gmra.mrb[0].mxu0 %v4776
    %v4778 = vpop.f32.mrb[0].mxu0
    %v4779 = vadd.f32 %v4670, %v4778
    %v4780 = vpop.f32.mrb[0].mxu0
    %4781 = vmatprep.mubr.f32.mxu0 0.0
    %v4782 = vand.u32 %v4215, 4294901760
    %4783 = vmatmul.mubr.f32.gmra.mrb[0].mxu0 %v4782
    %v4784 = vpop.f32.mrb[0].mxu0
    %v4785 = vadd.f32 %v4678, %v4784
    %v4786 = vpop.f32.mrb[0].mxu0
    %4787 = vdwg.mxu0
    %4788 = vmatprep.subr.mxu0 0.0
    %v4789 = vand.u32 %v4190, 4294901760
    %4790 = vmatpush1.msra.mxu0 %v4789
    %4791 = vmatprep.subr.mxu0 0.0
    %v4792 = vand.u32 %v4191, 4294901760
    %4793 = vmatpush1.msra.mxu0 %v4792
    %4794 = vmatprep.subr.mxu0 0.0
    %4795 = vmatpush1.msra.mxu0 0.0
    %4796 = vmatprep.subr.mxu0 0.0
    %4797 = vmatpush1.msra.mxu0 0.0
    %4798 = vmatprep.subr.mxu0 0.0
    %4799 = vmatpush1.msra.mxu0 0.0
    %4800 = vmatprep.subr.mxu0 0.0
    %4801 = vmatpush1.msra.mxu0 0.0
    %4802 = vmatprep.subr.mxu0 0.0
    %4803 = vmatpush1.msra.mxu0 0.0
    %4804 = vmatprep.subr.mxu0 0.0
    %4805 = vmatpush1.msra.mxu0 0.0
    %4806 = vmatprep.subr.mxu0 0.0
    %4807 = vmatpush1.msra.mxu0 0.0
    %4808 = vmatprep.subr.mxu0 0.0
    %4809 = vmatpush1.msra.mxu0 0.0
    %4810 = vmatprep.subr.mxu0 0.0
    %4811 = vmatpush1.msra.mxu0 0.0
    %4812 = vmatprep.subr.mxu0 0.0
    %4813 = vmatpush1.msra.mxu0 0.0
    %4814 = vmatprep.subr.mxu0 0.0
    %4815 = vmatpush1.msra.mxu0 0.0
    %4816 = vmatprep.subr.mxu0 0.0
    %4817 = vmatpush1.msra.mxu0 0.0
    %4818 = vmatprep.subr.mxu0 0.0
    %4819 = vmatpush1.msra.mxu0 0.0
    %4820 = vmatprep.subr.mxu0 0.0
    %4821 = vmatpush1.msra.mxu0 0.0
    %4822 = vmatprep.subr.mxu0 0.0
    %4823 = vmatpush1.msra.mxu0 0.0
    %4824 = vmatprep.subr.mxu0 0.0
    %4825 = vmatpush1.msra.mxu0 0.0
    %4826 = vmatprep.subr.mxu0 0.0
    %4827 = vmatpush1.msra.mxu0 0.0
    %4828 = vmatprep.subr.mxu0 0.0
    %4829 = vmatpush1.msra.mxu0 0.0
    %4830 = vmatprep.subr.mxu0 0.0
    %4831 = vmatpush1.msra.mxu0 0.0
    %4832 = vmatprep.subr.mxu0 0.0
    %4833 = vmatpush1.msra.mxu0 0.0
    %4834 = vmatprep.subr.mxu0 0.0
    %4835 = vmatpush1.msra.mxu0 0.0
    %4836 = vmatprep.subr.mxu0 0.0
    %4837 = vmatpush1.msra.mxu0 0.0
    %4838 = vmatprep.subr.mxu0 0.0
    %4839 = vmatpush1.msra.mxu0 0.0
    %4840 = vmatprep.subr.mxu0 0.0
    %4841 = vmatpush1.msra.mxu0 0.0
    %4842 = vmatprep.subr.mxu0 0.0
    %4843 = vmatpush1.msra.mxu0 0.0
    %4844 = vmatprep.subr.mxu0 0.0
    %4845 = vmatpush1.msra.mxu0 0.0
    %4846 = vmatprep.subr.mxu0 0.0
    %4847 = vmatpush1.msra.mxu0 0.0
    %4848 = vmatprep.subr.mxu0 0.0
    %4849 = vmatpush1.msra.mxu0 0.0
    %4850 = vmatprep.subr.mxu0 0.0
    %4851 = vmatpush1.msra.mxu0 0.0
    %4852 = vmatprep.subr.mxu0 0.0
    %4853 = vmatpush1.msra.mxu0 0.0
    %4854 = vmatprep.mubr.f32.mxu0 0.0
    %v4855 = vand.u32 %v4200, 4294901760
    %4856 = vmatmul.mubr.f32.gmra.mrb[0].mxu0 %v4855
    %v4857 = vpop.f32.mrb[0].mxu0
    %v4858 = vadd.f32 %v4755, %v4857
    %v4859 = vpop.f32.mrb[0].mxu0
    %4860 = vmatprep.mubr.f32.mxu0 0.0
    %v4861 = vand.u32 %v4203, 4294901760
    %4862 = vmatmul.mubr.f32.gmra.mrb[0].mxu0 %v4861
    %v4863 = vpop.f32.mrb[0].mxu0
    %v4864 = vadd.f32 %v4761, %v4863
    %v4865 = vpop.f32.mrb[0].mxu0
    %4866 = vmatprep.mubr.f32.mxu0 0.0
    %v4867 = vand.u32 %v4206, 4294901760
    %4868 = vmatmul.mubr.f32.gmra.mrb[0].mxu0 %v4867
    %v4869 = vpop.f32.mrb[0].mxu0
    %v4870 = vadd.f32 %v4767, %v4869
    %v4871 = vpop.f32.mrb[0].mxu0
    %4872 = vmatprep.mubr.f32.mxu0 0.0
    %v4873 = vand.u32 %v4209, 4294901760
    %4874 = vmatmul.mubr.f32.gmra.mrb[0].mxu0 %v4873
    %v4875 = vpop.f32.mrb[0].mxu0
    %v4876 = vadd.f32 %v4773, %v4875
    %v4877 = vpop.f32.mrb[0].mxu0
    %4878 = vmatprep.mubr.f32.mxu0 0.0
    %v4879 = vand.u32 %v4212, 4294901760
    %4880 = vmatmul.mubr.f32.gmra.mrb[0].mxu0 %v4879
    %v4881 = vpop.f32.mrb[0].mxu0
    %v4882 = vadd.f32 %v4779, %v4881
    %v4883 = vpop.f32.mrb[0].mxu0
    %4884 = vmatprep.mubr.f32.mxu0 0.0
    %v4885 = vand.u32 %v4215, 4294901760
    %4886 = vmatmul.mubr.f32.gmra.mrb[0].mxu0 %v4885
    %v4887 = vpop.f32.mrb[0].mxu0
    %v4888 = vadd.f32 %v4785, %v4887
    %v4889 = vpop.f32.mrb[0].mxu0
    %4890 = vdwg.mxu0
    %vm4891 = vcmask 523264
    %v4892 = vsel %vm4891, %v4858, 0.0
    %4893 = vadd.xlane.f32.xlu0 %v4892
    %v4894 = vpop.xlane.xlu0 %4893
    %v4895 = vsel %vm4891, %v4864, 0.0
    %4896 = vadd.xlane.f32.xlu0 %v4895
    %v4897 = vpop.xlane.xlu0 %4896
    %v4898 = vsel %vm4891, %v4870, 0.0
    %4899 = vadd.xlane.f32.xlu0 %v4898
    %v4900 = vpop.xlane.xlu0 %4899
    %v4901 = vsel %vm4891, %v4876, 0.0
    %4902 = vadd.xlane.f32.xlu0 %v4901
    %v4903 = vpop.xlane.xlu0 %4902
    %v4904 = vsel %vm4891, %v4882, 0.0
    %4905 = vadd.xlane.f32.xlu0 %v4904
    %v4906 = vpop.xlane.xlu0 %4905
    %v4907 = vsel %vm4891, %v4888, 0.0
    %4908 = vadd.xlane.f32.xlu0 %v4907
    %v4909 = vpop.xlane.xlu0 %4908
    %v4910 = vrcp.pop 64.0
    %v4911 = vmul.f32 %v4894, %v4910
    %v4912 = vmul.f32 %v4897, %v4910
    %v4913 = vmul.f32 %v4900, %v4910
    %v4914 = vmul.f32 %v4903, %v4910
    %v4915 = vmul.f32 %v4906, %v4910
    %v4916 = vmul.f32 %v4909, %v4910
    %v4917 = vsub.f32 %v4858, %v4911
    %v4918 = vsub.f32 %v4864, %v4912
    %v4919 = vsub.f32 %v4870, %v4913
    %v4920 = vsub.f32 %v4876, %v4914
    %v4921 = vsub.f32 %v4882, %v4915
    %v4922 = vsub.f32 %v4888, %v4916
    %v4923 = vmul.f32 %v4917, %v4917
    %v4924 = vmul.f32 %v4918, %v4918
    %v4925 = vmul.f32 %v4919, %v4919
    %v4926 = vmul.f32 %v4920, %v4920
    %v4927 = vmul.f32 %v4921, %v4921
    %v4928 = vmul.f32 %v4922, %v4922
    %v4929 = vsel %vm4891, %v4923, 0.0
    %4930 = vadd.xlane.f32.xlu0 %v4929
    %v4931 = vpop.xlane.xlu0 %4930
    %v4932 = vsel %vm4891, %v4924, 0.0
    %4933 = vadd.xlane.f32.xlu0 %v4932
    %v4934 = vpop.xlane.xlu0 %4933
    %v4935 = vsel %vm4891, %v4925, 0.0
    %4936 = vadd.xlane.f32.xlu0 %v4935
    %v4937 = vpop.xlane.xlu0 %4936
    %v4938 = vsel %vm4891, %v4926, 0.0
    %4939 = vadd.xlane.f32.xlu0 %v4938
    %v4940 = vpop.xlane.xlu0 %4939
    %v4941 = vsel %vm4891, %v4927, 0.0
    %4942 = vadd.xlane.f32.xlu0 %v4941
    %v4943 = vpop.xlane.xlu0 %4942
    %v4944 = vsel %vm4891, %v4928, 0.0
    %4945 = vadd.xlane.f32.xlu0 %v4944
    %v4946 = vpop.xlane.xlu0 %4945
    %v4947 = vmul.f32 %v4931, %v4910
    %v4948 = vmul.f32 %v4934, %v4910
    %v4949 = vmul.f32 %v4937, %v4910
    %v4950 = vmul.f32 %v4940, %v4910
    %v4951 = vmul.f32 %v4943, %v4910
    %v4952 = vmul.f32 %v4946, %v4910
    %v4953 = vadd.f32 %v4947, 1e-05
    %v4954 = vadd.f32 %v4948, 1e-05
    %v4955 = vadd.f32 %v4949, 1e-05
    %v4956 = vadd.f32 %v4950, 1e-05
    %v4957 = vadd.f32 %v4951, 1e-05
    %v4958 = vadd.f32 %v4952, 1e-05
    %v4959 = vrsqrt.pop %v4953
    %v4960 = vrsqrt.pop %v4954
    %v4961 = vrsqrt.pop %v4955
    %v4962 = vrsqrt.pop %v4956
    %v4963 = vrsqrt.pop %v4957
    %v4964 = vrsqrt.pop %v4958
    %v4965 = vmul.f32 %v4917, %v4959
    %v4966 = vmul.f32 %v4918, %v4960
    %v4967 = vmul.f32 %v4919, %v4961
    %v4968 = vmul.f32 %v4920, %v4962
    %v4969 = vmul.f32 %v4921, %v4963
    %v4970 = vmul.f32 %v4922, %v4964
    %4971 = vst.msk [vmem:[#allocation2] sm:$0xff] %vm4891, %v4965
    %4972 = vst.msk [vmem:[#allocation2 + $0x8] sm:$0xff] %vm4891, %v4966
    %4973 = vst.msk [vmem:[#allocation2 + $0x10] sm:$0xff] %vm4891, %v4967
    %4974 = vst.msk [vmem:[#allocation2 + $0x18] sm:$0xff] %vm4891, %v4968
    %4975 = vst.msk [vmem:[#allocation2 + $0x20] sm:$0xff] %vm4891, %v4969
    %4976 = vst.msk [vmem:[#allocation2 + $0x28] sm:$0xff] %vm4891, %v4970
    // Predicated region
    $region30: #{hypernetwork_forward.1} parent=1 // pred_check
      _
    $region31: #{hypernetwork_forward.1} parent=1 // pred_check_branch
      %4978 = sbr.rel (0) target = $region33
    $region32: #{hypernetwork_forward.1} parent=1 // pred_region
      %s4980 = ssub.s32 768, 768
      %4981 = vsyncadd [#allocation3], %s4980
      %s4982 = sshll.u32 [#allocation2], 4
      %s4983 = int_to_ptr.vmem [resolvable:$true] %s4982
      %4988 = dma.vmem_to_hbm [thread:$0]  %s4983, 768, %s7, [#allocation3], 128, 128, 8
    $region33: #{hypernetwork_forward.1} parent=1 // pred_fallthru
      _
    // Predicated region
    $region34: #{hypernetwork_forward.1} parent=1 // pred_check
      _
    $region35: #{hypernetwork_forward.1} parent=1 // pred_check_branch
      %4990 = sbr.rel (0) target = $region37
    $region36: #{hypernetwork_forward.1} parent=1 // pred_region
      %4991 = dma.done [#allocation3], 768
    $region37: #{hypernetwork_forward.1} parent=1 // pred_fallthru
      _
    %4992 = vsyncpa [#allocation3], 1

</llo_original>
